<compile_context>
chip_gen: v5e
topology: v5e:2x2
jax: 0.10.0
libtpu: 0.0.40
codegen_flags: <defaults>
</compile_context>

<pallas_src>
import jax
import jax.numpy as jnp
from jax.experimental import pallas as pl
from jax.experimental.pallas import tpu as pltpu

EPS = 1e-5                       # BatchNorm eps (PyTorch default)
K_BASIS = 20                     # real number of basis functions
K_PAD = 128                      # lane-padded final output width
CIN_PAD = 8                      # zero-padded xyz channel count

# (C_out, C_in, has_batchnorm, relu) — mirrors the PyTorch module.
_LAYERS = [
    (64, 3, True, True),       # feat.conv1 / bn1
    (64, 64, True, True),      # feat.conv2 / bn2
    (64, 64, True, True),      # feat.conv3 / bn3
    (128, 64, True, True),     # feat.conv4 / bn4
    (128, 128, True, True),    # feat.conv41 / bn41
    (128, 128, True, True),    # feat.conv42 / bn42
    (1024, 128, True, True),   # feat.conv5 / bn5
    (256, 1024, True, True),   # feat.dense1 / bn6
    (256, 256, True, True),    # feat.dense2 / bn7
    (512, 1280, True, True),   # basis.conv1 / bn1 (in = [global(256) | pointfeat(1024)])
    (256, 512, True, True),    # basis.conv2 / bn2
    (K_BASIS, 256, False, False),  # basis.conv3
]


def _fold_bn(w, b, gamma, beta, mean, var):
    """Fold eval-mode BatchNorm1d into the preceding linear layer."""
    scale = gamma / jnp.sqrt(var + EPS)
    w_f = w * scale[:, None]
    b_f = (b - mean) * scale + beta
    return w_f, b_f


def make_params(key):
    """Deterministic synthetic parameters.

    Returns a list of 12 tuples (wT, bias): wT is (C_in, C_out) f32, bias is
    (1, C_out) f32, with BN already folded in.
    """
    params = []
    for (c_out, c_in, has_bn, _) in _LAYERS:
        key, kw, kb, kg, kbe, km, kv = jax.random.split(key, 7)
        w = jax.random.normal(kw, (c_out, c_in), jnp.float32) * 0.1
        b = jax.random.normal(kb, (c_out,), jnp.float32) * 0.05
        if has_bn:
            gamma = 1.0 + 0.1 * jax.random.normal(kg, (c_out,), jnp.float32)
            beta = 0.05 * jax.random.normal(kbe, (c_out,), jnp.float32)
            mean = 0.05 * jax.random.normal(km, (c_out,), jnp.float32)
            var = 0.5 + jnp.abs(jax.random.normal(kv, (c_out,), jnp.float32))
            w, b = _fold_bn(w, b, gamma, beta, mean, var)
        params.append((jnp.asarray(w.T), b.reshape(1, c_out)))
    return params


def prepare_kernel_params(params):
    """Pad / split / cast raw f32 params for the kernels and the hoisted global path."""
    # --- feature stage: conv1..conv5 (layer-0 wT zero-padded 3 -> CIN_PAD rows) ---
    w0, b0 = params[0]
    w0 = jnp.pad(w0, ((0, CIN_PAD - w0.shape[0]), (0, 0)))
    feat = [(w0.astype(jnp.bfloat16), b0)]
    for i in range(1, 7):
        w, b = params[i]
        feat.append((w.astype(jnp.bfloat16), b))

    # basis.conv1 weight split: rows 0:256 = global feature, 256: = pointfeat.
    w9, b9 = params[9]            # (1280, 512)
    w9g = w9[:256, :]
    w9p = w9[256:, :]
    feat_w9p = w9p.astype(jnp.bfloat16)    # lives in stage 1 now

    # --- hoisted global path: dense1, dense2, g @ W9_g + b9 (once per batch) ---
    w7, b7 = params[7]
    w8, b8 = params[8]
    glob = (w7.astype(jnp.bfloat16), b7,
            w8.astype(jnp.bfloat16), b8,
            w9g.astype(jnp.bfloat16), b9)

    # --- basis head: conv2, conv3 (lane-padded to K_PAD) ---
    w10, b10 = params[10]
    w11, b11 = params[11]         # (256, 20)
    w11 = jnp.pad(w11, ((0, 0), (0, K_PAD - w11.shape[1])))
    b11 = jnp.pad(b11, ((0, 0), (0, K_PAD - b11.shape[1])))
    head = (w10.astype(jnp.bfloat16), b10, w11.astype(jnp.bfloat16), b11)

    return feat, feat_w9p, glob, head


def _bf16_layer(h, w_ref, b_ref, relu=True):
    """y = relu(h @ W + b): bf16 operands, f32 MXU accumulation, f32 bias/relu."""
    y = jnp.dot(h.astype(jnp.bfloat16), w_ref[...],
                preferred_element_type=jnp.float32) + b_ref[...]
    return jnp.maximum(y, 0.0) if relu else y


def _make_feat_kernel(tn, n_real, need_mask):
    """feat.conv1..conv5 + z = pointfeat @ W9_p for one (batch, point-tile);
    also updates the per-batch running channel max (accumulator output)."""

    def kernel(x_ref,
               w0, b0, w1, b1, w2, b2, w3, b3, w4, b4, w5, b5, w6, b6, w9p,
               z_ref, gmax_ref):
        nt = pl.program_id(1)

        h = x_ref[0]                                   # (tn, CIN_PAD) f32
        h = _bf16_layer(h, w0, b0)
        h = _bf16_layer(h, w1, b1)
        h = _bf16_layer(h, w2, b2)
        h = _bf16_layer(h, w3, b3)
        h = _bf16_layer(h, w4, b4)
        h = _bf16_layer(h, w5, b5)
        h = _bf16_layer(h, w6, b6)                     # (tn, 1024) f32, post-ReLU

        # Project pointfeat through W9_p here so only a 512-wide bf16 tensor
        # (not the 1024-wide pointfeat) crosses HBM between the two stages.
        z = jnp.dot(h.astype(jnp.bfloat16), w9p[...],
                    preferred_element_type=jnp.float32)   # (tn, 512), no ReLU yet
        z_ref[0] = z.astype(jnp.bfloat16)

        # Running max over point tiles. Zero-init is exact because h is post-ReLU >= 0.
        @pl.when(nt == 0)
        def _():
            gmax_ref[...] = jnp.zeros_like(gmax_ref)

        if need_mask:
            # Padded rows carry relu(bias) garbage; mask them out of the max.
            row = jax.lax.broadcasted_iota(jnp.int32, (tn, 1), 0)
            valid = row < (n_real - nt * tn)
            h = jnp.where(valid, h, 0.0)
        tile_max = jnp.max(h, axis=0, keepdims=True)   # (1, 1024)
        gmax_ref[0] = jnp.maximum(gmax_ref[0], tile_max)

    return kernel


def _head_kernel(c_ref, z_ref, w10, b10, w11, b11, o_ref):
    """basis head for one (batch, point-tile): relu(z + c) -> conv2 -> conv3."""
    # c already contains g @ W9_g + b9 (hoisted per-batch global path).
    h = jnp.maximum(z_ref[0].astype(jnp.float32) + c_ref[0], 0.0)   # (tn, 512)
    h = _bf16_layer(h, w10, b10)                                    # (tn, 256)
    # TODO(synk): nn.Dropout(p=0.3) is identity in eval mode; omitted here.
    y = _bf16_layer(h, w11, b11, relu=False)                        # (tn, K_PAD)
    o_ref[0] = y.astype(jnp.bfloat16)


def _vmem_limit_and_max_tile():
    """Generation-gated VMEM budget / point-tile: 128 MiB parts (v5e/v6e) get
    96 MiB + tile 2048; v7x (64 MiB) or unknown get the safe 48 MiB + tile 1024."""
    try:
        cap = pltpu.get_tpu_info().vmem_capacity_bytes
    except Exception:
        cap = None
    if cap is not None and cap >= 100 * 1024 * 1024:
        return 96 * 1024 * 1024, 2048
    return 48 * 1024 * 1024, 1024


def _pad_points(n, max_tile):
    """Pad the point count to a sublane/tile-friendly size; returns (n_pad, tile)."""
    if n <= max_tile:
        n_pad = -(-n // 8) * 8
        return n_pad, n_pad
    n_pad = -(-n // max_tile) * max_tile
    return n_pad, max_tile


def pointnet_basis_forward(x_ncw, feat_params, w9p, glob_params, head_params):
    """x_ncw: (B, 3, N) float32 (PyTorch NCW layout). Returns (B, N, K_BASIS) f32."""
    x_bnc = jnp.transpose(x_ncw, (0, 2, 1)).astype(jnp.float32)   # (B, N, 3)
    B, N, C = x_bnc.shape

    vmem_limit, max_tile = _vmem_limit_and_max_tile()
    n_pad, tn = _pad_points(N, max_tile)
    n_tiles = n_pad // tn
    grid = (B, n_tiles)

    x_bnc = jnp.pad(x_bnc, ((0, 0), (0, n_pad - N), (0, CIN_PAD - C)))  # (B, n_pad, 8)

    # ---------------- stage 1: point features -> z = pf @ W9_p, global max ----------------
    feat_inputs = [x_bnc]
    feat_in_specs = [pl.BlockSpec((1, tn, CIN_PAD), lambda b, t: (b, t, 0))]
    for (w, bias) in feat_params:
        feat_inputs += [w, bias]
        feat_in_specs += [pl.BlockSpec(w.shape, lambda b, t: (0, 0)),
                          pl.BlockSpec(bias.shape, lambda b, t: (0, 0))]
    feat_inputs.append(w9p)
    feat_in_specs.append(pl.BlockSpec(w9p.shape, lambda b, t: (0, 0)))

    feat_flops = 2 * B * n_pad * (
        CIN_PAD * 64 + 64 * 64 + 64 * 64 + 64 * 128 + 128 * 128 + 128 * 128
        + 128 * 1024 + 1024 * 512)
    feat_bytes = (int(x_bnc.size) * 4 + B * n_pad * 512 * 2 + B * 1024 * 4
                  + sum(int(a.size) * a.dtype.itemsize for a in feat_inputs[1:]))

    z, gmax = pl.pallas_call(
        _make_feat_kernel(tn, N, need_mask=(n_pad != N)),
        out_shape=(jax.ShapeDtypeStruct((B, n_pad, 512), jnp.bfloat16),
                   jax.ShapeDtypeStruct((B, 1, 1024), jnp.float32)),
        grid_spec=pltpu.PrefetchScalarGridSpec(
            num_scalar_prefetch=0,
            grid=grid,
            in_specs=feat_in_specs,
            out_specs=(pl.BlockSpec((1, tn, 512), lambda b, t: (b, t, 0)),
                       pl.BlockSpec((1, 1, 1024), lambda b, t: (b, 0, 0))),
        ),
        compiler_params=pltpu.CompilerParams(
            dimension_semantics=("parallel", "arbitrary"),
            vmem_limit_bytes=vmem_limit,
        ),
        cost_estimate=pl.CostEstimate(flops=feat_flops, transcendentals=0,
                                      bytes_accessed=feat_bytes),
    )(*feat_inputs)

    # ------------- hoisted global path (tiny, once per batch, plain JAX) -------------
    w7, b7, w8, b8, w9g, b9 = glob_params
    g = jnp.maximum(jnp.dot(gmax.astype(jnp.bfloat16), w7,
                            preferred_element_type=jnp.float32) + b7, 0.0)   # (B,1,256)
    g = jnp.maximum(jnp.dot(g.astype(jnp.bfloat16), w8,
                            preferred_element_type=jnp.float32) + b8, 0.0)   # (B,1,256)
    c = jnp.dot(g.astype(jnp.bfloat16), w9g,
                preferred_element_type=jnp.float32) + b9                     # (B,1,512)

    # ---------------- stage 2: basis head ----------------
    w10, b10, w11, b11 = head_params
    head_inputs = [c, z, w10, b10, w11, b11]
    head_in_specs = [pl.BlockSpec((1, 1, 512), lambda b, t: (b, 0, 0)),
                     pl.BlockSpec((1, tn, 512), lambda b, t: (b, t, 0)),
                     pl.BlockSpec(w10.shape, lambda b, t: (0, 0)),
                     pl.BlockSpec(b10.shape, lambda b, t: (0, 0)),
                     pl.BlockSpec(w11.shape, lambda b, t: (0, 0)),
                     pl.BlockSpec(b11.shape, lambda b, t: (0, 0))]

    head_flops = 2 * B * n_pad * (512 * 256 + 256 * K_PAD)
    head_bytes = (B * n_pad * 512 * 2 + int(c.size) * 4 + B * n_pad * K_PAD * 2
                  + sum(int(a.size) * a.dtype.itemsize for a in head_inputs[2:]))

    out = pl.pallas_call(
        _head_kernel,
        out_shape=jax.ShapeDtypeStruct((B, n_pad, K_PAD), jnp.bfloat16),
        grid_spec=pltpu.PrefetchScalarGridSpec(
            num_scalar_prefetch=0,
            grid=grid,
            in_specs=head_in_specs,
            out_specs=pl.BlockSpec((1, tn, K_PAD), lambda b, t: (b, t, 0)),
        ),
        compiler_params=pltpu.CompilerParams(
            dimension_semantics=("parallel", "parallel"),
            vmem_limit_bytes=vmem_limit,
        ),
        cost_estimate=pl.CostEstimate(flops=head_flops, transcendentals=0,
                                      bytes_accessed=head_bytes),
    )(*head_inputs)

    # Padded rows / lanes: keep only the real N points and k basis channels.
    return out[:, :N, :K_BASIS].astype(jnp.float32)


def reference_forward(x_ncw, params):
    """Plain-JAX reference mirroring the module (mixed bf16/f32 precision)."""
    def lin(h, wT, b, relu=True):
        y = jnp.dot(h.astype(jnp.bfloat16), wT.astype(jnp.bfloat16),
                    preferred_element_type=jnp.float32) + b
        return jnp.maximum(y, 0.0) if relu else y

    h = jnp.transpose(x_ncw, (0, 2, 1)).astype(jnp.float32)    # (B, N, 3)
    for i in range(7):
        h = lin(h, *params[i])
    pf = h                                                     # (B, N, 1024)
    g = jnp.max(pf, axis=1, keepdims=True)                     # (B, 1, 1024)
    g = lin(g, *params[7])
    g = lin(g, *params[8])                                     # (B, 1, 256)
    gt = jnp.broadcast_to(g, (pf.shape[0], pf.shape[1], g.shape[-1]))
    h = jnp.concatenate([gt, pf], axis=2)                      # (B, N, 1280)
    h = lin(h, *params[9])
    h = lin(h, *params[10])
    return lin(h, *params[11], relu=False)                     # (B, N, 20)


if __name__ == "__main__":
    key = jax.random.PRNGKey(0)
    key_p, key_x = jax.random.split(key)

    params = make_params(key_p)
    feat_params, w9p, glob_params, head_params = prepare_kernel_params(params)

    B, N = 2, 16
    x = jax.random.normal(key_x, (B, 3, N), jnp.float32)   # PyTorch NCW input

    out = pointnet_basis_forward(x, feat_params, w9p, glob_params, head_params)
    out = jax.block_until_ready(out)

    ref = reference_forward(x, params)
    assert out.shape == (B, N, K_BASIS), out.shape
    max_err = float(jnp.max(jnp.abs(out - ref)))
    assert jnp.allclose(out, ref, rtol=1e-2, atol=1e-2), f"mismatch vs reference: {max_err}"

    print("KERNEL_OK")
</pallas_src>

<mosaic_0001>
module attributes {stable_mosaic.version = 11 : i64} {
  func.func @kernel(%arg0: i32, %arg1: i32, %arg2: memref<1x16x8xf32, #tpu.memory_space<vmem>>, %arg3: memref<8x64xbf16, #tpu.memory_space<vmem>>, %arg4: memref<1x64xf32, #tpu.memory_space<vmem>>, %arg5: memref<64x64xbf16, #tpu.memory_space<vmem>>, %arg6: memref<1x64xf32, #tpu.memory_space<vmem>>, %arg7: memref<64x64xbf16, #tpu.memory_space<vmem>>, %arg8: memref<1x64xf32, #tpu.memory_space<vmem>>, %arg9: memref<64x128xbf16, #tpu.memory_space<vmem>>, %arg10: memref<1x128xf32, #tpu.memory_space<vmem>>, %arg11: memref<128x128xbf16, #tpu.memory_space<vmem>>, %arg12: memref<1x128xf32, #tpu.memory_space<vmem>>, %arg13: memref<128x128xbf16, #tpu.memory_space<vmem>>, %arg14: memref<1x128xf32, #tpu.memory_space<vmem>>, %arg15: memref<128x1024xbf16, #tpu.memory_space<vmem>>, %arg16: memref<1x1024xf32, #tpu.memory_space<vmem>>, %arg17: memref<1024x512xbf16, #tpu.memory_space<vmem>>, %arg18: memref<1x16x512xbf16, #tpu.memory_space<vmem>>, %arg19: memref<1x1x1024xf32, #tpu.memory_space<vmem>>) attributes {dimension_semantics = [#tpu.dimension_semantics<parallel>, #tpu.dimension_semantics<arbitrary>], iteration_bounds = array<i64: 2, 1>, scalar_prefetch = 0 : i64, scratch_operands = 0 : i64, tpu.core_type = #tpu.core_type<tc>, window_params = [{transform_indices = @transform_0, window_bounds = array<i64: 1, 16, 8>}, {pipeline_mode = #tpu.pipeline_mode<synchronous>, transform_indices = @transform_1, window_bounds = array<i64: 8, 64>}, {pipeline_mode = #tpu.pipeline_mode<synchronous>, transform_indices = @transform_2, window_bounds = array<i64: 1, 64>}, {pipeline_mode = #tpu.pipeline_mode<synchronous>, transform_indices = @transform_3, window_bounds = array<i64: 64, 64>}, {pipeline_mode = #tpu.pipeline_mode<synchronous>, transform_indices = @transform_4, window_bounds = array<i64: 1, 64>}, {pipeline_mode = #tpu.pipeline_mode<synchronous>, transform_indices = @transform_5, window_bounds = array<i64: 64, 64>}, {pipeline_mode = #tpu.pipeline_mode<synchronous>, transform_indices = @transform_6, window_bounds = array<i64: 1, 64>}, {pipeline_mode = #tpu.pipeline_mode<synchronous>, transform_indices = @transform_7, window_bounds = array<i64: 64, 128>}, {pipeline_mode = #tpu.pipeline_mode<synchronous>, transform_indices = @transform_8, window_bounds = array<i64: 1, 128>}, {pipeline_mode = #tpu.pipeline_mode<synchronous>, transform_indices = @transform_9, window_bounds = array<i64: 128, 128>}, {pipeline_mode = #tpu.pipeline_mode<synchronous>, transform_indices = @transform_10, window_bounds = array<i64: 1, 128>}, {pipeline_mode = #tpu.pipeline_mode<synchronous>, transform_indices = @transform_11, window_bounds = array<i64: 128, 128>}, {pipeline_mode = #tpu.pipeline_mode<synchronous>, transform_indices = @transform_12, window_bounds = array<i64: 1, 128>}, {pipeline_mode = #tpu.pipeline_mode<synchronous>, transform_indices = @transform_13, window_bounds = array<i64: 128, 1024>}, {pipeline_mode = #tpu.pipeline_mode<synchronous>, transform_indices = @transform_14, window_bounds = array<i64: 1, 1024>}, {pipeline_mode = #tpu.pipeline_mode<synchronous>, transform_indices = @transform_15, window_bounds = array<i64: 1024, 512>}, {transform_indices = @transform_16, window_bounds = array<i64: 1, 16, 512>}, {transform_indices = @transform_17, window_bounds = array<i64: 1, 1, 1024>}]} {
    %c0 = arith.constant 0 : index
    %c0_0 = arith.constant 0 : index
    %c0_1 = arith.constant 0 : index
    %0 = vector.load %arg2[%c0, %c0_0, %c0_1] : memref<1x16x8xf32, #tpu.memory_space<vmem>>, vector<1x16x8xf32>
    %1 = vector.shape_cast %0 : vector<1x16x8xf32> to vector<16x8xf32>
    %2 = arith.truncf %1 : vector<16x8xf32> to vector<16x8xbf16>
    %c0_2 = arith.constant 0 : index
    %c0_3 = arith.constant 0 : index
    %3 = vector.load %arg3[%c0_2, %c0_3] : memref<8x64xbf16, #tpu.memory_space<vmem>>, vector<8x64xbf16>
    %cst = arith.constant dense<0.000000e+00> : vector<16x64xf32>
    %4 = tpu.matmul %2, %3, %cst {dimension_numbers = #tpu.dot_dimension_numbers<[1], [0], [0], [1], [0, 0, 1, 1], [], []>} : vector<16x8xbf16>, vector<8x64xbf16>, vector<16x64xf32> -> vector<16x64xf32>
    %c0_4 = arith.constant 0 : index
    %c0_5 = arith.constant 0 : index
    %5 = vector.load %arg4[%c0_4, %c0_5] : memref<1x64xf32, #tpu.memory_space<vmem>>, vector<1x64xf32>
    %6 = vector.broadcast %5 : vector<1x64xf32> to vector<16x64xf32>
    %7 = arith.addf %4, %6 : vector<16x64xf32>
    %cst_6 = arith.constant 0.000000e+00 : f32
    %8 = vector.broadcast %cst_6 : f32 to vector<16x64xf32>
    %9 = arith.maximumf %7, %8 : vector<16x64xf32>
    %10 = arith.truncf %9 : vector<16x64xf32> to vector<16x64xbf16>
    %c0_7 = arith.constant 0 : index
    %c0_8 = arith.constant 0 : index
    %11 = vector.load %arg5[%c0_7, %c0_8] : memref<64x64xbf16, #tpu.memory_space<vmem>>, vector<64x64xbf16>
    %cst_9 = arith.constant dense<0.000000e+00> : vector<16x64xf32>
    %12 = tpu.matmul %10, %11, %cst_9 {dimension_numbers = #tpu.dot_dimension_numbers<[1], [0], [0], [1], [0, 0, 1, 1], [], []>} : vector<16x64xbf16>, vector<64x64xbf16>, vector<16x64xf32> -> vector<16x64xf32>
    %c0_10 = arith.constant 0 : index
    %c0_11 = arith.constant 0 : index
    %13 = vector.load %arg6[%c0_10, %c0_11] : memref<1x64xf32, #tpu.memory_space<vmem>>, vector<1x64xf32>
    %14 = vector.broadcast %13 : vector<1x64xf32> to vector<16x64xf32>
    %15 = arith.addf %12, %14 : vector<16x64xf32>
    %cst_12 = arith.constant 0.000000e+00 : f32
    %16 = vector.broadcast %cst_12 : f32 to vector<16x64xf32>
    %17 = arith.maximumf %15, %16 : vector<16x64xf32>
    %18 = arith.truncf %17 : vector<16x64xf32> to vector<16x64xbf16>
    %c0_13 = arith.constant 0 : index
    %c0_14 = arith.constant 0 : index
    %19 = vector.load %arg7[%c0_13, %c0_14] : memref<64x64xbf16, #tpu.memory_space<vmem>>, vector<64x64xbf16>
    %cst_15 = arith.constant dense<0.000000e+00> : vector<16x64xf32>
    %20 = tpu.matmul %18, %19, %cst_15 {dimension_numbers = #tpu.dot_dimension_numbers<[1], [0], [0], [1], [0, 0, 1, 1], [], []>} : vector<16x64xbf16>, vector<64x64xbf16>, vector<16x64xf32> -> vector<16x64xf32>
    %c0_16 = arith.constant 0 : index
    %c0_17 = arith.constant 0 : index
    %21 = vector.load %arg8[%c0_16, %c0_17] : memref<1x64xf32, #tpu.memory_space<vmem>>, vector<1x64xf32>
    %22 = vector.broadcast %21 : vector<1x64xf32> to vector<16x64xf32>
    %23 = arith.addf %20, %22 : vector<16x64xf32>
    %cst_18 = arith.constant 0.000000e+00 : f32
    %24 = vector.broadcast %cst_18 : f32 to vector<16x64xf32>
    %25 = arith.maximumf %23, %24 : vector<16x64xf32>
    %26 = arith.truncf %25 : vector<16x64xf32> to vector<16x64xbf16>
    %c0_19 = arith.constant 0 : index
    %c0_20 = arith.constant 0 : index
    %27 = vector.load %arg9[%c0_19, %c0_20] : memref<64x128xbf16, #tpu.memory_space<vmem>>, vector<64x128xbf16>
    %cst_21 = arith.constant dense<0.000000e+00> : vector<16x128xf32>
    %28 = tpu.matmul %26, %27, %cst_21 {dimension_numbers = #tpu.dot_dimension_numbers<[1], [0], [0], [1], [0, 0, 1, 1], [], []>} : vector<16x64xbf16>, vector<64x128xbf16>, vector<16x128xf32> -> vector<16x128xf32>
    %c0_22 = arith.constant 0 : index
    %c0_23 = arith.constant 0 : index
    %29 = vector.load %arg10[%c0_22, %c0_23] : memref<1x128xf32, #tpu.memory_space<vmem>>, vector<1x128xf32>
    %30 = vector.broadcast %29 : vector<1x128xf32> to vector<16x128xf32>
    %31 = arith.addf %28, %30 : vector<16x128xf32>
    %cst_24 = arith.constant 0.000000e+00 : f32
    %32 = vector.broadcast %cst_24 : f32 to vector<16x128xf32>
    %33 = arith.maximumf %31, %32 : vector<16x128xf32>
    %34 = arith.truncf %33 : vector<16x128xf32> to vector<16x128xbf16>
    %c0_25 = arith.constant 0 : index
    %c0_26 = arith.constant 0 : index
    %35 = vector.load %arg11[%c0_25, %c0_26] : memref<128x128xbf16, #tpu.memory_space<vmem>>, vector<128x128xbf16>
    %cst_27 = arith.constant dense<0.000000e+00> : vector<16x128xf32>
    %36 = tpu.matmul %34, %35, %cst_27 {dimension_numbers = #tpu.dot_dimension_numbers<[1], [0], [0], [1], [0, 0, 1, 1], [], []>} : vector<16x128xbf16>, vector<128x128xbf16>, vector<16x128xf32> -> vector<16x128xf32>
    %c0_28 = arith.constant 0 : index
    %c0_29 = arith.constant 0 : index
    %37 = vector.load %arg12[%c0_28, %c0_29] : memref<1x128xf32, #tpu.memory_space<vmem>>, vector<1x128xf32>
    %38 = vector.broadcast %37 : vector<1x128xf32> to vector<16x128xf32>
    %39 = arith.addf %36, %38 : vector<16x128xf32>
    %cst_30 = arith.constant 0.000000e+00 : f32
    %40 = vector.broadcast %cst_30 : f32 to vector<16x128xf32>
    %41 = arith.maximumf %39, %40 : vector<16x128xf32>
    %42 = arith.truncf %41 : vector<16x128xf32> to vector<16x128xbf16>
    %c0_31 = arith.constant 0 : index
    %c0_32 = arith.constant 0 : index
    %43 = vector.load %arg13[%c0_31, %c0_32] : memref<128x128xbf16, #tpu.memory_space<vmem>>, vector<128x128xbf16>
    %cst_33 = arith.constant dense<0.000000e+00> : vector<16x128xf32>
    %44 = tpu.matmul %42, %43, %cst_33 {dimension_numbers = #tpu.dot_dimension_numbers<[1], [0], [0], [1], [0, 0, 1, 1], [], []>} : vector<16x128xbf16>, vector<128x128xbf16>, vector<16x128xf32> -> vector<16x128xf32>
    %c0_34 = arith.constant 0 : index
    %c0_35 = arith.constant 0 : index
    %45 = vector.load %arg14[%c0_34, %c0_35] : memref<1x128xf32, #tpu.memory_space<vmem>>, vector<1x128xf32>
    %46 = vector.broadcast %45 : vector<1x128xf32> to vector<16x128xf32>
    %47 = arith.addf %44, %46 : vector<16x128xf32>
    %cst_36 = arith.constant 0.000000e+00 : f32
    %48 = vector.broadcast %cst_36 : f32 to vector<16x128xf32>
    %49 = arith.maximumf %47, %48 : vector<16x128xf32>
    %50 = arith.truncf %49 : vector<16x128xf32> to vector<16x128xbf16>
    %c0_37 = arith.constant 0 : index
    %c0_38 = arith.constant 0 : index
    %51 = vector.load %arg15[%c0_37, %c0_38] : memref<128x1024xbf16, #tpu.memory_space<vmem>>, vector<128x1024xbf16>
    %cst_39 = arith.constant dense<0.000000e+00> : vector<16x1024xf32>
    %52 = tpu.matmul %50, %51, %cst_39 {dimension_numbers = #tpu.dot_dimension_numbers<[1], [0], [0], [1], [0, 0, 1, 1], [], []>} : vector<16x128xbf16>, vector<128x1024xbf16>, vector<16x1024xf32> -> vector<16x1024xf32>
    %c0_40 = arith.constant 0 : index
    %c0_41 = arith.constant 0 : index
    %53 = vector.load %arg16[%c0_40, %c0_41] : memref<1x1024xf32, #tpu.memory_space<vmem>>, vector<1x1024xf32>
    %54 = vector.broadcast %53 : vector<1x1024xf32> to vector<16x1024xf32>
    %55 = arith.addf %52, %54 : vector<16x1024xf32>
    %cst_42 = arith.constant 0.000000e+00 : f32
    %56 = vector.broadcast %cst_42 : f32 to vector<16x1024xf32>
    %57 = arith.maximumf %55, %56 : vector<16x1024xf32>
    %58 = arith.truncf %57 : vector<16x1024xf32> to vector<16x1024xbf16>
    %c0_43 = arith.constant 0 : index
    %c0_44 = arith.constant 0 : index
    %59 = vector.load %arg17[%c0_43, %c0_44] : memref<1024x512xbf16, #tpu.memory_space<vmem>>, vector<1024x512xbf16>
    %cst_45 = arith.constant dense<0.000000e+00> : vector<16x512xf32>
    %60 = tpu.matmul %58, %59, %cst_45 {dimension_numbers = #tpu.dot_dimension_numbers<[1], [0], [0], [1], [0, 0, 1, 1], [], []>} : vector<16x1024xbf16>, vector<1024x512xbf16>, vector<16x512xf32> -> vector<16x512xf32>
    %61 = arith.truncf %60 : vector<16x512xf32> to vector<16x512xbf16>
    %c0_46 = arith.constant 0 : index
    %c0_47 = arith.constant 0 : index
    %c0_48 = arith.constant 0 : index
    %62 = vector.load %arg18[%c0_46, %c0_47, %c0_48] : memref<1x16x512xbf16, #tpu.memory_space<vmem>>, vector<1x16x512xbf16>
    %63 = vector.shape_cast %62 : vector<1x16x512xbf16> to vector<16x512xbf16>
    %64 = vector.shape_cast %61 : vector<16x512xbf16> to vector<1x16x512xbf16>
    tpu.vector_store %arg18[%c0_46, %c0_47, %c0_48], %64 {strides = array<i32>} : memref<1x16x512xbf16, #tpu.memory_space<vmem>>, vector<1x16x512xbf16>,
    %c0_i32 = arith.constant 0 : i32
    %65 = arith.cmpi eq, %arg1, %c0_i32 : i32
    %66 = arith.extui %65 : i1 to i32
    %c0_i32_49 = arith.constant 0 : i32
    %67 = arith.cmpi ne, %66, %c0_i32_49 : i32
    scf.if %67 {
      %cst_57 = arith.constant 0.000000e+00 : f32
      %76 = vector.broadcast %cst_57 : f32 to vector<1x1x1024xf32>
      %c0_58 = arith.constant 0 : index
      %c0_59 = arith.constant 0 : index
      %c0_60 = arith.constant 0 : index
      %77 = vector.load %arg19[%c0_58, %c0_59, %c0_60] : memref<1x1x1024xf32, #tpu.memory_space<vmem>>, vector<1x1x1024xf32>
      tpu.vector_store %arg19[%c0_58, %c0_59, %c0_60], %76 {strides = array<i32>} : memref<1x1x1024xf32, #tpu.memory_space<vmem>>, vector<1x1x1024xf32>,
    } else {
    }
    %cst_50 = arith.constant dense<0xFF800000> : vector<1024xf32>
    %68 = vector.multi_reduction <maximumf>, %57, %cst_50 [0] : vector<16x1024xf32> to vector<1024xf32>
    %69 = vector.shape_cast %68 : vector<1024xf32> to vector<1x1024xf32>
    %c0_51 = arith.constant 0 : index
    %c0_52 = arith.constant 0 : index
    %c0_53 = arith.constant 0 : index
    %70 = vector.load %arg19[%c0_51, %c0_52, %c0_53] : memref<1x1x1024xf32, #tpu.memory_space<vmem>>, vector<1x1x1024xf32>
    %71 = vector.shape_cast %70 : vector<1x1x1024xf32> to vector<1x1024xf32>
    %72 = arith.maximumf %71, %69 : vector<1x1024xf32>
    %c0_54 = arith.constant 0 : index
    %c0_55 = arith.constant 0 : index
    %c0_56 = arith.constant 0 : index
    %73 = vector.load %arg19[%c0_54, %c0_55, %c0_56] : memref<1x1x1024xf32, #tpu.memory_space<vmem>>, vector<1x1x1024xf32>
    %74 = vector.shape_cast %73 : vector<1x1x1024xf32> to vector<1x1024xf32>
    %75 = vector.shape_cast %72 : vector<1x1024xf32> to vector<1x1x1024xf32>
    tpu.vector_store %arg19[%c0_54, %c0_55, %c0_56], %75 {strides = array<i32>} : memref<1x1x1024xf32, #tpu.memory_space<vmem>>, vector<1x1x1024xf32>,
    return
  }
  func.func @transform_0(%arg0: i32, %arg1: i32) -> (i32, i32, i32) {
    %c0_i32 = arith.constant 0 : i32
    %c0_i32_0 = arith.constant 0 : i32
    return %arg0, %arg1, %c0_i32 : i32, i32, i32
  }
  func.func @transform_1(%arg0: i32, %arg1: i32) -> (i32, i32) {
    %c0_i32 = arith.constant 0 : i32
    %c0_i32_0 = arith.constant 0 : i32
    %c0_i32_1 = arith.constant 0 : i32
    return %c0_i32, %c0_i32_0 : i32, i32
  }
  func.func @transform_2(%arg0: i32, %arg1: i32) -> (i32, i32) {
    %c0_i32 = arith.constant 0 : i32
    %c0_i32_0 = arith.constant 0 : i32
    %c0_i32_1 = arith.constant 0 : i32
    return %c0_i32, %c0_i32_0 : i32, i32
  }
  func.func @transform_3(%arg0: i32, %arg1: i32) -> (i32, i32) {
    %c0_i32 = arith.constant 0 : i32
    %c0_i32_0 = arith.constant 0 : i32
    %c0_i32_1 = arith.constant 0 : i32
    return %c0_i32, %c0_i32_0 : i32, i32
  }
  func.func @transform_4(%arg0: i32, %arg1: i32) -> (i32, i32) {
    %c0_i32 = arith.constant 0 : i32
    %c0_i32_0 = arith.constant 0 : i32
    %c0_i32_1 = arith.constant 0 : i32
    return %c0_i32, %c0_i32_0 : i32, i32
  }
  func.func @transform_5(%arg0: i32, %arg1: i32) -> (i32, i32) {
    %c0_i32 = arith.constant 0 : i32
    %c0_i32_0 = arith.constant 0 : i32
    %c0_i32_1 = arith.constant 0 : i32
    return %c0_i32, %c0_i32_0 : i32, i32
  }
  func.func @transform_6(%arg0: i32, %arg1: i32) -> (i32, i32) {
    %c0_i32 = arith.constant 0 : i32
    %c0_i32_0 = arith.constant 0 : i32
    %c0_i32_1 = arith.constant 0 : i32
    return %c0_i32, %c0_i32_0 : i32, i32
  }
  func.func @transform_7(%arg0: i32, %arg1: i32) -> (i32, i32) {
    %c0_i32 = arith.constant 0 : i32
    %c0_i32_0 = arith.constant 0 : i32
    %c0_i32_1 = arith.constant 0 : i32
    return %c0_i32, %c0_i32_0 : i32, i32
  }
  func.func @transform_8(%arg0: i32, %arg1: i32) -> (i32, i32) {
    %c0_i32 = arith.constant 0 : i32
    %c0_i32_0 = arith.constant 0 : i32
    %c0_i32_1 = arith.constant 0 : i32
    return %c0_i32, %c0_i32_0 : i32, i32
  }
  func.func @transform_9(%arg0: i32, %arg1: i32) -> (i32, i32) {
    %c0_i32 = arith.constant 0 : i32
    %c0_i32_0 = arith.constant 0 : i32
    %c0_i32_1 = arith.constant 0 : i32
    return %c0_i32, %c0_i32_0 : i32, i32
  }
  func.func @transform_10(%arg0: i32, %arg1: i32) -> (i32, i32) {
    %c0_i32 = arith.constant 0 : i32
    %c0_i32_0 = arith.constant 0 : i32
    %c0_i32_1 = arith.constant 0 : i32
    return %c0_i32, %c0_i32_0 : i32, i32
  }
  func.func @transform_11(%arg0: i32, %arg1: i32) -> (i32, i32) {
    %c0_i32 = arith.constant 0 : i32
    %c0_i32_0 = arith.constant 0 : i32
    %c0_i32_1 = arith.constant 0 : i32
    return %c0_i32, %c0_i32_0 : i32, i32
  }
  func.func @transform_12(%arg0: i32, %arg1: i32) -> (i32, i32) {
    %c0_i32 = arith.constant 0 : i32
    %c0_i32_0 = arith.constant 0 : i32
    %c0_i32_1 = arith.constant 0 : i32
    return %c0_i32, %c0_i32_0 : i32, i32
  }
  func.func @transform_13(%arg0: i32, %arg1: i32) -> (i32, i32) {
    %c0_i32 = arith.constant 0 : i32
    %c0_i32_0 = arith.constant 0 : i32
    %c0_i32_1 = arith.constant 0 : i32
    return %c0_i32, %c0_i32_0 : i32, i32
  }
  func.func @transform_14(%arg0: i32, %arg1: i32) -> (i32, i32) {
    %c0_i32 = arith.constant 0 : i32
    %c0_i32_0 = arith.constant 0 : i32
    %c0_i32_1 = arith.constant 0 : i32
    return %c0_i32, %c0_i32_0 : i32, i32
  }
  func.func @transform_15(%arg0: i32, %arg1: i32) -> (i32, i32) {
    %c0_i32 = arith.constant 0 : i32
    %c0_i32_0 = arith.constant 0 : i32
    %c0_i32_1 = arith.constant 0 : i32
    return %c0_i32, %c0_i32_0 : i32, i32
  }
  func.func @transform_16(%arg0: i32, %arg1: i32) -> (i32, i32, i32) {
    %c0_i32 = arith.constant 0 : i32
    %c0_i32_0 = arith.constant 0 : i32
    return %arg0, %arg1, %c0_i32 : i32, i32, i32
  }
  func.func @transform_17(%arg0: i32, %arg1: i32) -> (i32, i32, i32) {
    %c0_i32 = arith.constant 0 : i32
    %c0_i32_0 = arith.constant 0 : i32
    %c0_i32_1 = arith.constant 0 : i32
    return %arg0, %c0_i32, %c0_i32_0 : i32, i32, i32
  }
}

</mosaic_0001>

<llo_original>
// kernel: tpu_custom_call.1
$region0: #{tpu_custom_call.1}
  #allocation0 [shape = 'u32[]', space=smem, size = 0x4, offset = 0x4, fixed_abs, tag = 'smem constant byte address 0x4 - core index']
  #allocation1 [shape = 'u32[72,128]{1,0:T(1,128)}', space=vmem, size = 0x9000, scoped, tag = 'internal scratch']
  %s0 = inlined_call_operand.vmem [shape: f32[2,16,8], index: 0, kind: input, shape index: {}]
  %s1 = inlined_call_operand.vmem [shape: bf16[8,64], index: 1, kind: input, shape index: {}]
  %s2 = inlined_call_operand.vmem [shape: f32[1,64], index: 2, kind: input, shape index: {}]
  %s3 = inlined_call_operand.vmem [shape: bf16[64,64], index: 3, kind: input, shape index: {}]
  %s4 = inlined_call_operand.vmem [shape: f32[1,64], index: 4, kind: input, shape index: {}]
  %s5 = inlined_call_operand.hbm [shape: bf16[64,64], index: 5, kind: input, shape index: {}]
  %s6 = inlined_call_operand.vmem [shape: f32[1,64], index: 6, kind: input, shape index: {}]
  %s7 = inlined_call_operand.hbm [shape: bf16[64,128], index: 7, kind: input, shape index: {}]
  %s8 = inlined_call_operand.vmem [shape: f32[1,128], index: 8, kind: input, shape index: {}]
  %s9 = inlined_call_operand.hbm [shape: bf16[128,128], index: 9, kind: input, shape index: {}]
  %s10 = inlined_call_operand.vmem [shape: f32[1,128], index: 10, kind: input, shape index: {}]
  %s11 = inlined_call_operand.hbm [shape: bf16[128,128], index: 11, kind: input, shape index: {}]
  %s12 = inlined_call_operand.vmem [shape: f32[1,128], index: 12, kind: input, shape index: {}]
  %s13 = inlined_call_operand.hbm [shape: bf16[128,1024], index: 13, kind: input, shape index: {}]
  %s14 = inlined_call_operand.vmem [shape: f32[1,1024], index: 14, kind: input, shape index: {}]
  %s15 = inlined_call_operand.hbm [shape: bf16[1024,512], index: 15, kind: input, shape index: {}]
  %s16 = inlined_call_operand.hbm [shape: bf16[2,16,512], index: 16, kind: output, shape index: {0}]
  %s17 = inlined_call_operand.hbm [shape: f32[2,1,1024], index: 17, kind: output, shape index: {1}]
  %18 = xla_tuple %s16, %s17
  %s19 = sld [smem:[#allocation0]]
  $region133: #{tpu_custom_call.1} parent=0
    _
  %s21 = ssub.s32 1, %s19
  %s22 = scalar_select 0, %s21, %s19
  $region1: #{tpu_custom_call.1} parent=0
    #allocation2 [shape = 'u8[16384]{0}', space=vmem, size = 0x4000, scoped, tag = 'input window, operand 5, single buffered']
    #allocation3 [shape = 's32[2]{0}', space=sflag, size = 0x8, scoped, tag = 'scoped memory for tpu_custom_call.1']
    #allocation4 [shape = 's32[2]{0}', space=sflag, size = 0x8, scoped, tag = 'scoped memory for tpu_custom_call.1']
    #allocation5 [shape = 'u8[16384]{0}', space=vmem, size = 0x4000, scoped, tag = 'input window, operand 7, single buffered']
    #allocation6 [shape = 's32[1]{0}', space=sflag, size = 0x4, scoped, tag = 'scoped memory for tpu_custom_call.1']
    #allocation7 [shape = 'u8[32768]{0}', space=vmem, size = 0x8000, scoped, tag = 'input window, operand 9, single buffered']
    #allocation8 [shape = 'u8[32768]{0}', space=vmem, size = 0x8000, scoped, tag = 'input window, operand 11, single buffered']
    #allocation9 [shape = 's32[1]{0}', space=sflag, size = 0x4, scoped, tag = 'scoped memory for tpu_custom_call.1']
    #allocation10 [shape = 'u8[262144]{0}', space=vmem, size = 0x40000, scoped, tag = 'input window, operand 13, single buffered']
    #allocation11 [shape = 'u8[1048576]{0}', space=vmem, size = 0x100000, scoped, tag = 'input window, operand 15, single buffered']
    #allocation12 [shape = 's32[1]{0}', space=sflag, size = 0x4, scoped, tag = 'scoped memory for tpu_custom_call.1']
    #allocation13 [shape = 'u8[32768]{0}', space=vmem, size = 0x8000, scoped, tag = 'output window, operand 0']
    #allocation14 [shape = 'u8[8192]{0}', space=vmem, size = 0x2000, scoped, tag = 'output window, operand 1']
    #allocation15 [shape = 's32[2]{0}', space=sflag, size = 0x8, scoped, tag = 'scoped memory for tpu_custom_call.1']
    %23 = vsyncpa [#allocation3], 0
    %24 = vsyncpa [#allocation6], 0
    %25 = vsyncpa [#allocation9], 0
    %26 = vsyncpa [#allocation12], 0
    %27 = vsyncpa [#allocation4], 0
    %s28 = scalar_lea.sflag [#allocation4], 1
    %29 = vsyncpa %s28, 0
    %30 = vsyncpa [#allocation15], 0
    %s31 = scalar_lea.sflag [#allocation15], 1
    %32 = vsyncpa %s31, 0
    loop: start=0, step=1, limit=4
    $region2: #{tpu_custom_call.1} parent=1 // loop_pre_header
      _
    $region3: #{tpu_custom_call.1} parent=1 // loop_header
      %s34 = sphi 0, %s38
      %p35 = scmp.ge.s32.totalorder %s34, 4
      %s41 = sphi 0, %s53
      %s42 = sphi 0, %s49
      %s43 = sphi 0, %s41
      %s44 = sphi 0, %s42
      %s45 = sphi 0, %s43
      %s46 = sphi 0, %s44
      %s58 = sphi 0, %s60
      %s61 = sphi 0, %s58
      %s62 = sphi 0, %s61
      %s78 = sphi 0, %s62
      %s82 = sphi 0, %s82
      %s84 = sphi 0, %s82
      %s85 = sphi 0, %s84
      %s99 = sphi 0, %s85
      %s103 = sphi 0, %s103
      %s105 = sphi 0, %s103
      %s106 = sphi 0, %s105
      %s120 = sphi 0, %s106
      %s124 = sphi 0, %s124
      %s126 = sphi 0, %s124
      %s127 = sphi 0, %s126
      %s141 = sphi 0, %s127
      %s145 = sphi 0, %s145
      %s147 = sphi 0, %s145
      %s148 = sphi 0, %s147
      %s162 = sphi 0, %s148
      %s166 = sphi 0, %s166
      %s168 = sphi 0, %s166
      %s169 = sphi 0, %s168
      %s183 = sphi 0, %s169
      %s187 = sphi 0, %s187
      %s189 = sphi 0, %s187
      %s190 = sphi 0, %s189
      %s204 = sphi 0, %s190
      %s208 = sphi 0, %s208
      %s210 = sphi 0, %s208
      %s211 = sphi 0, %s210
      %s225 = sphi 0, %s211
      %s229 = sphi 0, %s229
      %s231 = sphi 0, %s229
      %s232 = sphi 0, %s231
      %s246 = sphi 0, %s232
      %s250 = sphi 0, %s250
      %s252 = sphi 0, %s250
      %s253 = sphi 0, %s252
      %s267 = sphi 0, %s253
      %s271 = sphi 0, %s271
      %s273 = sphi 0, %s271
      %s274 = sphi 0, %s273
      %s288 = sphi 0, %s274
      %s292 = sphi 0, %s292
      %s294 = sphi 0, %s292
      %s295 = sphi 0, %s294
      %s309 = sphi 0, %s295
      %s313 = sphi 0, %s313
      %s315 = sphi 0, %s313
      %s316 = sphi 0, %s315
      %s330 = sphi 0, %s316
      %s334 = sphi 0, %s334
      %s336 = sphi 0, %s334
      %s337 = sphi 0, %s336
      %s351 = sphi 0, %s337
      %s355 = sphi 0, %s355
      %s357 = sphi 0, %s355
      %s358 = sphi 0, %s357
      %s372 = sphi 0, %s358
      %s376 = sphi 0, %s376
      %s378 = sphi 0, %s376
      %s379 = sphi 0, %s378
      %s393 = sphi 0, %s379
      %s401 = sphi 0, %s403
      %s404 = sphi 0, %s401
      %s405 = sphi 0, %s404
      %s421 = sphi 0, %s405
      %s427 = sphi 0, %s429
      %s430 = sphi 0, %s427
      %s431 = sphi 0, %s430
      %s447 = sphi 0, %s431
    $region4: #{tpu_custom_call.1} parent=1 // loop_header_branch
      %37 = sbr.rel (%p35) target = $region8
    $region5: #{tpu_custom_call.1} parent=1 // loop_body
      %s39 = ssub.s32 %s34, 1
      %s40 = ssub.s32 %s34, 2
      %s47 = sadd.s32 1, %s42
      %p48 = scmp.ge.s32.totalorder %s47, 1
      %s49 = scalar_select %p48, 0, %s47
      %s50 = sadd.s32 1, %s41
      %s51 = scalar_select %p48, %s50, %s41
      %p52 = scmp.ge.s32.totalorder %s51, 2
      %s53 = scalar_select %p52, 0, %s51
      %s54 = ssub.s32 %s41, %s53
      %s55 = ssub.s32 %s42, %s49
      %s56 = sor.u32 %s54, %s55
      %p57 = scmp.eq.s32.totalorder %s56, 0
      %s59 = sadd.s32 %s58, 1
      %s60 = scalar_select %p57, %s58, %s59
      %p63 = pneg %p57
      %p64 = scmp.eq.s32.totalorder %s34, 1
      %p65 = por %p63, %p64
      %p66 = scmp.ne.s32.totalorder %s58, %s61
      %p67 = scmp.eq.s32.totalorder %s34, 0
      %p68 = por %p66, %p67
      %p69 = scmp.ne.s32.totalorder %s58, %s61
      %p70 = scmp.eq.s32.totalorder %s39, 1
      %p71 = por %p69, %p70
      %p72 = scmp.ne.s32.totalorder %s61, %s62
      %p73 = scmp.eq.s32.totalorder %s39, 0
      %p74 = por %p72, %p73
      %p75 = scmp.ne.s32.totalorder %s61, %s62
      %p76 = scmp.eq.s32.totalorder %s40, 1
      %p77 = por %p75, %p76
      %p79 = scmp.ne.s32.totalorder %s62, %s78
      %p80 = scmp.eq.s32.totalorder %s40, 0
      %p81 = por %p79, %p80
      %s83 = sadd.s32 %s82, 1
      %p86 = scmp.eq.s32.totalorder %s34, 1
      %p87 = scmp.ne.s32.totalorder %s82, %s84
      %p88 = scmp.eq.s32.totalorder %s34, 0
      %p89 = por %p87, %p88
      %p90 = scmp.ne.s32.totalorder %s82, %s84
      %p91 = scmp.eq.s32.totalorder %s39, 1
      %p92 = por %p90, %p91
      %p93 = scmp.ne.s32.totalorder %s84, %s85
      %p94 = scmp.eq.s32.totalorder %s39, 0
      %p95 = por %p93, %p94
      %p96 = scmp.ne.s32.totalorder %s84, %s85
      %p97 = scmp.eq.s32.totalorder %s40, 1
      %p98 = por %p96, %p97
      %p100 = scmp.ne.s32.totalorder %s85, %s99
      %p101 = scmp.eq.s32.totalorder %s40, 0
      %p102 = por %p100, %p101
      %s104 = sadd.s32 %s103, 1
      %p107 = scmp.eq.s32.totalorder %s34, 1
      %p108 = scmp.ne.s32.totalorder %s103, %s105
      %p109 = scmp.eq.s32.totalorder %s34, 0
      %p110 = por %p108, %p109
      %p111 = scmp.ne.s32.totalorder %s103, %s105
      %p112 = scmp.eq.s32.totalorder %s39, 1
      %p113 = por %p111, %p112
      %p114 = scmp.ne.s32.totalorder %s105, %s106
      %p115 = scmp.eq.s32.totalorder %s39, 0
      %p116 = por %p114, %p115
      %p117 = scmp.ne.s32.totalorder %s105, %s106
      %p118 = scmp.eq.s32.totalorder %s40, 1
      %p119 = por %p117, %p118
      %p121 = scmp.ne.s32.totalorder %s106, %s120
      %p122 = scmp.eq.s32.totalorder %s40, 0
      %p123 = por %p121, %p122
      %s125 = sadd.s32 %s124, 1
      %p128 = scmp.eq.s32.totalorder %s34, 1
      %p129 = scmp.ne.s32.totalorder %s124, %s126
      %p130 = scmp.eq.s32.totalorder %s34, 0
      %p131 = por %p129, %p130
      %p132 = scmp.ne.s32.totalorder %s124, %s126
      %p133 = scmp.eq.s32.totalorder %s39, 1
      %p134 = por %p132, %p133
      %p135 = scmp.ne.s32.totalorder %s126, %s127
      %p136 = scmp.eq.s32.totalorder %s39, 0
      %p137 = por %p135, %p136
      %p138 = scmp.ne.s32.totalorder %s126, %s127
      %p139 = scmp.eq.s32.totalorder %s40, 1
      %p140 = por %p138, %p139
      %p142 = scmp.ne.s32.totalorder %s127, %s141
      %p143 = scmp.eq.s32.totalorder %s40, 0
      %p144 = por %p142, %p143
      %s146 = sadd.s32 %s145, 1
      %p149 = scmp.eq.s32.totalorder %s34, 1
      %p150 = scmp.ne.s32.totalorder %s145, %s147
      %p151 = scmp.eq.s32.totalorder %s34, 0
      %p152 = por %p150, %p151
      %p153 = scmp.ne.s32.totalorder %s145, %s147
      %p154 = scmp.eq.s32.totalorder %s39, 1
      %p155 = por %p153, %p154
      %p156 = scmp.ne.s32.totalorder %s147, %s148
      %p157 = scmp.eq.s32.totalorder %s39, 0
      %p158 = por %p156, %p157
      %p159 = scmp.ne.s32.totalorder %s147, %s148
      %p160 = scmp.eq.s32.totalorder %s40, 1
      %p161 = por %p159, %p160
      %p163 = scmp.ne.s32.totalorder %s148, %s162
      %p164 = scmp.eq.s32.totalorder %s40, 0
      %p165 = por %p163, %p164
      %s167 = sadd.s32 %s166, 1
      %p170 = scmp.eq.s32.totalorder %s34, 1
      %p171 = scmp.ne.s32.totalorder %s166, %s168
      %p172 = scmp.eq.s32.totalorder %s34, 0
      %p173 = por %p171, %p172
      %p174 = scmp.ne.s32.totalorder %s166, %s168
      %p175 = scmp.eq.s32.totalorder %s39, 1
      %p176 = por %p174, %p175
      %p177 = scmp.ne.s32.totalorder %s168, %s169
      %p178 = scmp.eq.s32.totalorder %s39, 0
      %p179 = por %p177, %p178
      %p180 = scmp.ne.s32.totalorder %s168, %s169
      %p181 = scmp.eq.s32.totalorder %s40, 1
      %p182 = por %p180, %p181
      %p184 = scmp.ne.s32.totalorder %s169, %s183
      %p185 = scmp.eq.s32.totalorder %s40, 0
      %p186 = por %p184, %p185
      %s188 = sadd.s32 %s187, 1
      %p191 = scmp.eq.s32.totalorder %s34, 1
      %p192 = scmp.ne.s32.totalorder %s187, %s189
      %p193 = scmp.eq.s32.totalorder %s34, 0
      %p194 = por %p192, %p193
      %p195 = scmp.ne.s32.totalorder %s187, %s189
      %p196 = scmp.eq.s32.totalorder %s39, 1
      %p197 = por %p195, %p196
      %p198 = scmp.ne.s32.totalorder %s189, %s190
      %p199 = scmp.eq.s32.totalorder %s39, 0
      %p200 = por %p198, %p199
      %p201 = scmp.ne.s32.totalorder %s189, %s190
      %p202 = scmp.eq.s32.totalorder %s40, 1
      %p203 = por %p201, %p202
      %p205 = scmp.ne.s32.totalorder %s190, %s204
      %p206 = scmp.eq.s32.totalorder %s40, 0
      %p207 = por %p205, %p206
      %s209 = sadd.s32 %s208, 1
      %p212 = scmp.eq.s32.totalorder %s34, 1
      %p213 = scmp.ne.s32.totalorder %s208, %s210
      %p214 = scmp.eq.s32.totalorder %s34, 0
      %p215 = por %p213, %p214
      %p216 = scmp.ne.s32.totalorder %s208, %s210
      %p217 = scmp.eq.s32.totalorder %s39, 1
      %p218 = por %p216, %p217
      %p219 = scmp.ne.s32.totalorder %s210, %s211
      %p220 = scmp.eq.s32.totalorder %s39, 0
      %p221 = por %p219, %p220
      %p222 = scmp.ne.s32.totalorder %s210, %s211
      %p223 = scmp.eq.s32.totalorder %s40, 1
      %p224 = por %p222, %p223
      %p226 = scmp.ne.s32.totalorder %s211, %s225
      %p227 = scmp.eq.s32.totalorder %s40, 0
      %p228 = por %p226, %p227
      %s230 = sadd.s32 %s229, 1
      %p233 = scmp.eq.s32.totalorder %s34, 1
      %p234 = scmp.ne.s32.totalorder %s229, %s231
      %p235 = scmp.eq.s32.totalorder %s34, 0
      %p236 = por %p234, %p235
      %p237 = scmp.ne.s32.totalorder %s229, %s231
      %p238 = scmp.eq.s32.totalorder %s39, 1
      %p239 = por %p237, %p238
      %p240 = scmp.ne.s32.totalorder %s231, %s232
      %p241 = scmp.eq.s32.totalorder %s39, 0
      %p242 = por %p240, %p241
      %p243 = scmp.ne.s32.totalorder %s231, %s232
      %p244 = scmp.eq.s32.totalorder %s40, 1
      %p245 = por %p243, %p244
      %p247 = scmp.ne.s32.totalorder %s232, %s246
      %p248 = scmp.eq.s32.totalorder %s40, 0
      %p249 = por %p247, %p248
      %s251 = sadd.s32 %s250, 1
      %p254 = scmp.eq.s32.totalorder %s34, 1
      %p255 = scmp.ne.s32.totalorder %s250, %s252
      %p256 = scmp.eq.s32.totalorder %s34, 0
      %p257 = por %p255, %p256
      %p258 = scmp.ne.s32.totalorder %s250, %s252
      %p259 = scmp.eq.s32.totalorder %s39, 1
      %p260 = por %p258, %p259
      %p261 = scmp.ne.s32.totalorder %s252, %s253
      %p262 = scmp.eq.s32.totalorder %s39, 0
      %p263 = por %p261, %p262
      %p264 = scmp.ne.s32.totalorder %s252, %s253
      %p265 = scmp.eq.s32.totalorder %s40, 1
      %p266 = por %p264, %p265
      %p268 = scmp.ne.s32.totalorder %s253, %s267
      %p269 = scmp.eq.s32.totalorder %s40, 0
      %p270 = por %p268, %p269
      %s272 = sadd.s32 %s271, 1
      %p275 = scmp.eq.s32.totalorder %s34, 1
      %p276 = scmp.ne.s32.totalorder %s271, %s273
      %p277 = scmp.eq.s32.totalorder %s34, 0
      %p278 = por %p276, %p277
      %p279 = scmp.ne.s32.totalorder %s271, %s273
      %p280 = scmp.eq.s32.totalorder %s39, 1
      %p281 = por %p279, %p280
      %p282 = scmp.ne.s32.totalorder %s273, %s274
      %p283 = scmp.eq.s32.totalorder %s39, 0
      %p284 = por %p282, %p283
      %p285 = scmp.ne.s32.totalorder %s273, %s274
      %p286 = scmp.eq.s32.totalorder %s40, 1
      %p287 = por %p285, %p286
      %p289 = scmp.ne.s32.totalorder %s274, %s288
      %p290 = scmp.eq.s32.totalorder %s40, 0
      %p291 = por %p289, %p290
      %s293 = sadd.s32 %s292, 1
      %p296 = scmp.eq.s32.totalorder %s34, 1
      %p297 = scmp.ne.s32.totalorder %s292, %s294
      %p298 = scmp.eq.s32.totalorder %s34, 0
      %p299 = por %p297, %p298
      %p300 = scmp.ne.s32.totalorder %s292, %s294
      %p301 = scmp.eq.s32.totalorder %s39, 1
      %p302 = por %p300, %p301
      %p303 = scmp.ne.s32.totalorder %s294, %s295
      %p304 = scmp.eq.s32.totalorder %s39, 0
      %p305 = por %p303, %p304
      %p306 = scmp.ne.s32.totalorder %s294, %s295
      %p307 = scmp.eq.s32.totalorder %s40, 1
      %p308 = por %p306, %p307
      %p310 = scmp.ne.s32.totalorder %s295, %s309
      %p311 = scmp.eq.s32.totalorder %s40, 0
      %p312 = por %p310, %p311
      %s314 = sadd.s32 %s313, 1
      %p317 = scmp.eq.s32.totalorder %s34, 1
      %p318 = scmp.ne.s32.totalorder %s313, %s315
      %p319 = scmp.eq.s32.totalorder %s34, 0
      %p320 = por %p318, %p319
      %p321 = scmp.ne.s32.totalorder %s313, %s315
      %p322 = scmp.eq.s32.totalorder %s39, 1
      %p323 = por %p321, %p322
      %p324 = scmp.ne.s32.totalorder %s315, %s316
      %p325 = scmp.eq.s32.totalorder %s39, 0
      %p326 = por %p324, %p325
      %p327 = scmp.ne.s32.totalorder %s315, %s316
      %p328 = scmp.eq.s32.totalorder %s40, 1
      %p329 = por %p327, %p328
      %p331 = scmp.ne.s32.totalorder %s316, %s330
      %p332 = scmp.eq.s32.totalorder %s40, 0
      %p333 = por %p331, %p332
      %s335 = sadd.s32 %s334, 1
      %p338 = scmp.eq.s32.totalorder %s34, 1
      %p339 = scmp.ne.s32.totalorder %s334, %s336
      %p340 = scmp.eq.s32.totalorder %s34, 0
      %p341 = por %p339, %p340
      %p342 = scmp.ne.s32.totalorder %s334, %s336
      %p343 = scmp.eq.s32.totalorder %s39, 1
      %p344 = por %p342, %p343
      %p345 = scmp.ne.s32.totalorder %s336, %s337
      %p346 = scmp.eq.s32.totalorder %s39, 0
      %p347 = por %p345, %p346
      %p348 = scmp.ne.s32.totalorder %s336, %s337
      %p349 = scmp.eq.s32.totalorder %s40, 1
      %p350 = por %p348, %p349
      %p352 = scmp.ne.s32.totalorder %s337, %s351
      %p353 = scmp.eq.s32.totalorder %s40, 0
      %p354 = por %p352, %p353
      %s356 = sadd.s32 %s355, 1
      %p359 = scmp.eq.s32.totalorder %s34, 1
      %p360 = scmp.ne.s32.totalorder %s355, %s357
      %p361 = scmp.eq.s32.totalorder %s34, 0
      %p362 = por %p360, %p361
      %p363 = scmp.ne.s32.totalorder %s355, %s357
      %p364 = scmp.eq.s32.totalorder %s39, 1
      %p365 = por %p363, %p364
      %p366 = scmp.ne.s32.totalorder %s357, %s358
      %p367 = scmp.eq.s32.totalorder %s39, 0
      %p368 = por %p366, %p367
      %p369 = scmp.ne.s32.totalorder %s357, %s358
      %p370 = scmp.eq.s32.totalorder %s40, 1
      %p371 = por %p369, %p370
      %p373 = scmp.ne.s32.totalorder %s358, %s372
      %p374 = scmp.eq.s32.totalorder %s40, 0
      %p375 = por %p373, %p374
      %s377 = sadd.s32 %s376, 1
      %p380 = scmp.eq.s32.totalorder %s34, 1
      %p381 = scmp.ne.s32.totalorder %s376, %s378
      %p382 = scmp.eq.s32.totalorder %s34, 0
      %p383 = por %p381, %p382
      %p384 = scmp.ne.s32.totalorder %s376, %s378
      %p385 = scmp.eq.s32.totalorder %s39, 1
      %p386 = por %p384, %p385
      %p387 = scmp.ne.s32.totalorder %s378, %s379
      %p388 = scmp.eq.s32.totalorder %s39, 0
      %p389 = por %p387, %p388
      %p390 = scmp.ne.s32.totalorder %s378, %s379
      %p391 = scmp.eq.s32.totalorder %s40, 1
      %p392 = por %p390, %p391
      %p394 = scmp.ne.s32.totalorder %s379, %s393
      %p395 = scmp.eq.s32.totalorder %s40, 0
      %p396 = por %p394, %p395
      %s397 = ssub.s32 %s41, %s53
      %s398 = ssub.s32 %s42, %s49
      %s399 = sor.u32 %s397, %s398
      %p400 = scmp.eq.s32.totalorder %s399, 0
      %s402 = sadd.s32 %s401, 1
      %s403 = scalar_select %p400, %s401, %s402
      %p406 = pneg %p400
      %p407 = scmp.eq.s32.totalorder %s34, 1
      %p408 = por %p406, %p407
      %p409 = scmp.ne.s32.totalorder %s401, %s404
      %p410 = scmp.eq.s32.totalorder %s34, 0
      %p411 = por %p409, %p410
      %p412 = scmp.ne.s32.totalorder %s401, %s404
      %p413 = scmp.eq.s32.totalorder %s39, 1
      %p414 = por %p412, %p413
      %p415 = scmp.ne.s32.totalorder %s404, %s405
      %p416 = scmp.eq.s32.totalorder %s39, 0
      %p417 = por %p415, %p416
      %p418 = scmp.ne.s32.totalorder %s404, %s405
      %p419 = scmp.eq.s32.totalorder %s40, 1
      %p420 = por %p418, %p419
      %p422 = scmp.ne.s32.totalorder %s405, %s421
      %p423 = scmp.eq.s32.totalorder %s40, 0
      %p424 = por %p422, %p423
      %s425 = ssub.s32 %s41, %s53
      %p426 = scmp.eq.s32.totalorder %s425, 0
      %s428 = sadd.s32 %s427, 1
      %s429 = scalar_select %p426, %s427, %s428
      %p432 = pneg %p426
      %p433 = scmp.eq.s32.totalorder %s34, 1
      %p434 = por %p432, %p433
      %p435 = scmp.ne.s32.totalorder %s427, %s430
      %p436 = scmp.eq.s32.totalorder %s34, 0
      %p437 = por %p435, %p436
      %p438 = scmp.ne.s32.totalorder %s427, %s430
      %p439 = scmp.eq.s32.totalorder %s39, 1
      %p440 = por %p438, %p439
      %p441 = scmp.ne.s32.totalorder %s430, %s431
      %p442 = scmp.eq.s32.totalorder %s39, 0
      %p443 = por %p441, %p442
      %p444 = scmp.ne.s32.totalorder %s430, %s431
      %p445 = scmp.eq.s32.totalorder %s40, 1
      %p446 = por %p444, %p445
      %p448 = scmp.ne.s32.totalorder %s431, %s447
      %p449 = scmp.eq.s32.totalorder %s40, 0
      %p450 = por %p448, %p449
      %p451 = scmp.le.s32.totalorder 1, %s34
      %p452 = scmp.lt.s32.totalorder %s34, 3
      %p453 = pnand %p451, %p452
      %p454 = pneg %p453
      // Predicated region
      $region9: #{tpu_custom_call.1} parent=5 // pred_check
        _
      $region10: #{tpu_custom_call.1} parent=5 // pred_check_branch
        %456 = sbr.rel (%p453) target = $region12
      $region11: #{tpu_custom_call.1} parent=5 // pred_region
        %s457 = ssub.s32 %s34, 1
        // Predicated region
        $region13: #{tpu_custom_call.1} parent=11 // pred_check
          %p458 = pneg %p95
        $region14: #{tpu_custom_call.1} parent=11 // pred_check_branch
          %460 = sbr.rel (%p458) target = $region16
        $region15: #{tpu_custom_call.1} parent=11 // pred_region
          _
        $region16: #{tpu_custom_call.1} parent=11 // pred_fallthru
          _
        // Predicated region
        $region17: #{tpu_custom_call.1} parent=11 // pred_check
          %p461 = pneg %p116
        $region18: #{tpu_custom_call.1} parent=11 // pred_check_branch
          %463 = sbr.rel (%p461) target = $region20
        $region19: #{tpu_custom_call.1} parent=11 // pred_region
          _
        $region20: #{tpu_custom_call.1} parent=11 // pred_fallthru
          _
        // Predicated region
        $region21: #{tpu_custom_call.1} parent=11 // pred_check
          %p464 = pneg %p137
        $region22: #{tpu_custom_call.1} parent=11 // pred_check_branch
          %466 = sbr.rel (%p464) target = $region24
        $region23: #{tpu_custom_call.1} parent=11 // pred_region
          _
        $region24: #{tpu_custom_call.1} parent=11 // pred_fallthru
          _
        // Predicated region
        $region25: #{tpu_custom_call.1} parent=11 // pred_check
          %p467 = pneg %p158
        $region26: #{tpu_custom_call.1} parent=11 // pred_check_branch
          %469 = sbr.rel (%p467) target = $region28
        $region27: #{tpu_custom_call.1} parent=11 // pred_region
          _
        $region28: #{tpu_custom_call.1} parent=11 // pred_fallthru
          _
        // Predicated region
        $region29: #{tpu_custom_call.1} parent=11 // pred_check
          %p470 = pneg %p179
        $region30: #{tpu_custom_call.1} parent=11 // pred_check_branch
          %472 = sbr.rel (%p470) target = $region32
        $region31: #{tpu_custom_call.1} parent=11 // pred_region
          %474 = vsyncadd [#allocation3], 0
          %s475 = sshll.u32 %s5, 4
          %s476 = int_to_ptr.hbm [resolvable:$true] %s475
          %s477 = sshll.u32 [#allocation2], 4
          %s478 = int_to_ptr.vmem [resolvable:$true] %s477
          %483 = dma.hbm_to_vmem [thread:$0]  %s476, 512, %s478, [#allocation3], 64, 64, 4
        $region32: #{tpu_custom_call.1} parent=11 // pred_fallthru
          _
        // Predicated region
        $region33: #{tpu_custom_call.1} parent=11 // pred_check
          %p484 = pneg %p200
        $region34: #{tpu_custom_call.1} parent=11 // pred_check_branch
          %486 = sbr.rel (%p484) target = $region36
        $region35: #{tpu_custom_call.1} parent=11 // pred_region
          _
        $region36: #{tpu_custom_call.1} parent=11 // pred_fallthru
          _
        // Predicated region
        $region37: #{tpu_custom_call.1} parent=11 // pred_check
          %p487 = pneg %p221
        $region38: #{tpu_custom_call.1} parent=11 // pred_check_branch
          %489 = sbr.rel (%p487) target = $region40
        $region39: #{tpu_custom_call.1} parent=11 // pred_region
          %491 = vsyncadd [#allocation6], 0
          %s492 = sshll.u32 %s7, 4
          %s493 = int_to_ptr.hbm [resolvable:$true] %s492
          %s494 = sshll.u32 [#allocation5], 4
          %s495 = int_to_ptr.vmem [resolvable:$true] %s494
          %500 = dma.hbm_to_vmem [thread:$0]  %s493, 512, %s495, [#allocation6], 64, 64, 4
        $region40: #{tpu_custom_call.1} parent=11 // pred_fallthru
          _
        // Predicated region
        $region41: #{tpu_custom_call.1} parent=11 // pred_check
          %p501 = pneg %p242
        $region42: #{tpu_custom_call.1} parent=11 // pred_check_branch
          %503 = sbr.rel (%p501) target = $region44
        $region43: #{tpu_custom_call.1} parent=11 // pred_region
          _
        $region44: #{tpu_custom_call.1} parent=11 // pred_fallthru
          _
        // Predicated region
        $region45: #{tpu_custom_call.1} parent=11 // pred_check
          %p504 = pneg %p263
        $region46: #{tpu_custom_call.1} parent=11 // pred_check_branch
          %506 = sbr.rel (%p504) target = $region48
        $region47: #{tpu_custom_call.1} parent=11 // pred_region
          %508 = vsyncadd [#allocation6], 0
          %s509 = sshll.u32 %s9, 4
          %s510 = int_to_ptr.hbm [resolvable:$true] %s509
          %s511 = sshll.u32 [#allocation7], 4
          %s512 = int_to_ptr.vmem [resolvable:$true] %s511
          %517 = dma.hbm_to_vmem [thread:$0]  %s510, 1024, %s512, [#allocation6], 64, 64, 4
        $region48: #{tpu_custom_call.1} parent=11 // pred_fallthru
          _
        // Predicated region
        $region49: #{tpu_custom_call.1} parent=11 // pred_check
          %p518 = pneg %p284
        $region50: #{tpu_custom_call.1} parent=11 // pred_check_branch
          %520 = sbr.rel (%p518) target = $region52
        $region51: #{tpu_custom_call.1} parent=11 // pred_region
          _
        $region52: #{tpu_custom_call.1} parent=11 // pred_fallthru
          _
        // Predicated region
        $region53: #{tpu_custom_call.1} parent=11 // pred_check
          %p521 = pneg %p305
        $region54: #{tpu_custom_call.1} parent=11 // pred_check_branch
          %523 = sbr.rel (%p521) target = $region56
        $region55: #{tpu_custom_call.1} parent=11 // pred_region
          %525 = vsyncadd [#allocation9], 0
          %s526 = sshll.u32 %s11, 4
          %s527 = int_to_ptr.hbm [resolvable:$true] %s526
          %s528 = sshll.u32 [#allocation8], 4
          %s529 = int_to_ptr.vmem [resolvable:$true] %s528
          %534 = dma.hbm_to_vmem [thread:$0]  %s527, 1024, %s529, [#allocation9], 64, 64, 4
        $region56: #{tpu_custom_call.1} parent=11 // pred_fallthru
          _
        // Predicated region
        $region57: #{tpu_custom_call.1} parent=11 // pred_check
          %p535 = pneg %p326
        $region58: #{tpu_custom_call.1} parent=11 // pred_check_branch
          %537 = sbr.rel (%p535) target = $region60
        $region59: #{tpu_custom_call.1} parent=11 // pred_region
          _
        $region60: #{tpu_custom_call.1} parent=11 // pred_fallthru
          _
        // Predicated region
        $region61: #{tpu_custom_call.1} parent=11 // pred_check
          %p538 = pneg %p347
        $region62: #{tpu_custom_call.1} parent=11 // pred_check_branch
          %540 = sbr.rel (%p538) target = $region64
        $region63: #{tpu_custom_call.1} parent=11 // pred_region
          %542 = vsyncadd [#allocation9], 0
          %s543 = sshll.u32 %s13, 4
          %s544 = int_to_ptr.hbm [resolvable:$true] %s543
          %s545 = sshll.u32 [#allocation10], 4
          %s546 = int_to_ptr.vmem [resolvable:$true] %s545
          %551 = dma.hbm_to_vmem [thread:$0]  %s544, 8192, %s546, [#allocation9], 512, 512, 32
        $region64: #{tpu_custom_call.1} parent=11 // pred_fallthru
          _
        // Predicated region
        $region65: #{tpu_custom_call.1} parent=11 // pred_check
          %p552 = pneg %p368
        $region66: #{tpu_custom_call.1} parent=11 // pred_check_branch
          %554 = sbr.rel (%p552) target = $region68
        $region67: #{tpu_custom_call.1} parent=11 // pred_region
          _
        $region68: #{tpu_custom_call.1} parent=11 // pred_fallthru
          _
        // Predicated region
        $region69: #{tpu_custom_call.1} parent=11 // pred_check
          %p555 = pneg %p389
        $region70: #{tpu_custom_call.1} parent=11 // pred_check_branch
          %557 = sbr.rel (%p555) target = $region72
        $region71: #{tpu_custom_call.1} parent=11 // pred_region
          %559 = vsyncadd [#allocation12], 0
          %s560 = sshll.u32 %s15, 4
          %s561 = int_to_ptr.hbm [resolvable:$true] %s560
          %s562 = sshll.u32 [#allocation11], 4
          %s563 = int_to_ptr.vmem [resolvable:$true] %s562
          %568 = dma.hbm_to_vmem [thread:$0]  %s561, 32768, %s563, [#allocation12], 256, 256, 16
        $region72: #{tpu_custom_call.1} parent=11 // pred_fallthru
          _
      $region12: #{tpu_custom_call.1} parent=5 // pred_fallthru
        _
      %p569 = scmp.lt.s32.totalorder %s34, 2
      // Predicated region
      $region73: #{tpu_custom_call.1} parent=5 // pred_check
        %p570 = pneg %p569
      $region74: #{tpu_custom_call.1} parent=5 // pred_check_branch
        %572 = sbr.rel (%p570) target = $region76
      $region75: #{tpu_custom_call.1} parent=5 // pred_region
        // Predicated region
        $region77: #{tpu_custom_call.1} parent=75 // pred_check
          %p573 = pneg %p68
        $region78: #{tpu_custom_call.1} parent=75 // pred_check_branch
          %575 = sbr.rel (%p573) target = $region80
        $region79: #{tpu_custom_call.1} parent=75 // pred_region
          %s576 = smul.u32 2, %s42
          %p577 = scmp.lt.s32.totalorder %s41, 1
          %s578 = scalar_select %p577, %s41, 1
          %p579 = scmp.lt.s32.totalorder %s576, 1
          %s580 = scalar_select %p579, %s576, 1
          %s581 = smul.addr %s578, 2
          %s582 = sadd.s32 %s580, %s581
          %s583 = smul.addr %s582, 8
          %s584 = scalar_lea.vmem %s0, %s583
          %s585 = smul.u32 2, %s42
        $region80: #{tpu_custom_call.1} parent=75 // pred_fallthru
          _
      $region76: #{tpu_custom_call.1} parent=5 // pred_fallthru
        _
      %p586 = scmp.le.s32.totalorder 1, %s34
      %p587 = scmp.lt.s32.totalorder %s34, 3
      %p588 = pnand %p586, %p587
      %p589 = pneg %p588
      // Predicated region
      $region81: #{tpu_custom_call.1} parent=5 // pred_check
        _
      $region82: #{tpu_custom_call.1} parent=5 // pred_check_branch
        %591 = sbr.rel (%p588) target = $region84
      $region83: #{tpu_custom_call.1} parent=5 // pred_region
        %s592 = ssub.s32 %s34, 1
        // Predicated region
        $region85: #{tpu_custom_call.1} parent=83 // pred_check
          %p593 = pneg %p179
        $region86: #{tpu_custom_call.1} parent=83 // pred_check_branch
          %595 = sbr.rel (%p593) target = $region88
        $region87: #{tpu_custom_call.1} parent=83 // pred_region
          %597 = dma.done [#allocation3], 512
        $region88: #{tpu_custom_call.1} parent=83 // pred_fallthru
          _
        // Predicated region
        $region89: #{tpu_custom_call.1} parent=83 // pred_check
          %p598 = pneg %p221
        $region90: #{tpu_custom_call.1} parent=83 // pred_check_branch
          %600 = sbr.rel (%p598) target = $region92
        $region91: #{tpu_custom_call.1} parent=83 // pred_region
          %602 = dma.done [#allocation6], 512
        $region92: #{tpu_custom_call.1} parent=83 // pred_fallthru
          _
        // Predicated region
        $region93: #{tpu_custom_call.1} parent=83 // pred_check
          %p603 = pneg %p263
        $region94: #{tpu_custom_call.1} parent=83 // pred_check_branch
          %605 = sbr.rel (%p603) target = $region96
        $region95: #{tpu_custom_call.1} parent=83 // pred_region
          %607 = dma.done [#allocation6], 1024
        $region96: #{tpu_custom_call.1} parent=83 // pred_fallthru
          _
        // Predicated region
        $region97: #{tpu_custom_call.1} parent=83 // pred_check
          %p608 = pneg %p305
        $region98: #{tpu_custom_call.1} parent=83 // pred_check_branch
          %610 = sbr.rel (%p608) target = $region100
        $region99: #{tpu_custom_call.1} parent=83 // pred_region
          %612 = dma.done [#allocation9], 1024
        $region100: #{tpu_custom_call.1} parent=83 // pred_fallthru
          _
        // Predicated region
        $region101: #{tpu_custom_call.1} parent=83 // pred_check
          %p613 = pneg %p347
        $region102: #{tpu_custom_call.1} parent=83 // pred_check_branch
          %615 = sbr.rel (%p613) target = $region104
        $region103: #{tpu_custom_call.1} parent=83 // pred_region
          %617 = dma.done [#allocation9], 8192
        $region104: #{tpu_custom_call.1} parent=83 // pred_fallthru
          _
        // Predicated region
        $region105: #{tpu_custom_call.1} parent=83 // pred_check
          %p618 = pneg %p389
        $region106: #{tpu_custom_call.1} parent=83 // pred_check_branch
          %620 = sbr.rel (%p618) target = $region108
        $region107: #{tpu_custom_call.1} parent=83 // pred_region
          %622 = dma.done [#allocation12], 32768
        $region108: #{tpu_custom_call.1} parent=83 // pred_fallthru
          _
        %s623 = smul.u32 2, %s44
        %p624 = scmp.lt.s32.totalorder %s43, 1
        %s625 = scalar_select %p624, %s43, 1
        %p626 = scmp.lt.s32.totalorder %s623, 1
        %s627 = scalar_select %p626, %s623, 1
        %s628 = smul.addr %s625, 2
        %s629 = sadd.s32 %s627, %s628
        %s630 = smul.addr %s629, 8
        %s631 = scalar_lea.vmem %s0, %s630
        %p632 = pneg %p74
        %p633 = pneg %p71
        %p634 = pneg %p95
        %p635 = pneg %p92
        %p636 = pneg %p116
        %p637 = pneg %p113
        %p638 = pneg %p137
        %p639 = pneg %p134
        %p640 = pneg %p158
        %p641 = pneg %p155
        %p642 = pneg %p179
        %p643 = pneg %p176
        %p644 = pneg %p200
        %p645 = pneg %p197
        %p646 = pneg %p221
        %p647 = pneg %p218
        %p648 = pneg %p242
        %p649 = pneg %p239
        %p650 = pneg %p263
        %p651 = pneg %p260
        %p652 = pneg %p284
        %p653 = pneg %p281
        %p654 = pneg %p305
        %p655 = pneg %p302
        %p656 = pneg %p326
        %p657 = pneg %p323
        %p658 = pneg %p347
        %p659 = pneg %p344
        %p660 = pneg %p368
        %p661 = pneg %p365
        %p662 = pneg %p389
        %p663 = pneg %p386
        %p664 = pneg %p417
        %p665 = pneg %p414
        %s666 = sand.u32 %s404, 1
        %s667 = scalar_lea.sflag [#allocation4], %s666
        %s668 = sand.u32 %s404, 1
        %s669 = smul.addr %s668, 32
        %s670 = scalar_lea.vmem [#allocation13], %s669
        %p671 = pneg %p443
        %p672 = pneg %p440
        %s673 = sand.u32 %s430, 1
        %s674 = scalar_lea.sflag [#allocation15], %s673
        %s675 = sand.u32 %s430, 1
        %s676 = smul.addr %s675, 8
        %s677 = scalar_lea.vmem [#allocation14], %s676
        %s678 = smul.u32 2, %s44
        %p679 = scmp.lt.s32.totalorder %s43, 1
        %s680 = scalar_select %p679, %s43, 1
        %p681 = scmp.lt.s32.totalorder %s678, 1
        %s682 = scalar_select %p681, %s678, 1
        %s683 = smul.addr %s680, 2
        %s684 = sadd.s32 %s682, %s683
        %s685 = smul.addr %s684, 8
        %s686 = scalar_lea.vmem %s0, %s685
        %s687 = smul.u32 2, %s44
        %s688 = smul.u32 2, %s44
        %v690 = vld [vmem:[%s686] sm:$0xff]
        %v691 = vld [vmem:[%s686 + $0x8] sm:$0xff]
        %v692 = vpack.c.bf16 %v691, %v690
        %v693 = vld [vmem:[%s1] sm:$0xf]
        %v694 = vld [vmem:[%s2] sm:$0x1]
        %v696 = vperm.slane %v694, 0
        %vm698 = vcmask 64512
        %v700 = vsel %vm698, %v692, 0
        %vm702 = vcmask 1043456
        %v704 = vsel %vm702, %v693, 0
        %706 = vmatpush.bf16.msra.mxu0 0
        %707 = vmatpush.bf16.msra.mxu0 0
        %708 = vmatpush.bf16.msra.mxu0 0
        %709 = vmatpush.bf16.msra.mxu0 0
        %710 = vmatpush.bf16.msra.mxu0 0
        %711 = vmatpush.bf16.msra.mxu0 0
        %712 = vmatpush.bf16.msra.mxu0 0
        %713 = vmatpush.bf16.msra.mxu0 %v704
        %714 = vmatmul.bf16.gmra.mxu0 %v700
        %v715 = vpop.f32.mrf.mxu0
        %v716 = vadd.f32 %v696, %v715
        %v717 = vpop.f32.mrf.mxu0
        %v718 = vadd.f32 %v696, %v717
        %719 = vdwg.mxu0
        %v720 = vmax.f32 %v716, 0.0
        %v721 = vmax.f32 %v718, 0.0
        %v722 = vpack.c.bf16 %v721, %v720
        %v723 = vld [vmem:[%s3] sm:$0xf]
        %v724 = vld [vmem:[%s3 + $0x4] sm:$0xf]
        %v725 = vld [vmem:[%s3 + $0x8] sm:$0xf]
        %v726 = vld [vmem:[%s3 + $0xc] sm:$0xf]
        %v727 = vld [vmem:[%s3 + $0x10] sm:$0xf]
        %v728 = vld [vmem:[%s3 + $0x14] sm:$0xf]
        %v729 = vld [vmem:[%s3 + $0x18] sm:$0xf]
        %v730 = vld [vmem:[%s3 + $0x1c] sm:$0xf]
        %v731 = vld [vmem:[%s4] sm:$0x1]
        %v733 = vperm.slane %v731, 0
        %v743 = vunpack.c.l.b16 %v723
        %v744 = vunpack.c.l.b16 %v724
        %v745 = vunpack.c.l.b16 %v725
        %v746 = vunpack.c.l.b16 %v726
        %v747 = vunpack.c.l.b16 %v727
        %v748 = vunpack.c.l.b16 %v728
        %v749 = vunpack.c.l.b16 %v729
        %v750 = vunpack.c.l.b16 %v730
        %v751 = vpack.c.b16 %v744, %v743
        %v752 = vpack.c.b16 %v746, %v745
        %v753 = vpack.c.b16 %v748, %v747
        %v754 = vpack.c.b16 %v750, %v749
        %vm759 = vcmask 523264
        %v761 = vsel %vm759, %v722, 0
        %763 = vmatpush.bf16.msra.mxu0 0
        %764 = vmatpush.bf16.msra.mxu0 0
        %765 = vmatpush.bf16.msra.mxu0 0
        %766 = vmatpush.bf16.msra.mxu0 0
        %767 = vmatpush.bf16.msra.mxu0 %v754
        %768 = vmatpush.bf16.msra.mxu0 %v753
        %769 = vmatpush.bf16.msra.mxu0 %v752
        %770 = vmatpush.bf16.msra.mxu0 %v751
        %771 = vmatmul.bf16.gmra.mxu0 %v761
        %v772 = vpop.f32.mrf.mxu0
        %v773 = vadd.f32 %v733, %v772
        %v774 = vpop.f32.mrf.mxu0
        %v775 = vadd.f32 %v733, %v774
        %776 = vdwg.mxu0
        %v777 = vmax.f32 %v773, 0.0
        %v778 = vmax.f32 %v775, 0.0
        %v779 = vpack.c.bf16 %v778, %v777
        %v780 = vld [vmem:[#allocation2] sm:$0xf]
        %v781 = vld [vmem:[#allocation2 + $0x4] sm:$0xf]
        %v782 = vld [vmem:[#allocation2 + $0x8] sm:$0xf]
        %v783 = vld [vmem:[#allocation2 + $0xc] sm:$0xf]
        %v784 = vld [vmem:[#allocation2 + $0x10] sm:$0xf]
        %v785 = vld [vmem:[#allocation2 + $0x14] sm:$0xf]
        %v786 = vld [vmem:[#allocation2 + $0x18] sm:$0xf]
        %v787 = vld [vmem:[#allocation2 + $0x1c] sm:$0xf]
        %v788 = vld [vmem:[%s6] sm:$0x1]
        %v790 = vperm.slane %v788, 0
        %v800 = vunpack.c.l.b16 %v780
        %v801 = vunpack.c.l.b16 %v781
        %v802 = vunpack.c.l.b16 %v782
        %v803 = vunpack.c.l.b16 %v783
        %v804 = vunpack.c.l.b16 %v784
        %v805 = vunpack.c.l.b16 %v785
        %v806 = vunpack.c.l.b16 %v786
        %v807 = vunpack.c.l.b16 %v787
        %v808 = vpack.c.b16 %v801, %v800
        %v809 = vpack.c.b16 %v803, %v802
        %v810 = vpack.c.b16 %v805, %v804
        %v811 = vpack.c.b16 %v807, %v806
        %v817 = vsel %vm759, %v779, 0
        %819 = vmatpush.bf16.msra.mxu0 0
        %820 = vmatpush.bf16.msra.mxu0 0
        %821 = vmatpush.bf16.msra.mxu0 0
        %822 = vmatpush.bf16.msra.mxu0 0
        %823 = vmatpush.bf16.msra.mxu0 %v811
        %824 = vmatpush.bf16.msra.mxu0 %v810
        %825 = vmatpush.bf16.msra.mxu0 %v809
        %826 = vmatpush.bf16.msra.mxu0 %v808
        %827 = vmatmul.bf16.gmra.mxu0 %v817
        %v828 = vpop.f32.mrf.mxu0
        %v829 = vadd.f32 %v790, %v828
        %v830 = vpop.f32.mrf.mxu0
        %v831 = vadd.f32 %v790, %v830
        %832 = vdwg.mxu0
        %v833 = vmax.f32 %v829, 0.0
        %v834 = vmax.f32 %v831, 0.0
        %v835 = vpack.c.bf16 %v834, %v833
        %v836 = vld [vmem:[#allocation5] sm:$0xf]
        %v837 = vld [vmem:[#allocation5 + $0x4] sm:$0xf]
        %v838 = vld [vmem:[#allocation5 + $0x8] sm:$0xf]
        %v839 = vld [vmem:[#allocation5 + $0xc] sm:$0xf]
        %v840 = vld [vmem:[#allocation5 + $0x10] sm:$0xf]
        %v841 = vld [vmem:[#allocation5 + $0x14] sm:$0xf]
        %v842 = vld [vmem:[#allocation5 + $0x18] sm:$0xf]
        %v843 = vld [vmem:[#allocation5 + $0x1c] sm:$0xf]
        %v844 = vld [vmem:[%s8] sm:$0x1]
        %v846 = vperm.slane %v844, 0
        %v856 = vunpack.c.l.b16 %v836
        %v857 = vunpack.c.l.b16 %v837
        %v858 = vunpack.c.l.b16 %v838
        %v859 = vunpack.c.l.b16 %v839
        %v860 = vunpack.c.l.b16 %v840
        %v861 = vunpack.c.l.b16 %v841
        %v862 = vunpack.c.l.b16 %v842
        %v863 = vunpack.c.l.b16 %v843
        %v864 = vpack.c.b16 %v857, %v856
        %v865 = vpack.c.b16 %v859, %v858
        %v866 = vpack.c.b16 %v861, %v860
        %v867 = vpack.c.b16 %v863, %v862
        %v873 = vsel %vm759, %v835, 0
        %875 = vmatpush.bf16.msra.mxu0 0
        %876 = vmatpush.bf16.msra.mxu0 0
        %877 = vmatpush.bf16.msra.mxu0 0
        %878 = vmatpush.bf16.msra.mxu0 0
        %879 = vmatpush.bf16.msra.mxu0 %v867
        %880 = vmatpush.bf16.msra.mxu0 %v866
        %881 = vmatpush.bf16.msra.mxu0 %v865
        %882 = vmatpush.bf16.msra.mxu0 %v864
        %883 = vmatmul.bf16.gmra.mxu0 %v873
        %v884 = vpop.f32.mrf.mxu0
        %v885 = vadd.f32 %v846, %v884
        %v886 = vpop.f32.mrf.mxu0
        %v887 = vadd.f32 %v846, %v886
        %888 = vdwg.mxu0
        %v889 = vmax.f32 %v885, 0.0
        %v890 = vmax.f32 %v887, 0.0
        %v891 = vpack.c.bf16 %v890, %v889
        %v892 = vld [vmem:[#allocation7] sm:$0xf]
        %v893 = vld [vmem:[#allocation7 + $0x4] sm:$0xf]
        %v894 = vld [vmem:[#allocation7 + $0x8] sm:$0xf]
        %v895 = vld [vmem:[#allocation7 + $0xc] sm:$0xf]
        %v896 = vld [vmem:[#allocation7 + $0x10] sm:$0xf]
        %v897 = vld [vmem:[#allocation7 + $0x14] sm:$0xf]
        %v898 = vld [vmem:[#allocation7 + $0x18] sm:$0xf]
        %v899 = vld [vmem:[#allocation7 + $0x1c] sm:$0xf]
        %v900 = vld [vmem:[#allocation7 + $0x20] sm:$0xf]
        %v901 = vld [vmem:[#allocation7 + $0x24] sm:$0xf]
        %v902 = vld [vmem:[#allocation7 + $0x28] sm:$0xf]
        %v903 = vld [vmem:[#allocation7 + $0x2c] sm:$0xf]
        %v904 = vld [vmem:[#allocation7 + $0x30] sm:$0xf]
        %v905 = vld [vmem:[#allocation7 + $0x34] sm:$0xf]
        %v906 = vld [vmem:[#allocation7 + $0x38] sm:$0xf]
        %v907 = vld [vmem:[#allocation7 + $0x3c] sm:$0xf]
        %v908 = vld [vmem:[%s10] sm:$0x1]
        %v910 = vperm.slane %v908, 0
        %v928 = vunpack.c.l.b16 %v892
        %v929 = vunpack.c.l.b16 %v893
        %v930 = vunpack.c.l.b16 %v894
        %v931 = vunpack.c.l.b16 %v895
        %v932 = vunpack.c.l.b16 %v896
        %v933 = vunpack.c.l.b16 %v897
        %v934 = vunpack.c.l.b16 %v898
        %v935 = vunpack.c.l.b16 %v899
        %v936 = vunpack.c.l.b16 %v900
        %v937 = vunpack.c.l.b16 %v901
        %v938 = vunpack.c.l.b16 %v902
        %v939 = vunpack.c.l.b16 %v903
        %v940 = vunpack.c.l.b16 %v904
        %v941 = vunpack.c.l.b16 %v905
        %v942 = vunpack.c.l.b16 %v906
        %v943 = vunpack.c.l.b16 %v907
        %v944 = vpack.c.b16 %v929, %v928
        %v945 = vpack.c.b16 %v931, %v930
        %v946 = vpack.c.b16 %v933, %v932
        %v947 = vpack.c.b16 %v935, %v934
        %v948 = vpack.c.b16 %v937, %v936
        %v949 = vpack.c.b16 %v939, %v938
        %v950 = vpack.c.b16 %v941, %v940
        %v951 = vpack.c.b16 %v943, %v942
        %960 = vmatpush.bf16.msra.mxu0 %v951
        %961 = vmatpush.bf16.msra.mxu0 %v950
        %962 = vmatpush.bf16.msra.mxu0 %v949
        %963 = vmatpush.bf16.msra.mxu0 %v948
        %964 = vmatpush.bf16.msra.mxu0 %v947
        %965 = vmatpush.bf16.msra.mxu0 %v946
        %966 = vmatpush.bf16.msra.mxu0 %v945
        %967 = vmatpush.bf16.msra.mxu0 %v944
        %968 = vmatmul.bf16.gmra.mxu0 %v891
        %v969 = vpop.f32.mrf.mxu0
        %v970 = vadd.f32 %v910, %v969
        %v971 = vpop.f32.mrf.mxu0
        %v972 = vadd.f32 %v910, %v971
        %973 = vdwg.mxu0
        %v974 = vmax.f32 %v970, 0.0
        %v975 = vmax.f32 %v972, 0.0
        %v976 = vpack.c.bf16 %v975, %v974
        %v977 = vld [vmem:[#allocation8] sm:$0xf]
        %v978 = vld [vmem:[#allocation8 + $0x4] sm:$0xf]
        %v979 = vld [vmem:[#allocation8 + $0x8] sm:$0xf]
        %v980 = vld [vmem:[#allocation8 + $0xc] sm:$0xf]
        %v981 = vld [vmem:[#allocation8 + $0x10] sm:$0xf]
        %v982 = vld [vmem:[#allocation8 + $0x14] sm:$0xf]
        %v983 = vld [vmem:[#allocation8 + $0x18] sm:$0xf]
        %v984 = vld [vmem:[#allocation8 + $0x1c] sm:$0xf]
        %v985 = vld [vmem:[#allocation8 + $0x20] sm:$0xf]
        %v986 = vld [vmem:[#allocation8 + $0x24] sm:$0xf]
        %v987 = vld [vmem:[#allocation8 + $0x28] sm:$0xf]
        %v988 = vld [vmem:[#allocation8 + $0x2c] sm:$0xf]
        %v989 = vld [vmem:[#allocation8 + $0x30] sm:$0xf]
        %v990 = vld [vmem:[#allocation8 + $0x34] sm:$0xf]
        %v991 = vld [vmem:[#allocation8 + $0x38] sm:$0xf]
        %v992 = vld [vmem:[#allocation8 + $0x3c] sm:$0xf]
        %v993 = vld [vmem:[%s12] sm:$0x1]
        %v995 = vperm.slane %v993, 0
        %v1013 = vunpack.c.l.b16 %v977
        %v1014 = vunpack.c.l.b16 %v978
        %v1015 = vunpack.c.l.b16 %v979
        %v1016 = vunpack.c.l.b16 %v980
        %v1017 = vunpack.c.l.b16 %v981
        %v1018 = vunpack.c.l.b16 %v982
        %v1019 = vunpack.c.l.b16 %v983
        %v1020 = vunpack.c.l.b16 %v984
        %v1021 = vunpack.c.l.b16 %v985
        %v1022 = vunpack.c.l.b16 %v986
        %v1023 = vunpack.c.l.b16 %v987
        %v1024 = vunpack.c.l.b16 %v988
        %v1025 = vunpack.c.l.b16 %v989
        %v1026 = vunpack.c.l.b16 %v990
        %v1027 = vunpack.c.l.b16 %v991
        %v1028 = vunpack.c.l.b16 %v992
        %v1029 = vpack.c.b16 %v1014, %v1013
        %v1030 = vpack.c.b16 %v1016, %v1015
        %v1031 = vpack.c.b16 %v1018, %v1017
        %v1032 = vpack.c.b16 %v1020, %v1019
        %v1033 = vpack.c.b16 %v1022, %v1021
        %v1034 = vpack.c.b16 %v1024, %v1023
        %v1035 = vpack.c.b16 %v1026, %v1025
        %v1036 = vpack.c.b16 %v1028, %v1027
        %1045 = vmatpush.bf16.msra.mxu0 %v1036
        %1046 = vmatpush.bf16.msra.mxu0 %v1035
        %1047 = vmatpush.bf16.msra.mxu0 %v1034
        %1048 = vmatpush.bf16.msra.mxu0 %v1033
        %1049 = vmatpush.bf16.msra.mxu0 %v1032
        %1050 = vmatpush.bf16.msra.mxu0 %v1031
        %1051 = vmatpush.bf16.msra.mxu0 %v1030
        %1052 = vmatpush.bf16.msra.mxu0 %v1029
        %1053 = vmatmul.bf16.gmra.mxu0 %v976
        %v1054 = vpop.f32.mrf.mxu0
        %v1055 = vadd.f32 %v995, %v1054
        %v1056 = vpop.f32.mrf.mxu0
        %v1057 = vadd.f32 %v995, %v1056
        %1058 = vdwg.mxu0
        %v1059 = vmax.f32 %v1055, 0.0
        %v1060 = vmax.f32 %v1057, 0.0
        %v1061 = vpack.c.bf16 %v1060, %v1059
        %v1062 = vld [vmem:[#allocation10] sm:$0xff]
        %v1063 = vld [vmem:[#allocation10 + $0x8] sm:$0xff]
        %v1064 = vld [vmem:[#allocation10 + $0x10] sm:$0xff]
        %v1065 = vld [vmem:[#allocation10 + $0x18] sm:$0xff]
        %v1066 = vld [vmem:[#allocation10 + $0x20] sm:$0xff]
        %v1067 = vld [vmem:[#allocation10 + $0x28] sm:$0xff]
        %v1068 = vld [vmem:[#allocation10 + $0x30] sm:$0xff]
        %v1069 = vld [vmem:[#allocation10 + $0x38] sm:$0xff]
        %v1070 = vld [vmem:[#allocation10 + $0x40] sm:$0xff]
        %v1071 = vld [vmem:[#allocation10 + $0x48] sm:$0xff]
        %v1072 = vld [vmem:[#allocation10 + $0x50] sm:$0xff]
        %v1073 = vld [vmem:[#allocation10 + $0x58] sm:$0xff]
        %v1074 = vld [vmem:[#allocation10 + $0x60] sm:$0xff]
        %v1075 = vld [vmem:[#allocation10 + $0x68] sm:$0xff]
        %v1076 = vld [vmem:[#allocation10 + $0x70] sm:$0xff]
        %v1077 = vld [vmem:[#allocation10 + $0x78] sm:$0xff]
        %v1078 = vld [vmem:[#allocation10 + $0x80] sm:$0xff]
        %v1079 = vld [vmem:[#allocation10 + $0x88] sm:$0xff]
        %v1080 = vld [vmem:[#allocation10 + $0x90] sm:$0xff]
        %v1081 = vld [vmem:[#allocation10 + $0x98] sm:$0xff]
        %v1082 = vld [vmem:[#allocation10 + $0xa0] sm:$0xff]
        %v1083 = vld [vmem:[#allocation10 + $0xa8] sm:$0xff]
        %v1084 = vld [vmem:[#allocation10 + $0xb0] sm:$0xff]
        %v1085 = vld [vmem:[#allocation10 + $0xb8] sm:$0xff]
        %v1086 = vld [vmem:[#allocation10 + $0xc0] sm:$0xff]
        %v1087 = vld [vmem:[#allocation10 + $0xc8] sm:$0xff]
        %v1088 = vld [vmem:[#allocation10 + $0xd0] sm:$0xff]
        %v1089 = vld [vmem:[#allocation10 + $0xd8] sm:$0xff]
        %v1090 = vld [vmem:[#allocation10 + $0xe0] sm:$0xff]
        %v1091 = vld [vmem:[#allocation10 + $0xe8] sm:$0xff]
        %v1092 = vld [vmem:[#allocation10 + $0xf0] sm:$0xff]
        %v1093 = vld [vmem:[#allocation10 + $0xf8] sm:$0xff]
        %v1094 = vld [vmem:[#allocation10 + $0x100] sm:$0xff]
        %v1095 = vld [vmem:[#allocation10 + $0x108] sm:$0xff]
        %v1096 = vld [vmem:[#allocation10 + $0x110] sm:$0xff]
        %v1097 = vld [vmem:[#allocation10 + $0x118] sm:$0xff]
        %v1098 = vld [vmem:[#allocation10 + $0x120] sm:$0xff]
        %v1099 = vld [vmem:[#allocation10 + $0x128] sm:$0xff]
        %v1100 = vld [vmem:[#allocation10 + $0x130] sm:$0xff]
        %v1101 = vld [vmem:[#allocation10 + $0x138] sm:$0xff]
        %v1102 = vld [vmem:[#allocation10 + $0x140] sm:$0xff]
        %v1103 = vld [vmem:[#allocation10 + $0x148] sm:$0xff]
        %v1104 = vld [vmem:[#allocation10 + $0x150] sm:$0xff]
        %v1105 = vld [vmem:[#allocation10 + $0x158] sm:$0xff]
        %v1106 = vld [vmem:[#allocation10 + $0x160] sm:$0xff]
        %v1107 = vld [vmem:[#allocation10 + $0x168] sm:$0xff]
        %v1108 = vld [vmem:[#allocation10 + $0x170] sm:$0xff]
        %v1109 = vld [vmem:[#allocation10 + $0x178] sm:$0xff]
        %v1110 = vld [vmem:[#allocation10 + $0x180] sm:$0xff]
        %v1111 = vld [vmem:[#allocation10 + $0x188] sm:$0xff]
        %v1112 = vld [vmem:[#allocation10 + $0x190] sm:$0xff]
        %v1113 = vld [vmem:[#allocation10 + $0x198] sm:$0xff]
        %v1114 = vld [vmem:[#allocation10 + $0x1a0] sm:$0xff]
        %v1115 = vld [vmem:[#allocation10 + $0x1a8] sm:$0xff]
        %v1116 = vld [vmem:[#allocation10 + $0x1b0] sm:$0xff]
        %v1117 = vld [vmem:[#allocation10 + $0x1b8] sm:$0xff]
        %v1118 = vld [vmem:[#allocation10 + $0x1c0] sm:$0xff]
        %v1119 = vld [vmem:[#allocation10 + $0x1c8] sm:$0xff]
        %v1120 = vld [vmem:[#allocation10 + $0x1d0] sm:$0xff]
        %v1121 = vld [vmem:[#allocation10 + $0x1d8] sm:$0xff]
        %v1122 = vld [vmem:[#allocation10 + $0x1e0] sm:$0xff]
        %v1123 = vld [vmem:[#allocation10 + $0x1e8] sm:$0xff]
        %v1124 = vld [vmem:[#allocation10 + $0x1f0] sm:$0xff]
        %v1125 = vld [vmem:[#allocation10 + $0x1f8] sm:$0xff]
        %v1126 = vld [vmem:[%s14] sm:$0xff]
        %v1128 = vperm.slane %v1126, 0
        %v1129 = vperm.slane %v1126, 1
        %v1130 = vperm.slane %v1126, 2
        %v1131 = vperm.slane %v1126, 3
        %v1132 = vperm.slane %v1126, 4
        %v1133 = vperm.slane %v1126, 5
        %v1134 = vperm.slane %v1126, 6
        %v1135 = vperm.slane %v1126, 7
        %v1208 = vunpack.c.l.b16 %v1062
        %v1209 = vunpack.c.h.b16 %v1062
        %v1210 = vunpack.c.l.b16 %v1063
        %v1211 = vunpack.c.h.b16 %v1063
        %v1212 = vunpack.c.l.b16 %v1064
        %v1213 = vunpack.c.h.b16 %v1064
        %v1214 = vunpack.c.l.b16 %v1065
        %v1215 = vunpack.c.h.b16 %v1065
        %v1216 = vunpack.c.l.b16 %v1066
        %v1217 = vunpack.c.h.b16 %v1066
        %v1218 = vunpack.c.l.b16 %v1067
        %v1219 = vunpack.c.h.b16 %v1067
        %v1220 = vunpack.c.l.b16 %v1068
        %v1221 = vunpack.c.h.b16 %v1068
        %v1222 = vunpack.c.l.b16 %v1069
        %v1223 = vunpack.c.h.b16 %v1069
        %v1224 = vunpack.c.l.b16 %v1070
        %v1225 = vunpack.c.h.b16 %v1070
        %v1226 = vunpack.c.l.b16 %v1071
        %v1227 = vunpack.c.h.b16 %v1071
        %v1228 = vunpack.c.l.b16 %v1072
        %v1229 = vunpack.c.h.b16 %v1072
        %v1230 = vunpack.c.l.b16 %v1073
        %v1231 = vunpack.c.h.b16 %v1073
        %v1232 = vunpack.c.l.b16 %v1074
        %v1233 = vunpack.c.h.b16 %v1074
        %v1234 = vunpack.c.l.b16 %v1075
        %v1235 = vunpack.c.h.b16 %v1075
        %v1236 = vunpack.c.l.b16 %v1076
        %v1237 = vunpack.c.h.b16 %v1076
        %v1238 = vunpack.c.l.b16 %v1077
        %v1239 = vunpack.c.h.b16 %v1077
        %v1240 = vunpack.c.l.b16 %v1078
        %v1241 = vunpack.c.h.b16 %v1078
        %v1242 = vunpack.c.l.b16 %v1079
        %v1243 = vunpack.c.h.b16 %v1079
        %v1244 = vunpack.c.l.b16 %v1080
        %v1245 = vunpack.c.h.b16 %v1080
        %v1246 = vunpack.c.l.b16 %v1081
        %v1247 = vunpack.c.h.b16 %v1081
        %v1248 = vunpack.c.l.b16 %v1082
        %v1249 = vunpack.c.h.b16 %v1082
        %v1250 = vunpack.c.l.b16 %v1083
        %v1251 = vunpack.c.h.b16 %v1083
        %v1252 = vunpack.c.l.b16 %v1084
        %v1253 = vunpack.c.h.b16 %v1084
        %v1254 = vunpack.c.l.b16 %v1085
        %v1255 = vunpack.c.h.b16 %v1085
        %v1256 = vunpack.c.l.b16 %v1086
        %v1257 = vunpack.c.h.b16 %v1086
        %v1258 = vunpack.c.l.b16 %v1087
        %v1259 = vunpack.c.h.b16 %v1087
        %v1260 = vunpack.c.l.b16 %v1088
        %v1261 = vunpack.c.h.b16 %v1088
        %v1262 = vunpack.c.l.b16 %v1089
        %v1263 = vunpack.c.h.b16 %v1089
        %v1264 = vunpack.c.l.b16 %v1090
        %v1265 = vunpack.c.h.b16 %v1090
        %v1266 = vunpack.c.l.b16 %v1091
        %v1267 = vunpack.c.h.b16 %v1091
        %v1268 = vunpack.c.l.b16 %v1092
        %v1269 = vunpack.c.h.b16 %v1092
        %v1270 = vunpack.c.l.b16 %v1093
        %v1271 = vunpack.c.h.b16 %v1093
        %v1272 = vunpack.c.l.b16 %v1094
        %v1273 = vunpack.c.h.b16 %v1094
        %v1274 = vunpack.c.l.b16 %v1095
        %v1275 = vunpack.c.h.b16 %v1095
        %v1276 = vunpack.c.l.b16 %v1096
        %v1277 = vunpack.c.h.b16 %v1096
        %v1278 = vunpack.c.l.b16 %v1097
        %v1279 = vunpack.c.h.b16 %v1097
        %v1280 = vunpack.c.l.b16 %v1098
        %v1281 = vunpack.c.h.b16 %v1098
        %v1282 = vunpack.c.l.b16 %v1099
        %v1283 = vunpack.c.h.b16 %v1099
        %v1284 = vunpack.c.l.b16 %v1100
        %v1285 = vunpack.c.h.b16 %v1100
        %v1286 = vunpack.c.l.b16 %v1101
        %v1287 = vunpack.c.h.b16 %v1101
        %v1288 = vunpack.c.l.b16 %v1102
        %v1289 = vunpack.c.h.b16 %v1102
        %v1290 = vunpack.c.l.b16 %v1103
        %v1291 = vunpack.c.h.b16 %v1103
        %v1292 = vunpack.c.l.b16 %v1104
        %v1293 = vunpack.c.h.b16 %v1104
        %v1294 = vunpack.c.l.b16 %v1105
        %v1295 = vunpack.c.h.b16 %v1105
        %v1296 = vunpack.c.l.b16 %v1106
        %v1297 = vunpack.c.h.b16 %v1106
        %v1298 = vunpack.c.l.b16 %v1107
        %v1299 = vunpack.c.h.b16 %v1107
        %v1300 = vunpack.c.l.b16 %v1108
        %v1301 = vunpack.c.h.b16 %v1108
        %v1302 = vunpack.c.l.b16 %v1109
        %v1303 = vunpack.c.h.b16 %v1109
        %v1304 = vunpack.c.l.b16 %v1110
        %v1305 = vunpack.c.h.b16 %v1110
        %v1306 = vunpack.c.l.b16 %v1111
        %v1307 = vunpack.c.h.b16 %v1111
        %v1308 = vunpack.c.l.b16 %v1112
        %v1309 = vunpack.c.h.b16 %v1112
        %v1310 = vunpack.c.l.b16 %v1113
        %v1311 = vunpack.c.h.b16 %v1113
        %v1312 = vunpack.c.l.b16 %v1114
        %v1313 = vunpack.c.h.b16 %v1114
        %v1314 = vunpack.c.l.b16 %v1115
        %v1315 = vunpack.c.h.b16 %v1115
        %v1316 = vunpack.c.l.b16 %v1116
        %v1317 = vunpack.c.h.b16 %v1116
        %v1318 = vunpack.c.l.b16 %v1117
        %v1319 = vunpack.c.h.b16 %v1117
        %v1320 = vunpack.c.l.b16 %v1118
        %v1321 = vunpack.c.h.b16 %v1118
        %v1322 = vunpack.c.l.b16 %v1119
        %v1323 = vunpack.c.h.b16 %v1119
        %v1324 = vunpack.c.l.b16 %v1120
        %v1325 = vunpack.c.h.b16 %v1120
        %v1326 = vunpack.c.l.b16 %v1121
        %v1327 = vunpack.c.h.b16 %v1121
        %v1328 = vunpack.c.l.b16 %v1122
        %v1329 = vunpack.c.h.b16 %v1122
        %v1330 = vunpack.c.l.b16 %v1123
        %v1331 = vunpack.c.h.b16 %v1123
        %v1332 = vunpack.c.l.b16 %v1124
        %v1333 = vunpack.c.h.b16 %v1124
        %v1334 = vunpack.c.l.b16 %v1125
        %v1335 = vunpack.c.h.b16 %v1125
        %v1336 = vpack.c.b16 %v1216, %v1208
        %v1337 = vpack.c.b16 %v1217, %v1209
        %v1338 = vpack.c.b16 %v1218, %v1210
        %v1339 = vpack.c.b16 %v1219, %v1211
        %v1340 = vpack.c.b16 %v1220, %v1212
        %v1341 = vpack.c.b16 %v1221, %v1213
        %v1342 = vpack.c.b16 %v1222, %v1214
        %v1343 = vpack.c.b16 %v1223, %v1215
        %v1344 = vpack.c.b16 %v1232, %v1224
        %v1345 = vpack.c.b16 %v1233, %v1225
        %v1346 = vpack.c.b16 %v1234, %v1226
        %v1347 = vpack.c.b16 %v1235, %v1227
        %v1348 = vpack.c.b16 %v1236, %v1228
        %v1349 = vpack.c.b16 %v1237, %v1229
        %v1350 = vpack.c.b16 %v1238, %v1230
        %v1351 = vpack.c.b16 %v1239, %v1231
        %v1352 = vpack.c.b16 %v1248, %v1240
        %v1353 = vpack.c.b16 %v1249, %v1241
        %v1354 = vpack.c.b16 %v1250, %v1242
        %v1355 = vpack.c.b16 %v1251, %v1243
        %v1356 = vpack.c.b16 %v1252, %v1244
        %v1357 = vpack.c.b16 %v1253, %v1245
        %v1358 = vpack.c.b16 %v1254, %v1246
        %v1359 = vpack.c.b16 %v1255, %v1247
        %v1360 = vpack.c.b16 %v1264, %v1256
        %v1361 = vpack.c.b16 %v1265, %v1257
        %v1362 = vpack.c.b16 %v1266, %v1258
        %v1363 = vpack.c.b16 %v1267, %v1259
        %v1364 = vpack.c.b16 %v1268, %v1260
        %v1365 = vpack.c.b16 %v1269, %v1261
        %v1366 = vpack.c.b16 %v1270, %v1262
        %v1367 = vpack.c.b16 %v1271, %v1263
        %v1368 = vpack.c.b16 %v1280, %v1272
        %v1369 = vpack.c.b16 %v1281, %v1273
        %v1370 = vpack.c.b16 %v1282, %v1274
        %v1371 = vpack.c.b16 %v1283, %v1275
        %v1372 = vpack.c.b16 %v1284, %v1276
        %v1373 = vpack.c.b16 %v1285, %v1277
        %v1374 = vpack.c.b16 %v1286, %v1278
        %v1375 = vpack.c.b16 %v1287, %v1279
        %v1376 = vpack.c.b16 %v1296, %v1288
        %v1377 = vpack.c.b16 %v1297, %v1289
        %v1378 = vpack.c.b16 %v1298, %v1290
        %v1379 = vpack.c.b16 %v1299, %v1291
        %v1380 = vpack.c.b16 %v1300, %v1292
        %v1381 = vpack.c.b16 %v1301, %v1293
        %v1382 = vpack.c.b16 %v1302, %v1294
        %v1383 = vpack.c.b16 %v1303, %v1295
        %v1384 = vpack.c.b16 %v1312, %v1304
        %v1385 = vpack.c.b16 %v1313, %v1305
        %v1386 = vpack.c.b16 %v1314, %v1306
        %v1387 = vpack.c.b16 %v1315, %v1307
        %v1388 = vpack.c.b16 %v1316, %v1308
        %v1389 = vpack.c.b16 %v1317, %v1309
        %v1390 = vpack.c.b16 %v1318, %v1310
        %v1391 = vpack.c.b16 %v1319, %v1311
        %v1392 = vpack.c.b16 %v1328, %v1320
        %v1393 = vpack.c.b16 %v1329, %v1321
        %v1394 = vpack.c.b16 %v1330, %v1322
        %v1395 = vpack.c.b16 %v1331, %v1323
        %v1396 = vpack.c.b16 %v1332, %v1324
        %v1397 = vpack.c.b16 %v1333, %v1325
        %v1398 = vpack.c.b16 %v1334, %v1326
        %v1399 = vpack.c.b16 %v1335, %v1327
        %1464 = vmatpush.bf16.msra.mxu0 %v1392
        %1465 = vmatpush.bf16.msra.mxu0 %v1384
        %1466 = vmatpush.bf16.msra.mxu0 %v1376
        %1467 = vmatpush.bf16.msra.mxu0 %v1368
        %1468 = vmatpush.bf16.msra.mxu0 %v1360
        %1469 = vmatpush.bf16.msra.mxu0 %v1352
        %1470 = vmatpush.bf16.msra.mxu0 %v1344
        %1471 = vmatpush.bf16.msra.mxu0 %v1336
        %1472 = vmatmul.bf16.gmra.mxu0 %v1061
        %v1473 = vpop.f32.mrf.mxu0
        %v1474 = vadd.f32 %v1128, %v1473
        %v1475 = vpop.f32.mrf.mxu0
        %v1476 = vadd.f32 %v1128, %v1475
        %1477 = vdwg.mxu0
        %1478 = vmatpush.bf16.msra.mxu0 %v1393
        %1479 = vmatpush.bf16.msra.mxu0 %v1385
        %1480 = vmatpush.bf16.msra.mxu0 %v1377
        %1481 = vmatpush.bf16.msra.mxu0 %v1369
        %1482 = vmatpush.bf16.msra.mxu0 %v1361
        %1483 = vmatpush.bf16.msra.mxu0 %v1353
        %1484 = vmatpush.bf16.msra.mxu0 %v1345
        %1485 = vmatpush.bf16.msra.mxu0 %v1337
        %1486 = vmatmul.bf16.gmra.mxu0 %v1061
        %v1487 = vpop.f32.mrf.mxu0
        %v1488 = vadd.f32 %v1129, %v1487
        %v1489 = vpop.f32.mrf.mxu0
        %v1490 = vadd.f32 %v1129, %v1489
        %1491 = vdwg.mxu0
        %1492 = vmatpush.bf16.msra.mxu0 %v1394
        %1493 = vmatpush.bf16.msra.mxu0 %v1386
        %1494 = vmatpush.bf16.msra.mxu0 %v1378
        %1495 = vmatpush.bf16.msra.mxu0 %v1370
        %1496 = vmatpush.bf16.msra.mxu0 %v1362
        %1497 = vmatpush.bf16.msra.mxu0 %v1354
        %1498 = vmatpush.bf16.msra.mxu0 %v1346
        %1499 = vmatpush.bf16.msra.mxu0 %v1338
        %1500 = vmatmul.bf16.gmra.mxu0 %v1061
        %v1501 = vpop.f32.mrf.mxu0
        %v1502 = vadd.f32 %v1130, %v1501
        %v1503 = vpop.f32.mrf.mxu0
        %v1504 = vadd.f32 %v1130, %v1503
        %1505 = vdwg.mxu0
        %1506 = vmatpush.bf16.msra.mxu0 %v1395
        %1507 = vmatpush.bf16.msra.mxu0 %v1387
        %1508 = vmatpush.bf16.msra.mxu0 %v1379
        %1509 = vmatpush.bf16.msra.mxu0 %v1371
        %1510 = vmatpush.bf16.msra.mxu0 %v1363
        %1511 = vmatpush.bf16.msra.mxu0 %v1355
        %1512 = vmatpush.bf16.msra.mxu0 %v1347
        %1513 = vmatpush.bf16.msra.mxu0 %v1339
        %1514 = vmatmul.bf16.gmra.mxu0 %v1061
        %v1515 = vpop.f32.mrf.mxu0
        %v1516 = vadd.f32 %v1131, %v1515
        %v1517 = vpop.f32.mrf.mxu0
        %v1518 = vadd.f32 %v1131, %v1517
        %1519 = vdwg.mxu0
        %1520 = vmatpush.bf16.msra.mxu0 %v1396
        %1521 = vmatpush.bf16.msra.mxu0 %v1388
        %1522 = vmatpush.bf16.msra.mxu0 %v1380
        %1523 = vmatpush.bf16.msra.mxu0 %v1372
        %1524 = vmatpush.bf16.msra.mxu0 %v1364
        %1525 = vmatpush.bf16.msra.mxu0 %v1356
        %1526 = vmatpush.bf16.msra.mxu0 %v1348
        %1527 = vmatpush.bf16.msra.mxu0 %v1340
        %1528 = vmatmul.bf16.gmra.mxu0 %v1061
        %v1529 = vpop.f32.mrf.mxu0
        %v1530 = vadd.f32 %v1132, %v1529
        %v1531 = vpop.f32.mrf.mxu0
        %v1532 = vadd.f32 %v1132, %v1531
        %1533 = vdwg.mxu0
        %1534 = vmatpush.bf16.msra.mxu0 %v1397
        %1535 = vmatpush.bf16.msra.mxu0 %v1389
        %1536 = vmatpush.bf16.msra.mxu0 %v1381
        %1537 = vmatpush.bf16.msra.mxu0 %v1373
        %1538 = vmatpush.bf16.msra.mxu0 %v1365
        %1539 = vmatpush.bf16.msra.mxu0 %v1357
        %1540 = vmatpush.bf16.msra.mxu0 %v1349
        %1541 = vmatpush.bf16.msra.mxu0 %v1341
        %1542 = vmatmul.bf16.gmra.mxu0 %v1061
        %v1543 = vpop.f32.mrf.mxu0
        %v1544 = vadd.f32 %v1133, %v1543
        %v1545 = vpop.f32.mrf.mxu0
        %v1546 = vadd.f32 %v1133, %v1545
        %1547 = vdwg.mxu0
        %1548 = vmatpush.bf16.msra.mxu0 %v1398
        %1549 = vmatpush.bf16.msra.mxu0 %v1390
        %1550 = vmatpush.bf16.msra.mxu0 %v1382
        %1551 = vmatpush.bf16.msra.mxu0 %v1374
        %1552 = vmatpush.bf16.msra.mxu0 %v1366
        %1553 = vmatpush.bf16.msra.mxu0 %v1358
        %1554 = vmatpush.bf16.msra.mxu0 %v1350
        %1555 = vmatpush.bf16.msra.mxu0 %v1342
        %1556 = vmatmul.bf16.gmra.mxu0 %v1061
        %v1557 = vpop.f32.mrf.mxu0
        %v1558 = vadd.f32 %v1134, %v1557
        %v1559 = vpop.f32.mrf.mxu0
        %v1560 = vadd.f32 %v1134, %v1559
        %1561 = vdwg.mxu0
        %1562 = vmatpush.bf16.msra.mxu0 %v1399
        %1563 = vmatpush.bf16.msra.mxu0 %v1391
        %1564 = vmatpush.bf16.msra.mxu0 %v1383
        %1565 = vmatpush.bf16.msra.mxu0 %v1375
        %1566 = vmatpush.bf16.msra.mxu0 %v1367
        %1567 = vmatpush.bf16.msra.mxu0 %v1359
        %1568 = vmatpush.bf16.msra.mxu0 %v1351
        %1569 = vmatpush.bf16.msra.mxu0 %v1343
        %1570 = vmatmul.bf16.gmra.mxu0 %v1061
        %v1571 = vpop.f32.mrf.mxu0
        %v1572 = vadd.f32 %v1135, %v1571
        %v1573 = vpop.f32.mrf.mxu0
        %v1574 = vadd.f32 %v1135, %v1573
        %1575 = vdwg.mxu0
        %v1576 = vmax.f32 %v1474, 0.0
        %v1577 = vmax.f32 %v1488, 0.0
        %v1578 = vmax.f32 %v1502, 0.0
        %v1579 = vmax.f32 %v1516, 0.0
        %v1580 = vmax.f32 %v1530, 0.0
        %v1581 = vmax.f32 %v1544, 0.0
        %v1582 = vmax.f32 %v1558, 0.0
        %v1583 = vmax.f32 %v1572, 0.0
        %v1584 = vmax.f32 %v1476, 0.0
        %v1585 = vmax.f32 %v1490, 0.0
        %v1586 = vmax.f32 %v1504, 0.0
        %v1587 = vmax.f32 %v1518, 0.0
        %v1588 = vmax.f32 %v1532, 0.0
        %v1589 = vmax.f32 %v1546, 0.0
        %v1590 = vmax.f32 %v1560, 0.0
        %v1591 = vmax.f32 %v1574, 0.0
        %v1592 = vpack.c.bf16 %v1584, %v1576
        %v1593 = vpack.c.bf16 %v1585, %v1577
        %v1594 = vpack.c.bf16 %v1586, %v1578
        %v1595 = vpack.c.bf16 %v1587, %v1579
        %v1596 = vpack.c.bf16 %v1588, %v1580
        %v1597 = vpack.c.bf16 %v1589, %v1581
        %v1598 = vpack.c.bf16 %v1590, %v1582
        %v1599 = vpack.c.bf16 %v1591, %v1583
        %v1600 = vld [vmem:[#allocation11] sm:$0xff]
        %v1601 = vld [vmem:[#allocation11 + $0x8] sm:$0xff]
        %v1602 = vld [vmem:[#allocation11 + $0x10] sm:$0xff]
        %v1603 = vld [vmem:[#allocation11 + $0x18] sm:$0xff]
        %v1604 = vld [vmem:[#allocation11 + $0x20] sm:$0xff]
        %v1605 = vld [vmem:[#allocation11 + $0x28] sm:$0xff]
        %v1606 = vld [vmem:[#allocation11 + $0x30] sm:$0xff]
        %v1607 = vld [vmem:[#allocation11 + $0x38] sm:$0xff]
        %v1608 = vld [vmem:[#allocation11 + $0x40] sm:$0xff]
        %v1609 = vld [vmem:[#allocation11 + $0x48] sm:$0xff]
        %v1610 = vld [vmem:[#allocation11 + $0x50] sm:$0xff]
        %v1611 = vld [vmem:[#allocation11 + $0x58] sm:$0xff]
        %v1612 = vld [vmem:[#allocation11 + $0x60] sm:$0xff]
        %v1613 = vld [vmem:[#allocation11 + $0x68] sm:$0xff]
        %v1614 = vld [vmem:[#allocation11 + $0x70] sm:$0xff]
        %v1615 = vld [vmem:[#allocation11 + $0x78] sm:$0xff]
        %v1616 = vld [vmem:[#allocation11 + $0x80] sm:$0xff]
        %v1617 = vld [vmem:[#allocation11 + $0x88] sm:$0xff]
        %v1618 = vld [vmem:[#allocation11 + $0x90] sm:$0xff]
        %v1619 = vld [vmem:[#allocation11 + $0x98] sm:$0xff]
        %v1620 = vld [vmem:[#allocation11 + $0xa0] sm:$0xff]
        %v1621 = vld [vmem:[#allocation11 + $0xa8] sm:$0xff]
        %v1622 = vld [vmem:[#allocation11 + $0xb0] sm:$0xff]
        %v1623 = vld [vmem:[#allocation11 + $0xb8] sm:$0xff]
        %v1624 = vld [vmem:[#allocation11 + $0xc0] sm:$0xff]
        %v1625 = vld [vmem:[#allocation11 + $0xc8] sm:$0xff]
        %v1626 = vld [vmem:[#allocation11 + $0xd0] sm:$0xff]
        %v1627 = vld [vmem:[#allocation11 + $0xd8] sm:$0xff]
        %v1628 = vld [vmem:[#allocation11 + $0xe0] sm:$0xff]
        %v1629 = vld [vmem:[#allocation11 + $0xe8] sm:$0xff]
        %v1630 = vld [vmem:[#allocation11 + $0xf0] sm:$0xff]
        %v1631 = vld [vmem:[#allocation11 + $0xf8] sm:$0xff]
        %v1632 = vld [vmem:[#allocation11 + $0x100] sm:$0xff]
        %v1633 = vld [vmem:[#allocation11 + $0x108] sm:$0xff]
        %v1634 = vld [vmem:[#allocation11 + $0x110] sm:$0xff]
        %v1635 = vld [vmem:[#allocation11 + $0x118] sm:$0xff]
        %v1636 = vld [vmem:[#allocation11 + $0x120] sm:$0xff]
        %v1637 = vld [vmem:[#allocation11 + $0x128] sm:$0xff]
        %v1638 = vld [vmem:[#allocation11 + $0x130] sm:$0xff]
        %v1639 = vld [vmem:[#allocation11 + $0x138] sm:$0xff]
        %v1640 = vld [vmem:[#allocation11 + $0x140] sm:$0xff]
        %v1641 = vld [vmem:[#allocation11 + $0x148] sm:$0xff]
        %v1642 = vld [vmem:[#allocation11 + $0x150] sm:$0xff]
        %v1643 = vld [vmem:[#allocation11 + $0x158] sm:$0xff]
        %v1644 = vld [vmem:[#allocation11 + $0x160] sm:$0xff]
        %v1645 = vld [vmem:[#allocation11 + $0x168] sm:$0xff]
        %v1646 = vld [vmem:[#allocation11 + $0x170] sm:$0xff]
        %v1647 = vld [vmem:[#allocation11 + $0x178] sm:$0xff]
        %v1648 = vld [vmem:[#allocation11 + $0x180] sm:$0xff]
        %v1649 = vld [vmem:[#allocation11 + $0x188] sm:$0xff]
        %v1650 = vld [vmem:[#allocation11 + $0x190] sm:$0xff]
        %v1651 = vld [vmem:[#allocation11 + $0x198] sm:$0xff]
        %v1652 = vld [vmem:[#allocation11 + $0x1a0] sm:$0xff]
        %v1653 = vld [vmem:[#allocation11 + $0x1a8] sm:$0xff]
        %v1654 = vld [vmem:[#allocation11 + $0x1b0] sm:$0xff]
        %v1655 = vld [vmem:[#allocation11 + $0x1b8] sm:$0xff]
        %v1656 = vld [vmem:[#allocation11 + $0x1c0] sm:$0xff]
        %v1657 = vld [vmem:[#allocation11 + $0x1c8] sm:$0xff]
        %v1658 = vld [vmem:[#allocation11 + $0x1d0] sm:$0xff]
        %v1659 = vld [vmem:[#allocation11 + $0x1d8] sm:$0xff]
        %v1660 = vld [vmem:[#allocation11 + $0x1e0] sm:$0xff]
        %v1661 = vld [vmem:[#allocation11 + $0x1e8] sm:$0xff]
        %v1662 = vld [vmem:[#allocation11 + $0x1f0] sm:$0xff]
        %v1663 = vld [vmem:[#allocation11 + $0x1f8] sm:$0xff]
        %v1664 = vld [vmem:[#allocation11 + $0x200] sm:$0xff]
        %v1665 = vld [vmem:[#allocation11 + $0x208] sm:$0xff]
        %v1666 = vld [vmem:[#allocation11 + $0x210] sm:$0xff]
        %v1667 = vld [vmem:[#allocation11 + $0x218] sm:$0xff]
        %v1668 = vld [vmem:[#allocation11 + $0x220] sm:$0xff]
        %v1669 = vld [vmem:[#allocation11 + $0x228] sm:$0xff]
        %v1670 = vld [vmem:[#allocation11 + $0x230] sm:$0xff]
        %v1671 = vld [vmem:[#allocation11 + $0x238] sm:$0xff]
        %v1672 = vld [vmem:[#allocation11 + $0x240] sm:$0xff]
        %v1673 = vld [vmem:[#allocation11 + $0x248] sm:$0xff]
        %v1674 = vld [vmem:[#allocation11 + $0x250] sm:$0xff]
        %v1675 = vld [vmem:[#allocation11 + $0x258] sm:$0xff]
        %v1676 = vld [vmem:[#allocation11 + $0x260] sm:$0xff]
        %v1677 = vld [vmem:[#allocation11 + $0x268] sm:$0xff]
        %v1678 = vld [vmem:[#allocation11 + $0x270] sm:$0xff]
        %v1679 = vld [vmem:[#allocation11 + $0x278] sm:$0xff]
        %v1680 = vld [vmem:[#allocation11 + $0x280] sm:$0xff]
        %v1681 = vld [vmem:[#allocation11 + $0x288] sm:$0xff]
        %v1682 = vld [vmem:[#allocation11 + $0x290] sm:$0xff]
        %v1683 = vld [vmem:[#allocation11 + $0x298] sm:$0xff]
        %v1684 = vld [vmem:[#allocation11 + $0x2a0] sm:$0xff]
        %v1685 = vld [vmem:[#allocation11 + $0x2a8] sm:$0xff]
        %v1686 = vld [vmem:[#allocation11 + $0x2b0] sm:$0xff]
        %v1687 = vld [vmem:[#allocation11 + $0x2b8] sm:$0xff]
        %v1688 = vld [vmem:[#allocation11 + $0x2c0] sm:$0xff]
        %v1689 = vld [vmem:[#allocation11 + $0x2c8] sm:$0xff]
        %v1690 = vld [vmem:[#allocation11 + $0x2d0] sm:$0xff]
        %v1691 = vld [vmem:[#allocation11 + $0x2d8] sm:$0xff]
        %v1692 = vld [vmem:[#allocation11 + $0x2e0] sm:$0xff]
        %v1693 = vld [vmem:[#allocation11 + $0x2e8] sm:$0xff]
        %v1694 = vld [vmem:[#allocation11 + $0x2f0] sm:$0xff]
        %v1695 = vld [vmem:[#allocation11 + $0x2f8] sm:$0xff]
        %v1696 = vld [vmem:[#allocation11 + $0x300] sm:$0xff]
        %v1697 = vld [vmem:[#allocation11 + $0x308] sm:$0xff]
        %v1698 = vld [vmem:[#allocation11 + $0x310] sm:$0xff]
        %v1699 = vld [vmem:[#allocation11 + $0x318] sm:$0xff]
        %v1700 = vld [vmem:[#allocation11 + $0x320] sm:$0xff]
        %v1701 = vld [vmem:[#allocation11 + $0x328] sm:$0xff]
        %v1702 = vld [vmem:[#allocation11 + $0x330] sm:$0xff]
        %v1703 = vld [vmem:[#allocation11 + $0x338] sm:$0xff]
        %v1704 = vld [vmem:[#allocation11 + $0x340] sm:$0xff]
        %v1705 = vld [vmem:[#allocation11 + $0x348] sm:$0xff]
        %v1706 = vld [vmem:[#allocation11 + $0x350] sm:$0xff]
        %v1707 = vld [vmem:[#allocation11 + $0x358] sm:$0xff]
        %v1708 = vld [vmem:[#allocation11 + $0x360] sm:$0xff]
        %v1709 = vld [vmem:[#allocation11 + $0x368] sm:$0xff]
        %v1710 = vld [vmem:[#allocation11 + $0x370] sm:$0xff]
        %v1711 = vld [vmem:[#allocation11 + $0x378] sm:$0xff]
        %v1712 = vld [vmem:[#allocation11 + $0x380] sm:$0xff]
        %v1713 = vld [vmem:[#allocation11 + $0x388] sm:$0xff]
        %v1714 = vld [vmem:[#allocation11 + $0x390] sm:$0xff]
        %v1715 = vld [vmem:[#allocation11 + $0x398] sm:$0xff]
        %v1716 = vld [vmem:[#allocation11 + $0x3a0] sm:$0xff]
        %v1717 = vld [vmem:[#allocation11 + $0x3a8] sm:$0xff]
        %v1718 = vld [vmem:[#allocation11 + $0x3b0] sm:$0xff]
        %v1719 = vld [vmem:[#allocation11 + $0x3b8] sm:$0xff]
        %v1720 = vld [vmem:[#allocation11 + $0x3c0] sm:$0xff]
        %v1721 = vld [vmem:[#allocation11 + $0x3c8] sm:$0xff]
        %v1722 = vld [vmem:[#allocation11 + $0x3d0] sm:$0xff]
        %v1723 = vld [vmem:[#allocation11 + $0x3d8] sm:$0xff]
        %v1724 = vld [vmem:[#allocation11 + $0x3e0] sm:$0xff]
        %v1725 = vld [vmem:[#allocation11 + $0x3e8] sm:$0xff]
        %v1726 = vld [vmem:[#allocation11 + $0x3f0] sm:$0xff]
        %v1727 = vld [vmem:[#allocation11 + $0x3f8] sm:$0xff]
        %v1728 = vld [vmem:[#allocation11 + $0x400] sm:$0xff]
        %v1729 = vld [vmem:[#allocation11 + $0x408] sm:$0xff]
        %v1730 = vld [vmem:[#allocation11 + $0x410] sm:$0xff]
        %v1731 = vld [vmem:[#allocation11 + $0x418] sm:$0xff]
        %v1732 = vld [vmem:[#allocation11 + $0x420] sm:$0xff]
        %v1733 = vld [vmem:[#allocation11 + $0x428] sm:$0xff]
        %v1734 = vld [vmem:[#allocation11 + $0x430] sm:$0xff]
        %v1735 = vld [vmem:[#allocation11 + $0x438] sm:$0xff]
        %v1736 = vld [vmem:[#allocation11 + $0x440] sm:$0xff]
        %v1737 = vld [vmem:[#allocation11 + $0x448] sm:$0xff]
        %v1738 = vld [vmem:[#allocation11 + $0x450] sm:$0xff]
        %v1739 = vld [vmem:[#allocation11 + $0x458] sm:$0xff]
        %v1740 = vld [vmem:[#allocation11 + $0x460] sm:$0xff]
        %v1741 = vld [vmem:[#allocation11 + $0x468] sm:$0xff]
        %v1742 = vld [vmem:[#allocation11 + $0x470] sm:$0xff]
        %v1743 = vld [vmem:[#allocation11 + $0x478] sm:$0xff]
        %v1744 = vld [vmem:[#allocation11 + $0x480] sm:$0xff]
        %v1745 = vld [vmem:[#allocation11 + $0x488] sm:$0xff]
        %v1746 = vld [vmem:[#allocation11 + $0x490] sm:$0xff]
        %v1747 = vld [vmem:[#allocation11 + $0x498] sm:$0xff]
        %v1748 = vld [vmem:[#allocation11 + $0x4a0] sm:$0xff]
        %v1749 = vld [vmem:[#allocation11 + $0x4a8] sm:$0xff]
        %v1750 = vld [vmem:[#allocation11 + $0x4b0] sm:$0xff]
        %v1751 = vld [vmem:[#allocation11 + $0x4b8] sm:$0xff]
        %v1752 = vld [vmem:[#allocation11 + $0x4c0] sm:$0xff]
        %v1753 = vld [vmem:[#allocation11 + $0x4c8] sm:$0xff]
        %v1754 = vld [vmem:[#allocation11 + $0x4d0] sm:$0xff]
        %v1755 = vld [vmem:[#allocation11 + $0x4d8] sm:$0xff]
        %v1756 = vld [vmem:[#allocation11 + $0x4e0] sm:$0xff]
        %v1757 = vld [vmem:[#allocation11 + $0x4e8] sm:$0xff]
        %v1758 = vld [vmem:[#allocation11 + $0x4f0] sm:$0xff]
        %v1759 = vld [vmem:[#allocation11 + $0x4f8] sm:$0xff]
        %v1760 = vld [vmem:[#allocation11 + $0x500] sm:$0xff]
        %v1761 = vld [vmem:[#allocation11 + $0x508] sm:$0xff]
        %v1762 = vld [vmem:[#allocation11 + $0x510] sm:$0xff]
        %v1763 = vld [vmem:[#allocation11 + $0x518] sm:$0xff]
        %v1764 = vld [vmem:[#allocation11 + $0x520] sm:$0xff]
        %v1765 = vld [vmem:[#allocation11 + $0x528] sm:$0xff]
        %v1766 = vld [vmem:[#allocation11 + $0x530] sm:$0xff]
        %v1767 = vld [vmem:[#allocation11 + $0x538] sm:$0xff]
        %v1768 = vld [vmem:[#allocation11 + $0x540] sm:$0xff]
        %v1769 = vld [vmem:[#allocation11 + $0x548] sm:$0xff]
        %v1770 = vld [vmem:[#allocation11 + $0x550] sm:$0xff]
        %v1771 = vld [vmem:[#allocation11 + $0x558] sm:$0xff]
        %v1772 = vld [vmem:[#allocation11 + $0x560] sm:$0xff]
        %v1773 = vld [vmem:[#allocation11 + $0x568] sm:$0xff]
        %v1774 = vld [vmem:[#allocation11 + $0x570] sm:$0xff]
        %v1775 = vld [vmem:[#allocation11 + $0x578] sm:$0xff]
        %v1776 = vld [vmem:[#allocation11 + $0x580] sm:$0xff]
        %v1777 = vld [vmem:[#allocation11 + $0x588] sm:$0xff]
        %v1778 = vld [vmem:[#allocation11 + $0x590] sm:$0xff]
        %v1779 = vld [vmem:[#allocation11 + $0x598] sm:$0xff]
        %v1780 = vld [vmem:[#allocation11 + $0x5a0] sm:$0xff]
        %v1781 = vld [vmem:[#allocation11 + $0x5a8] sm:$0xff]
        %v1782 = vld [vmem:[#allocation11 + $0x5b0] sm:$0xff]
        %v1783 = vld [vmem:[#allocation11 + $0x5b8] sm:$0xff]
        %v1784 = vld [vmem:[#allocation11 + $0x5c0] sm:$0xff]
        %v1785 = vld [vmem:[#allocation11 + $0x5c8] sm:$0xff]
        %v1786 = vld [vmem:[#allocation11 + $0x5d0] sm:$0xff]
        %v1787 = vld [vmem:[#allocation11 + $0x5d8] sm:$0xff]
        %v1788 = vld [vmem:[#allocation11 + $0x5e0] sm:$0xff]
        %v1789 = vld [vmem:[#allocation11 + $0x5e8] sm:$0xff]
        %v1790 = vld [vmem:[#allocation11 + $0x5f0] sm:$0xff]
        %v1791 = vld [vmem:[#allocation11 + $0x5f8] sm:$0xff]
        %v1792 = vld [vmem:[#allocation11 + $0x600] sm:$0xff]
        %v1793 = vld [vmem:[#allocation11 + $0x608] sm:$0xff]
        %v1794 = vld [vmem:[#allocation11 + $0x610] sm:$0xff]
        %v1795 = vld [vmem:[#allocation11 + $0x618] sm:$0xff]
        %v1796 = vld [vmem:[#allocation11 + $0x620] sm:$0xff]
        %v1797 = vld [vmem:[#allocation11 + $0x628] sm:$0xff]
        %v1798 = vld [vmem:[#allocation11 + $0x630] sm:$0xff]
        %v1799 = vld [vmem:[#allocation11 + $0x638] sm:$0xff]
        %v1800 = vld [vmem:[#allocation11 + $0x640] sm:$0xff]
        %v1801 = vld [vmem:[#allocation11 + $0x648] sm:$0xff]
        %v1802 = vld [vmem:[#allocation11 + $0x650] sm:$0xff]
        %v1803 = vld [vmem:[#allocation11 + $0x658] sm:$0xff]
        %v1804 = vld [vmem:[#allocation11 + $0x660] sm:$0xff]
        %v1805 = vld [vmem:[#allocation11 + $0x668] sm:$0xff]
        %v1806 = vld [vmem:[#allocation11 + $0x670] sm:$0xff]
        %v1807 = vld [vmem:[#allocation11 + $0x678] sm:$0xff]
        %v1808 = vld [vmem:[#allocation11 + $0x680] sm:$0xff]
        %v1809 = vld [vmem:[#allocation11 + $0x688] sm:$0xff]
        %v1810 = vld [vmem:[#allocation11 + $0x690] sm:$0xff]
        %v1811 = vld [vmem:[#allocation11 + $0x698] sm:$0xff]
        %v1812 = vld [vmem:[#allocation11 + $0x6a0] sm:$0xff]
        %v1813 = vld [vmem:[#allocation11 + $0x6a8] sm:$0xff]
        %v1814 = vld [vmem:[#allocation11 + $0x6b0] sm:$0xff]
        %v1815 = vld [vmem:[#allocation11 + $0x6b8] sm:$0xff]
        %v1816 = vld [vmem:[#allocation11 + $0x6c0] sm:$0xff]
        %v1817 = vld [vmem:[#allocation11 + $0x6c8] sm:$0xff]
        %v1818 = vld [vmem:[#allocation11 + $0x6d0] sm:$0xff]
        %v1819 = vld [vmem:[#allocation11 + $0x6d8] sm:$0xff]
        %v1820 = vld [vmem:[#allocation11 + $0x6e0] sm:$0xff]
        %v1821 = vld [vmem:[#allocation11 + $0x6e8] sm:$0xff]
        %v1822 = vld [vmem:[#allocation11 + $0x6f0] sm:$0xff]
        %v1823 = vld [vmem:[#allocation11 + $0x6f8] sm:$0xff]
        %v1824 = vld [vmem:[#allocation11 + $0x700] sm:$0xff]
        %v1825 = vld [vmem:[#allocation11 + $0x708] sm:$0xff]
        %v1826 = vld [vmem:[#allocation11 + $0x710] sm:$0xff]
        %v1827 = vld [vmem:[#allocation11 + $0x718] sm:$0xff]
        %v1828 = vld [vmem:[#allocation11 + $0x720] sm:$0xff]
        %v1829 = vld [vmem:[#allocation11 + $0x728] sm:$0xff]
        %v1830 = vld [vmem:[#allocation11 + $0x730] sm:$0xff]
        %v1831 = vld [vmem:[#allocation11 + $0x738] sm:$0xff]
        %v1832 = vld [vmem:[#allocation11 + $0x740] sm:$0xff]
        %v1833 = vld [vmem:[#allocation11 + $0x748] sm:$0xff]
        %v1834 = vld [vmem:[#allocation11 + $0x750] sm:$0xff]
        %v1835 = vld [vmem:[#allocation11 + $0x758] sm:$0xff]
        %v1836 = vld [vmem:[#allocation11 + $0x760] sm:$0xff]
        %v1837 = vld [vmem:[#allocation11 + $0x768] sm:$0xff]
        %v1838 = vld [vmem:[#allocation11 + $0x770] sm:$0xff]
        %v1839 = vld [vmem:[#allocation11 + $0x778] sm:$0xff]
        %v1840 = vld [vmem:[#allocation11 + $0x780] sm:$0xff]
        %v1841 = vld [vmem:[#allocation11 + $0x788] sm:$0xff]
        %v1842 = vld [vmem:[#allocation11 + $0x790] sm:$0xff]
        %v1843 = vld [vmem:[#allocation11 + $0x798] sm:$0xff]
        %v1844 = vld [vmem:[#allocation11 + $0x7a0] sm:$0xff]
        %v1845 = vld [vmem:[#allocation11 + $0x7a8] sm:$0xff]
        %v1846 = vld [vmem:[#allocation11 + $0x7b0] sm:$0xff]
        %v1847 = vld [vmem:[#allocation11 + $0x7b8] sm:$0xff]
        %v1848 = vld [vmem:[#allocation11 + $0x7c0] sm:$0xff]
        %v1849 = vld [vmem:[#allocation11 + $0x7c8] sm:$0xff]
        %v1850 = vld [vmem:[#allocation11 + $0x7d0] sm:$0xff]
        %v1851 = vld [vmem:[#allocation11 + $0x7d8] sm:$0xff]
        %v1852 = vld [vmem:[#allocation11 + $0x7e0] sm:$0xff]
        %v1853 = vld [vmem:[#allocation11 + $0x7e8] sm:$0xff]
        %v1854 = vld [vmem:[#allocation11 + $0x7f0] sm:$0xff]
        %v1855 = vld [vmem:[#allocation11 + $0x7f8] sm:$0xff]
        %v2112 = vunpack.c.l.b16 %v1600
        %v2113 = vunpack.c.h.b16 %v1600
        %v2114 = vunpack.c.l.b16 %v1601
        %v2115 = vunpack.c.h.b16 %v1601
        %v2116 = vunpack.c.l.b16 %v1602
        %v2117 = vunpack.c.h.b16 %v1602
        %v2118 = vunpack.c.l.b16 %v1603
        %v2119 = vunpack.c.h.b16 %v1603
        %v2120 = vunpack.c.l.b16 %v1604
        %v2121 = vunpack.c.h.b16 %v1604
        %v2122 = vunpack.c.l.b16 %v1605
        %v2123 = vunpack.c.h.b16 %v1605
        %v2124 = vunpack.c.l.b16 %v1606
        %v2125 = vunpack.c.h.b16 %v1606
        %v2126 = vunpack.c.l.b16 %v1607
        %v2127 = vunpack.c.h.b16 %v1607
        %v2128 = vunpack.c.l.b16 %v1608
        %v2129 = vunpack.c.h.b16 %v1608
        %v2130 = vunpack.c.l.b16 %v1609
        %v2131 = vunpack.c.h.b16 %v1609
        %v2132 = vunpack.c.l.b16 %v1610
        %v2133 = vunpack.c.h.b16 %v1610
        %v2134 = vunpack.c.l.b16 %v1611
        %v2135 = vunpack.c.h.b16 %v1611
        %v2136 = vunpack.c.l.b16 %v1612
        %v2137 = vunpack.c.h.b16 %v1612
        %v2138 = vunpack.c.l.b16 %v1613
        %v2139 = vunpack.c.h.b16 %v1613
        %v2140 = vunpack.c.l.b16 %v1614
        %v2141 = vunpack.c.h.b16 %v1614
        %v2142 = vunpack.c.l.b16 %v1615
        %v2143 = vunpack.c.h.b16 %v1615
        %v2144 = vunpack.c.l.b16 %v1616
        %v2145 = vunpack.c.h.b16 %v1616
        %v2146 = vunpack.c.l.b16 %v1617
        %v2147 = vunpack.c.h.b16 %v1617
        %v2148 = vunpack.c.l.b16 %v1618
        %v2149 = vunpack.c.h.b16 %v1618
        %v2150 = vunpack.c.l.b16 %v1619
        %v2151 = vunpack.c.h.b16 %v1619
        %v2152 = vunpack.c.l.b16 %v1620
        %v2153 = vunpack.c.h.b16 %v1620
        %v2154 = vunpack.c.l.b16 %v1621
        %v2155 = vunpack.c.h.b16 %v1621
        %v2156 = vunpack.c.l.b16 %v1622
        %v2157 = vunpack.c.h.b16 %v1622
        %v2158 = vunpack.c.l.b16 %v1623
        %v2159 = vunpack.c.h.b16 %v1623
        %v2160 = vunpack.c.l.b16 %v1624
        %v2161 = vunpack.c.h.b16 %v1624
        %v2162 = vunpack.c.l.b16 %v1625
        %v2163 = vunpack.c.h.b16 %v1625
        %v2164 = vunpack.c.l.b16 %v1626
        %v2165 = vunpack.c.h.b16 %v1626
        %v2166 = vunpack.c.l.b16 %v1627
        %v2167 = vunpack.c.h.b16 %v1627
        %v2168 = vunpack.c.l.b16 %v1628
        %v2169 = vunpack.c.h.b16 %v1628
        %v2170 = vunpack.c.l.b16 %v1629
        %v2171 = vunpack.c.h.b16 %v1629
        %v2172 = vunpack.c.l.b16 %v1630
        %v2173 = vunpack.c.h.b16 %v1630
        %v2174 = vunpack.c.l.b16 %v1631
        %v2175 = vunpack.c.h.b16 %v1631
        %v2176 = vunpack.c.l.b16 %v1632
        %v2177 = vunpack.c.h.b16 %v1632
        %v2178 = vunpack.c.l.b16 %v1633
        %v2179 = vunpack.c.h.b16 %v1633
        %v2180 = vunpack.c.l.b16 %v1634
        %v2181 = vunpack.c.h.b16 %v1634
        %v2182 = vunpack.c.l.b16 %v1635
        %v2183 = vunpack.c.h.b16 %v1635
        %v2184 = vunpack.c.l.b16 %v1636
        %v2185 = vunpack.c.h.b16 %v1636
        %v2186 = vunpack.c.l.b16 %v1637
        %v2187 = vunpack.c.h.b16 %v1637
        %v2188 = vunpack.c.l.b16 %v1638
        %v2189 = vunpack.c.h.b16 %v1638
        %v2190 = vunpack.c.l.b16 %v1639
        %v2191 = vunpack.c.h.b16 %v1639
        %v2192 = vunpack.c.l.b16 %v1640
        %v2193 = vunpack.c.h.b16 %v1640
        %v2194 = vunpack.c.l.b16 %v1641
        %v2195 = vunpack.c.h.b16 %v1641
        %v2196 = vunpack.c.l.b16 %v1642
        %v2197 = vunpack.c.h.b16 %v1642
        %v2198 = vunpack.c.l.b16 %v1643
        %v2199 = vunpack.c.h.b16 %v1643
        %v2200 = vunpack.c.l.b16 %v1644
        %v2201 = vunpack.c.h.b16 %v1644
        %v2202 = vunpack.c.l.b16 %v1645
        %v2203 = vunpack.c.h.b16 %v1645
        %v2204 = vunpack.c.l.b16 %v1646
        %v2205 = vunpack.c.h.b16 %v1646
        %v2206 = vunpack.c.l.b16 %v1647
        %v2207 = vunpack.c.h.b16 %v1647
        %v2208 = vunpack.c.l.b16 %v1648
        %v2209 = vunpack.c.h.b16 %v1648
        %v2210 = vunpack.c.l.b16 %v1649
        %v2211 = vunpack.c.h.b16 %v1649
        %v2212 = vunpack.c.l.b16 %v1650
        %v2213 = vunpack.c.h.b16 %v1650
        %v2214 = vunpack.c.l.b16 %v1651
        %v2215 = vunpack.c.h.b16 %v1651
        %v2216 = vunpack.c.l.b16 %v1652
        %v2217 = vunpack.c.h.b16 %v1652
        %v2218 = vunpack.c.l.b16 %v1653
        %v2219 = vunpack.c.h.b16 %v1653
        %v2220 = vunpack.c.l.b16 %v1654
        %v2221 = vunpack.c.h.b16 %v1654
        %v2222 = vunpack.c.l.b16 %v1655
        %v2223 = vunpack.c.h.b16 %v1655
        %v2224 = vunpack.c.l.b16 %v1656
        %v2225 = vunpack.c.h.b16 %v1656
        %v2226 = vunpack.c.l.b16 %v1657
        %v2227 = vunpack.c.h.b16 %v1657
        %v2228 = vunpack.c.l.b16 %v1658
        %v2229 = vunpack.c.h.b16 %v1658
        %v2230 = vunpack.c.l.b16 %v1659
        %v2231 = vunpack.c.h.b16 %v1659
        %v2232 = vunpack.c.l.b16 %v1660
        %v2233 = vunpack.c.h.b16 %v1660
        %v2234 = vunpack.c.l.b16 %v1661
        %v2235 = vunpack.c.h.b16 %v1661
        %v2236 = vunpack.c.l.b16 %v1662
        %v2237 = vunpack.c.h.b16 %v1662
        %v2238 = vunpack.c.l.b16 %v1663
        %v2239 = vunpack.c.h.b16 %v1663
        %v2240 = vunpack.c.l.b16 %v1664
        %v2241 = vunpack.c.h.b16 %v1664
        %v2242 = vunpack.c.l.b16 %v1665
        %v2243 = vunpack.c.h.b16 %v1665
        %v2244 = vunpack.c.l.b16 %v1666
        %v2245 = vunpack.c.h.b16 %v1666
        %v2246 = vunpack.c.l.b16 %v1667
        %v2247 = vunpack.c.h.b16 %v1667
        %v2248 = vunpack.c.l.b16 %v1668
        %v2249 = vunpack.c.h.b16 %v1668
        %v2250 = vunpack.c.l.b16 %v1669
        %v2251 = vunpack.c.h.b16 %v1669
        %v2252 = vunpack.c.l.b16 %v1670
        %v2253 = vunpack.c.h.b16 %v1670
        %v2254 = vunpack.c.l.b16 %v1671
        %v2255 = vunpack.c.h.b16 %v1671
        %v2256 = vunpack.c.l.b16 %v1672
        %v2257 = vunpack.c.h.b16 %v1672
        %v2258 = vunpack.c.l.b16 %v1673
        %v2259 = vunpack.c.h.b16 %v1673
        %v2260 = vunpack.c.l.b16 %v1674
        %v2261 = vunpack.c.h.b16 %v1674
        %v2262 = vunpack.c.l.b16 %v1675
        %v2263 = vunpack.c.h.b16 %v1675
        %v2264 = vunpack.c.l.b16 %v1676
        %v2265 = vunpack.c.h.b16 %v1676
        %v2266 = vunpack.c.l.b16 %v1677
        %v2267 = vunpack.c.h.b16 %v1677
        %v2268 = vunpack.c.l.b16 %v1678
        %v2269 = vunpack.c.h.b16 %v1678
        %v2270 = vunpack.c.l.b16 %v1679
        %v2271 = vunpack.c.h.b16 %v1679
        %v2272 = vunpack.c.l.b16 %v1680
        %v2273 = vunpack.c.h.b16 %v1680
        %v2274 = vunpack.c.l.b16 %v1681
        %v2275 = vunpack.c.h.b16 %v1681
        %v2276 = vunpack.c.l.b16 %v1682
        %v2277 = vunpack.c.h.b16 %v1682
        %v2278 = vunpack.c.l.b16 %v1683
        %v2279 = vunpack.c.h.b16 %v1683
        %v2280 = vunpack.c.l.b16 %v1684
        %v2281 = vunpack.c.h.b16 %v1684
        %v2282 = vunpack.c.l.b16 %v1685
        %v2283 = vunpack.c.h.b16 %v1685
        %v2284 = vunpack.c.l.b16 %v1686
        %v2285 = vunpack.c.h.b16 %v1686
        %v2286 = vunpack.c.l.b16 %v1687
        %v2287 = vunpack.c.h.b16 %v1687
        %v2288 = vunpack.c.l.b16 %v1688
        %v2289 = vunpack.c.h.b16 %v1688
        %v2290 = vunpack.c.l.b16 %v1689
        %v2291 = vunpack.c.h.b16 %v1689
        %v2292 = vunpack.c.l.b16 %v1690
        %v2293 = vunpack.c.h.b16 %v1690
        %v2294 = vunpack.c.l.b16 %v1691
        %v2295 = vunpack.c.h.b16 %v1691
        %v2296 = vunpack.c.l.b16 %v1692
        %v2297 = vunpack.c.h.b16 %v1692
        %v2298 = vunpack.c.l.b16 %v1693
        %v2299 = vunpack.c.h.b16 %v1693
        %v2300 = vunpack.c.l.b16 %v1694
        %v2301 = vunpack.c.h.b16 %v1694
        %v2302 = vunpack.c.l.b16 %v1695
        %v2303 = vunpack.c.h.b16 %v1695
        %v2304 = vunpack.c.l.b16 %v1696
        %v2305 = vunpack.c.h.b16 %v1696
        %v2306 = vunpack.c.l.b16 %v1697
        %v2307 = vunpack.c.h.b16 %v1697
        %v2308 = vunpack.c.l.b16 %v1698
        %v2309 = vunpack.c.h.b16 %v1698
        %v2310 = vunpack.c.l.b16 %v1699
        %v2311 = vunpack.c.h.b16 %v1699
        %v2312 = vunpack.c.l.b16 %v1700
        %v2313 = vunpack.c.h.b16 %v1700
        %v2314 = vunpack.c.l.b16 %v1701
        %v2315 = vunpack.c.h.b16 %v1701
        %v2316 = vunpack.c.l.b16 %v1702
        %v2317 = vunpack.c.h.b16 %v1702
        %v2318 = vunpack.c.l.b16 %v1703
        %v2319 = vunpack.c.h.b16 %v1703
        %v2320 = vunpack.c.l.b16 %v1704
        %v2321 = vunpack.c.h.b16 %v1704
        %v2322 = vunpack.c.l.b16 %v1705
        %v2323 = vunpack.c.h.b16 %v1705
        %v2324 = vunpack.c.l.b16 %v1706
        %v2325 = vunpack.c.h.b16 %v1706
        %v2326 = vunpack.c.l.b16 %v1707
        %v2327 = vunpack.c.h.b16 %v1707
        %v2328 = vunpack.c.l.b16 %v1708
        %v2329 = vunpack.c.h.b16 %v1708
        %v2330 = vunpack.c.l.b16 %v1709
        %v2331 = vunpack.c.h.b16 %v1709
        %v2332 = vunpack.c.l.b16 %v1710
        %v2333 = vunpack.c.h.b16 %v1710
        %v2334 = vunpack.c.l.b16 %v1711
        %v2335 = vunpack.c.h.b16 %v1711
        %v2336 = vunpack.c.l.b16 %v1712
        %v2337 = vunpack.c.h.b16 %v1712
        %v2338 = vunpack.c.l.b16 %v1713
        %v2339 = vunpack.c.h.b16 %v1713
        %v2340 = vunpack.c.l.b16 %v1714
        %v2341 = vunpack.c.h.b16 %v1714
        %v2342 = vunpack.c.l.b16 %v1715
        %v2343 = vunpack.c.h.b16 %v1715
        %v2344 = vunpack.c.l.b16 %v1716
        %v2345 = vunpack.c.h.b16 %v1716
        %v2346 = vunpack.c.l.b16 %v1717
        %v2347 = vunpack.c.h.b16 %v1717
        %v2348 = vunpack.c.l.b16 %v1718
        %v2349 = vunpack.c.h.b16 %v1718
        %v2350 = vunpack.c.l.b16 %v1719
        %v2351 = vunpack.c.h.b16 %v1719
        %v2352 = vunpack.c.l.b16 %v1720
        %v2353 = vunpack.c.h.b16 %v1720
        %v2354 = vunpack.c.l.b16 %v1721
        %v2355 = vunpack.c.h.b16 %v1721
        %v2356 = vunpack.c.l.b16 %v1722
        %v2357 = vunpack.c.h.b16 %v1722
        %v2358 = vunpack.c.l.b16 %v1723
        %v2359 = vunpack.c.h.b16 %v1723
        %v2360 = vunpack.c.l.b16 %v1724
        %v2361 = vunpack.c.h.b16 %v1724
        %v2362 = vunpack.c.l.b16 %v1725
        %v2363 = vunpack.c.h.b16 %v1725
        %v2364 = vunpack.c.l.b16 %v1726
        %v2365 = vunpack.c.h.b16 %v1726
        %v2366 = vunpack.c.l.b16 %v1727
        %v2367 = vunpack.c.h.b16 %v1727
        %v2368 = vunpack.c.l.b16 %v1728
        %v2369 = vunpack.c.h.b16 %v1728
        %v2370 = vunpack.c.l.b16 %v1729
        %v2371 = vunpack.c.h.b16 %v1729
        %v2372 = vunpack.c.l.b16 %v1730
        %v2373 = vunpack.c.h.b16 %v1730
        %v2374 = vunpack.c.l.b16 %v1731
        %v2375 = vunpack.c.h.b16 %v1731
        %v2376 = vunpack.c.l.b16 %v1732
        %v2377 = vunpack.c.h.b16 %v1732
        %v2378 = vunpack.c.l.b16 %v1733
        %v2379 = vunpack.c.h.b16 %v1733
        %v2380 = vunpack.c.l.b16 %v1734
        %v2381 = vunpack.c.h.b16 %v1734
        %v2382 = vunpack.c.l.b16 %v1735
        %v2383 = vunpack.c.h.b16 %v1735
        %v2384 = vunpack.c.l.b16 %v1736
        %v2385 = vunpack.c.h.b16 %v1736
        %v2386 = vunpack.c.l.b16 %v1737
        %v2387 = vunpack.c.h.b16 %v1737
        %v2388 = vunpack.c.l.b16 %v1738
        %v2389 = vunpack.c.h.b16 %v1738
        %v2390 = vunpack.c.l.b16 %v1739
        %v2391 = vunpack.c.h.b16 %v1739
        %v2392 = vunpack.c.l.b16 %v1740
        %v2393 = vunpack.c.h.b16 %v1740
        %v2394 = vunpack.c.l.b16 %v1741
        %v2395 = vunpack.c.h.b16 %v1741
        %v2396 = vunpack.c.l.b16 %v1742
        %v2397 = vunpack.c.h.b16 %v1742
        %v2398 = vunpack.c.l.b16 %v1743
        %v2399 = vunpack.c.h.b16 %v1743
        %v2400 = vunpack.c.l.b16 %v1744
        %v2401 = vunpack.c.h.b16 %v1744
        %v2402 = vunpack.c.l.b16 %v1745
        %v2403 = vunpack.c.h.b16 %v1745
        %v2404 = vunpack.c.l.b16 %v1746
        %v2405 = vunpack.c.h.b16 %v1746
        %v2406 = vunpack.c.l.b16 %v1747
        %v2407 = vunpack.c.h.b16 %v1747
        %v2408 = vunpack.c.l.b16 %v1748
        %v2409 = vunpack.c.h.b16 %v1748
        %v2410 = vunpack.c.l.b16 %v1749
        %v2411 = vunpack.c.h.b16 %v1749
        %v2412 = vunpack.c.l.b16 %v1750
        %v2413 = vunpack.c.h.b16 %v1750
        %v2414 = vunpack.c.l.b16 %v1751
        %v2415 = vunpack.c.h.b16 %v1751
        %v2416 = vunpack.c.l.b16 %v1752
        %v2417 = vunpack.c.h.b16 %v1752
        %v2418 = vunpack.c.l.b16 %v1753
        %v2419 = vunpack.c.h.b16 %v1753
        %v2420 = vunpack.c.l.b16 %v1754
        %v2421 = vunpack.c.h.b16 %v1754
        %v2422 = vunpack.c.l.b16 %v1755
        %v2423 = vunpack.c.h.b16 %v1755
        %v2424 = vunpack.c.l.b16 %v1756
        %v2425 = vunpack.c.h.b16 %v1756
        %v2426 = vunpack.c.l.b16 %v1757
        %v2427 = vunpack.c.h.b16 %v1757
        %v2428 = vunpack.c.l.b16 %v1758
        %v2429 = vunpack.c.h.b16 %v1758
        %v2430 = vunpack.c.l.b16 %v1759
        %v2431 = vunpack.c.h.b16 %v1759
        %v2432 = vunpack.c.l.b16 %v1760
        %v2433 = vunpack.c.h.b16 %v1760
        %v2434 = vunpack.c.l.b16 %v1761
        %v2435 = vunpack.c.h.b16 %v1761
        %v2436 = vunpack.c.l.b16 %v1762
        %v2437 = vunpack.c.h.b16 %v1762
        %v2438 = vunpack.c.l.b16 %v1763
        %v2439 = vunpack.c.h.b16 %v1763
        %v2440 = vunpack.c.l.b16 %v1764
        %v2441 = vunpack.c.h.b16 %v1764
        %v2442 = vunpack.c.l.b16 %v1765
        %v2443 = vunpack.c.h.b16 %v1765
        %v2444 = vunpack.c.l.b16 %v1766
        %v2445 = vunpack.c.h.b16 %v1766
        %v2446 = vunpack.c.l.b16 %v1767
        %v2447 = vunpack.c.h.b16 %v1767
        %v2448 = vunpack.c.l.b16 %v1768
        %v2449 = vunpack.c.h.b16 %v1768
        %v2450 = vunpack.c.l.b16 %v1769
        %v2451 = vunpack.c.h.b16 %v1769
        %v2452 = vunpack.c.l.b16 %v1770
        %v2453 = vunpack.c.h.b16 %v1770
        %v2454 = vunpack.c.l.b16 %v1771
        %v2455 = vunpack.c.h.b16 %v1771
        %v2456 = vunpack.c.l.b16 %v1772
        %v2457 = vunpack.c.h.b16 %v1772
        %v2458 = vunpack.c.l.b16 %v1773
        %v2459 = vunpack.c.h.b16 %v1773
        %v2460 = vunpack.c.l.b16 %v1774
        %v2461 = vunpack.c.h.b16 %v1774
        %v2462 = vunpack.c.l.b16 %v1775
        %v2463 = vunpack.c.h.b16 %v1775
        %v2464 = vunpack.c.l.b16 %v1776
        %v2465 = vunpack.c.h.b16 %v1776
        %v2466 = vunpack.c.l.b16 %v1777
        %v2467 = vunpack.c.h.b16 %v1777
        %v2468 = vunpack.c.l.b16 %v1778
        %v2469 = vunpack.c.h.b16 %v1778
        %v2470 = vunpack.c.l.b16 %v1779
        %v2471 = vunpack.c.h.b16 %v1779
        %v2472 = vunpack.c.l.b16 %v1780
        %v2473 = vunpack.c.h.b16 %v1780
        %v2474 = vunpack.c.l.b16 %v1781
        %v2475 = vunpack.c.h.b16 %v1781
        %v2476 = vunpack.c.l.b16 %v1782
        %v2477 = vunpack.c.h.b16 %v1782
        %v2478 = vunpack.c.l.b16 %v1783
        %v2479 = vunpack.c.h.b16 %v1783
        %v2480 = vunpack.c.l.b16 %v1784
        %v2481 = vunpack.c.h.b16 %v1784
        %v2482 = vunpack.c.l.b16 %v1785
        %v2483 = vunpack.c.h.b16 %v1785
        %v2484 = vunpack.c.l.b16 %v1786
        %v2485 = vunpack.c.h.b16 %v1786
        %v2486 = vunpack.c.l.b16 %v1787
        %v2487 = vunpack.c.h.b16 %v1787
        %v2488 = vunpack.c.l.b16 %v1788
        %v2489 = vunpack.c.h.b16 %v1788
        %v2490 = vunpack.c.l.b16 %v1789
        %v2491 = vunpack.c.h.b16 %v1789
        %v2492 = vunpack.c.l.b16 %v1790
        %v2493 = vunpack.c.h.b16 %v1790
        %v2494 = vunpack.c.l.b16 %v1791
        %v2495 = vunpack.c.h.b16 %v1791
        %v2496 = vunpack.c.l.b16 %v1792
        %v2497 = vunpack.c.h.b16 %v1792
        %v2498 = vunpack.c.l.b16 %v1793
        %v2499 = vunpack.c.h.b16 %v1793
        %v2500 = vunpack.c.l.b16 %v1794
        %v2501 = vunpack.c.h.b16 %v1794
        %v2502 = vunpack.c.l.b16 %v1795
        %v2503 = vunpack.c.h.b16 %v1795
        %v2504 = vunpack.c.l.b16 %v1796
        %v2505 = vunpack.c.h.b16 %v1796
        %v2506 = vunpack.c.l.b16 %v1797
        %v2507 = vunpack.c.h.b16 %v1797
        %v2508 = vunpack.c.l.b16 %v1798
        %v2509 = vunpack.c.h.b16 %v1798
        %v2510 = vunpack.c.l.b16 %v1799
        %v2511 = vunpack.c.h.b16 %v1799
        %v2512 = vunpack.c.l.b16 %v1800
        %v2513 = vunpack.c.h.b16 %v1800
        %v2514 = vunpack.c.l.b16 %v1801
        %v2515 = vunpack.c.h.b16 %v1801
        %v2516 = vunpack.c.l.b16 %v1802
        %v2517 = vunpack.c.h.b16 %v1802
        %v2518 = vunpack.c.l.b16 %v1803
        %v2519 = vunpack.c.h.b16 %v1803
        %v2520 = vunpack.c.l.b16 %v1804
        %v2521 = vunpack.c.h.b16 %v1804
        %v2522 = vunpack.c.l.b16 %v1805
        %v2523 = vunpack.c.h.b16 %v1805
        %v2524 = vunpack.c.l.b16 %v1806
        %v2525 = vunpack.c.h.b16 %v1806
        %v2526 = vunpack.c.l.b16 %v1807
        %v2527 = vunpack.c.h.b16 %v1807
        %v2528 = vunpack.c.l.b16 %v1808
        %v2529 = vunpack.c.h.b16 %v1808
        %v2530 = vunpack.c.l.b16 %v1809
        %v2531 = vunpack.c.h.b16 %v1809
        %v2532 = vunpack.c.l.b16 %v1810
        %v2533 = vunpack.c.h.b16 %v1810
        %v2534 = vunpack.c.l.b16 %v1811
        %v2535 = vunpack.c.h.b16 %v1811
        %v2536 = vunpack.c.l.b16 %v1812
        %v2537 = vunpack.c.h.b16 %v1812
        %v2538 = vunpack.c.l.b16 %v1813
        %v2539 = vunpack.c.h.b16 %v1813
        %v2540 = vunpack.c.l.b16 %v1814
        %v2541 = vunpack.c.h.b16 %v1814
        %v2542 = vunpack.c.l.b16 %v1815
        %v2543 = vunpack.c.h.b16 %v1815
        %v2544 = vunpack.c.l.b16 %v1816
        %v2545 = vunpack.c.h.b16 %v1816
        %v2546 = vunpack.c.l.b16 %v1817
        %v2547 = vunpack.c.h.b16 %v1817
        %v2548 = vunpack.c.l.b16 %v1818
        %v2549 = vunpack.c.h.b16 %v1818
        %v2550 = vunpack.c.l.b16 %v1819
        %v2551 = vunpack.c.h.b16 %v1819
        %v2552 = vunpack.c.l.b16 %v1820
        %v2553 = vunpack.c.h.b16 %v1820
        %v2554 = vunpack.c.l.b16 %v1821
        %v2555 = vunpack.c.h.b16 %v1821
        %v2556 = vunpack.c.l.b16 %v1822
        %v2557 = vunpack.c.h.b16 %v1822
        %v2558 = vunpack.c.l.b16 %v1823
        %v2559 = vunpack.c.h.b16 %v1823
        %v2560 = vunpack.c.l.b16 %v1824
        %v2561 = vunpack.c.h.b16 %v1824
        %v2562 = vunpack.c.l.b16 %v1825
        %v2563 = vunpack.c.h.b16 %v1825
        %v2564 = vunpack.c.l.b16 %v1826
        %v2565 = vunpack.c.h.b16 %v1826
        %v2566 = vunpack.c.l.b16 %v1827
        %v2567 = vunpack.c.h.b16 %v1827
        %v2568 = vunpack.c.l.b16 %v1828
        %v2569 = vunpack.c.h.b16 %v1828
        %v2570 = vunpack.c.l.b16 %v1829
        %v2571 = vunpack.c.h.b16 %v1829
        %v2572 = vunpack.c.l.b16 %v1830
        %v2573 = vunpack.c.h.b16 %v1830
        %v2574 = vunpack.c.l.b16 %v1831
        %v2575 = vunpack.c.h.b16 %v1831
        %v2576 = vunpack.c.l.b16 %v1832
        %v2577 = vunpack.c.h.b16 %v1832
        %v2578 = vunpack.c.l.b16 %v1833
        %v2579 = vunpack.c.h.b16 %v1833
        %v2580 = vunpack.c.l.b16 %v1834
        %v2581 = vunpack.c.h.b16 %v1834
        %v2582 = vunpack.c.l.b16 %v1835
        %v2583 = vunpack.c.h.b16 %v1835
        %v2584 = vunpack.c.l.b16 %v1836
        %v2585 = vunpack.c.h.b16 %v1836
        %v2586 = vunpack.c.l.b16 %v1837
        %v2587 = vunpack.c.h.b16 %v1837
        %v2588 = vunpack.c.l.b16 %v1838
        %v2589 = vunpack.c.h.b16 %v1838
        %v2590 = vunpack.c.l.b16 %v1839
        %v2591 = vunpack.c.h.b16 %v1839
        %v2592 = vunpack.c.l.b16 %v1840
        %v2593 = vunpack.c.h.b16 %v1840
        %v2594 = vunpack.c.l.b16 %v1841
        %v2595 = vunpack.c.h.b16 %v1841
        %v2596 = vunpack.c.l.b16 %v1842
        %v2597 = vunpack.c.h.b16 %v1842
        %v2598 = vunpack.c.l.b16 %v1843
        %v2599 = vunpack.c.h.b16 %v1843
        %v2600 = vunpack.c.l.b16 %v1844
        %v2601 = vunpack.c.h.b16 %v1844
        %v2602 = vunpack.c.l.b16 %v1845
        %v2603 = vunpack.c.h.b16 %v1845
        %v2604 = vunpack.c.l.b16 %v1846
        %v2605 = vunpack.c.h.b16 %v1846
        %v2606 = vunpack.c.l.b16 %v1847
        %v2607 = vunpack.c.h.b16 %v1847
        %v2608 = vunpack.c.l.b16 %v1848
        %v2609 = vunpack.c.h.b16 %v1848
        %v2610 = vunpack.c.l.b16 %v1849
        %v2611 = vunpack.c.h.b16 %v1849
        %v2612 = vunpack.c.l.b16 %v1850
        %v2613 = vunpack.c.h.b16 %v1850
        %v2614 = vunpack.c.l.b16 %v1851
        %v2615 = vunpack.c.h.b16 %v1851
        %v2616 = vunpack.c.l.b16 %v1852
        %v2617 = vunpack.c.h.b16 %v1852
        %v2618 = vunpack.c.l.b16 %v1853
        %v2619 = vunpack.c.h.b16 %v1853
        %v2620 = vunpack.c.l.b16 %v1854
        %v2621 = vunpack.c.h.b16 %v1854
        %v2622 = vunpack.c.l.b16 %v1855
        %v2623 = vunpack.c.h.b16 %v1855
        %v2624 = vpack.c.b16 %v2116, %v2112
        %v2625 = vpack.c.b16 %v2117, %v2113
        %v2626 = vpack.c.b16 %v2118, %v2114
        %v2627 = vpack.c.b16 %v2119, %v2115
        %v2628 = vpack.c.b16 %v2124, %v2120
        %v2629 = vpack.c.b16 %v2125, %v2121
        %v2630 = vpack.c.b16 %v2126, %v2122
        %v2631 = vpack.c.b16 %v2127, %v2123
        %v2632 = vpack.c.b16 %v2132, %v2128
        %v2633 = vpack.c.b16 %v2133, %v2129
        %v2634 = vpack.c.b16 %v2134, %v2130
        %v2635 = vpack.c.b16 %v2135, %v2131
        %v2636 = vpack.c.b16 %v2140, %v2136
        %v2637 = vpack.c.b16 %v2141, %v2137
        %v2638 = vpack.c.b16 %v2142, %v2138
        %v2639 = vpack.c.b16 %v2143, %v2139
        %v2640 = vpack.c.b16 %v2148, %v2144
        %v2641 = vpack.c.b16 %v2149, %v2145
        %v2642 = vpack.c.b16 %v2150, %v2146
        %v2643 = vpack.c.b16 %v2151, %v2147
        %v2644 = vpack.c.b16 %v2156, %v2152
        %v2645 = vpack.c.b16 %v2157, %v2153
        %v2646 = vpack.c.b16 %v2158, %v2154
        %v2647 = vpack.c.b16 %v2159, %v2155
        %v2648 = vpack.c.b16 %v2164, %v2160
        %v2649 = vpack.c.b16 %v2165, %v2161
        %v2650 = vpack.c.b16 %v2166, %v2162
        %v2651 = vpack.c.b16 %v2167, %v2163
        %v2652 = vpack.c.b16 %v2172, %v2168
        %v2653 = vpack.c.b16 %v2173, %v2169
        %v2654 = vpack.c.b16 %v2174, %v2170
        %v2655 = vpack.c.b16 %v2175, %v2171
        %v2656 = vpack.c.b16 %v2180, %v2176
        %v2657 = vpack.c.b16 %v2181, %v2177
        %v2658 = vpack.c.b16 %v2182, %v2178
        %v2659 = vpack.c.b16 %v2183, %v2179
        %v2660 = vpack.c.b16 %v2188, %v2184
        %v2661 = vpack.c.b16 %v2189, %v2185
        %v2662 = vpack.c.b16 %v2190, %v2186
        %v2663 = vpack.c.b16 %v2191, %v2187
        %v2664 = vpack.c.b16 %v2196, %v2192
        %v2665 = vpack.c.b16 %v2197, %v2193
        %v2666 = vpack.c.b16 %v2198, %v2194
        %v2667 = vpack.c.b16 %v2199, %v2195
        %v2668 = vpack.c.b16 %v2204, %v2200
        %v2669 = vpack.c.b16 %v2205, %v2201
        %v2670 = vpack.c.b16 %v2206, %v2202
        %v2671 = vpack.c.b16 %v2207, %v2203
        %v2672 = vpack.c.b16 %v2212, %v2208
        %v2673 = vpack.c.b16 %v2213, %v2209
        %v2674 = vpack.c.b16 %v2214, %v2210
        %v2675 = vpack.c.b16 %v2215, %v2211
        %v2676 = vpack.c.b16 %v2220, %v2216
        %v2677 = vpack.c.b16 %v2221, %v2217
        %v2678 = vpack.c.b16 %v2222, %v2218
        %v2679 = vpack.c.b16 %v2223, %v2219
        %v2680 = vpack.c.b16 %v2228, %v2224
        %v2681 = vpack.c.b16 %v2229, %v2225
        %v2682 = vpack.c.b16 %v2230, %v2226
        %v2683 = vpack.c.b16 %v2231, %v2227
        %v2684 = vpack.c.b16 %v2236, %v2232
        %v2685 = vpack.c.b16 %v2237, %v2233
        %v2686 = vpack.c.b16 %v2238, %v2234
        %v2687 = vpack.c.b16 %v2239, %v2235
        %v2688 = vpack.c.b16 %v2244, %v2240
        %v2689 = vpack.c.b16 %v2245, %v2241
        %v2690 = vpack.c.b16 %v2246, %v2242
        %v2691 = vpack.c.b16 %v2247, %v2243
        %v2692 = vpack.c.b16 %v2252, %v2248
        %v2693 = vpack.c.b16 %v2253, %v2249
        %v2694 = vpack.c.b16 %v2254, %v2250
        %v2695 = vpack.c.b16 %v2255, %v2251
        %v2696 = vpack.c.b16 %v2260, %v2256
        %v2697 = vpack.c.b16 %v2261, %v2257
        %v2698 = vpack.c.b16 %v2262, %v2258
        %v2699 = vpack.c.b16 %v2263, %v2259
        %v2700 = vpack.c.b16 %v2268, %v2264
        %v2701 = vpack.c.b16 %v2269, %v2265
        %v2702 = vpack.c.b16 %v2270, %v2266
        %v2703 = vpack.c.b16 %v2271, %v2267
        %v2704 = vpack.c.b16 %v2276, %v2272
        %v2705 = vpack.c.b16 %v2277, %v2273
        %v2706 = vpack.c.b16 %v2278, %v2274
        %v2707 = vpack.c.b16 %v2279, %v2275
        %v2708 = vpack.c.b16 %v2284, %v2280
        %v2709 = vpack.c.b16 %v2285, %v2281
        %v2710 = vpack.c.b16 %v2286, %v2282
        %v2711 = vpack.c.b16 %v2287, %v2283
        %v2712 = vpack.c.b16 %v2292, %v2288
        %v2713 = vpack.c.b16 %v2293, %v2289
        %v2714 = vpack.c.b16 %v2294, %v2290
        %v2715 = vpack.c.b16 %v2295, %v2291
        %v2716 = vpack.c.b16 %v2300, %v2296
        %v2717 = vpack.c.b16 %v2301, %v2297
        %v2718 = vpack.c.b16 %v2302, %v2298
        %v2719 = vpack.c.b16 %v2303, %v2299
        %v2720 = vpack.c.b16 %v2308, %v2304
        %v2721 = vpack.c.b16 %v2309, %v2305
        %v2722 = vpack.c.b16 %v2310, %v2306
        %v2723 = vpack.c.b16 %v2311, %v2307
        %v2724 = vpack.c.b16 %v2316, %v2312
        %v2725 = vpack.c.b16 %v2317, %v2313
        %v2726 = vpack.c.b16 %v2318, %v2314
        %v2727 = vpack.c.b16 %v2319, %v2315
        %v2728 = vpack.c.b16 %v2324, %v2320
        %v2729 = vpack.c.b16 %v2325, %v2321
        %v2730 = vpack.c.b16 %v2326, %v2322
        %v2731 = vpack.c.b16 %v2327, %v2323
        %v2732 = vpack.c.b16 %v2332, %v2328
        %v2733 = vpack.c.b16 %v2333, %v2329
        %v2734 = vpack.c.b16 %v2334, %v2330
        %v2735 = vpack.c.b16 %v2335, %v2331
        %v2736 = vpack.c.b16 %v2340, %v2336
        %v2737 = vpack.c.b16 %v2341, %v2337
        %v2738 = vpack.c.b16 %v2342, %v2338
        %v2739 = vpack.c.b16 %v2343, %v2339
        %v2740 = vpack.c.b16 %v2348, %v2344
        %v2741 = vpack.c.b16 %v2349, %v2345
        %v2742 = vpack.c.b16 %v2350, %v2346
        %v2743 = vpack.c.b16 %v2351, %v2347
        %v2744 = vpack.c.b16 %v2356, %v2352
        %v2745 = vpack.c.b16 %v2357, %v2353
        %v2746 = vpack.c.b16 %v2358, %v2354
        %v2747 = vpack.c.b16 %v2359, %v2355
        %v2748 = vpack.c.b16 %v2364, %v2360
        %v2749 = vpack.c.b16 %v2365, %v2361
        %v2750 = vpack.c.b16 %v2366, %v2362
        %v2751 = vpack.c.b16 %v2367, %v2363
        %v2752 = vpack.c.b16 %v2372, %v2368
        %v2753 = vpack.c.b16 %v2373, %v2369
        %v2754 = vpack.c.b16 %v2374, %v2370
        %v2755 = vpack.c.b16 %v2375, %v2371
        %v2756 = vpack.c.b16 %v2380, %v2376
        %v2757 = vpack.c.b16 %v2381, %v2377
        %v2758 = vpack.c.b16 %v2382, %v2378
        %v2759 = vpack.c.b16 %v2383, %v2379
        %v2760 = vpack.c.b16 %v2388, %v2384
        %v2761 = vpack.c.b16 %v2389, %v2385
        %v2762 = vpack.c.b16 %v2390, %v2386
        %v2763 = vpack.c.b16 %v2391, %v2387
        %v2764 = vpack.c.b16 %v2396, %v2392
        %v2765 = vpack.c.b16 %v2397, %v2393
        %v2766 = vpack.c.b16 %v2398, %v2394
        %v2767 = vpack.c.b16 %v2399, %v2395
        %v2768 = vpack.c.b16 %v2404, %v2400
        %v2769 = vpack.c.b16 %v2405, %v2401
        %v2770 = vpack.c.b16 %v2406, %v2402
        %v2771 = vpack.c.b16 %v2407, %v2403
        %v2772 = vpack.c.b16 %v2412, %v2408
        %v2773 = vpack.c.b16 %v2413, %v2409
        %v2774 = vpack.c.b16 %v2414, %v2410
        %v2775 = vpack.c.b16 %v2415, %v2411
        %v2776 = vpack.c.b16 %v2420, %v2416
        %v2777 = vpack.c.b16 %v2421, %v2417
        %v2778 = vpack.c.b16 %v2422, %v2418
        %v2779 = vpack.c.b16 %v2423, %v2419
        %v2780 = vpack.c.b16 %v2428, %v2424
        %v2781 = vpack.c.b16 %v2429, %v2425
        %v2782 = vpack.c.b16 %v2430, %v2426
        %v2783 = vpack.c.b16 %v2431, %v2427
        %v2784 = vpack.c.b16 %v2436, %v2432
        %v2785 = vpack.c.b16 %v2437, %v2433
        %v2786 = vpack.c.b16 %v2438, %v2434
        %v2787 = vpack.c.b16 %v2439, %v2435
        %v2788 = vpack.c.b16 %v2444, %v2440
        %v2789 = vpack.c.b16 %v2445, %v2441
        %v2790 = vpack.c.b16 %v2446, %v2442
        %v2791 = vpack.c.b16 %v2447, %v2443
        %v2792 = vpack.c.b16 %v2452, %v2448
        %v2793 = vpack.c.b16 %v2453, %v2449
        %v2794 = vpack.c.b16 %v2454, %v2450
        %v2795 = vpack.c.b16 %v2455, %v2451
        %v2796 = vpack.c.b16 %v2460, %v2456
        %v2797 = vpack.c.b16 %v2461, %v2457
        %v2798 = vpack.c.b16 %v2462, %v2458
        %v2799 = vpack.c.b16 %v2463, %v2459
        %v2800 = vpack.c.b16 %v2468, %v2464
        %v2801 = vpack.c.b16 %v2469, %v2465
        %v2802 = vpack.c.b16 %v2470, %v2466
        %v2803 = vpack.c.b16 %v2471, %v2467
        %v2804 = vpack.c.b16 %v2476, %v2472
        %v2805 = vpack.c.b16 %v2477, %v2473
        %v2806 = vpack.c.b16 %v2478, %v2474
        %v2807 = vpack.c.b16 %v2479, %v2475
        %v2808 = vpack.c.b16 %v2484, %v2480
        %v2809 = vpack.c.b16 %v2485, %v2481
        %v2810 = vpack.c.b16 %v2486, %v2482
        %v2811 = vpack.c.b16 %v2487, %v2483
        %v2812 = vpack.c.b16 %v2492, %v2488
        %v2813 = vpack.c.b16 %v2493, %v2489
        %v2814 = vpack.c.b16 %v2494, %v2490
        %v2815 = vpack.c.b16 %v2495, %v2491
        %v2816 = vpack.c.b16 %v2500, %v2496
        %v2817 = vpack.c.b16 %v2501, %v2497
        %v2818 = vpack.c.b16 %v2502, %v2498
        %v2819 = vpack.c.b16 %v2503, %v2499
        %v2820 = vpack.c.b16 %v2508, %v2504
        %v2821 = vpack.c.b16 %v2509, %v2505
        %v2822 = vpack.c.b16 %v2510, %v2506
        %v2823 = vpack.c.b16 %v2511, %v2507
        %v2824 = vpack.c.b16 %v2516, %v2512
        %v2825 = vpack.c.b16 %v2517, %v2513
        %v2826 = vpack.c.b16 %v2518, %v2514
        %v2827 = vpack.c.b16 %v2519, %v2515
        %v2828 = vpack.c.b16 %v2524, %v2520
        %v2829 = vpack.c.b16 %v2525, %v2521
        %v2830 = vpack.c.b16 %v2526, %v2522
        %v2831 = vpack.c.b16 %v2527, %v2523
        %v2832 = vpack.c.b16 %v2532, %v2528
        %v2833 = vpack.c.b16 %v2533, %v2529
        %v2834 = vpack.c.b16 %v2534, %v2530
        %v2835 = vpack.c.b16 %v2535, %v2531
        %v2836 = vpack.c.b16 %v2540, %v2536
        %v2837 = vpack.c.b16 %v2541, %v2537
        %v2838 = vpack.c.b16 %v2542, %v2538
        %v2839 = vpack.c.b16 %v2543, %v2539
        %v2840 = vpack.c.b16 %v2548, %v2544
        %v2841 = vpack.c.b16 %v2549, %v2545
        %v2842 = vpack.c.b16 %v2550, %v2546
        %v2843 = vpack.c.b16 %v2551, %v2547
        %v2844 = vpack.c.b16 %v2556, %v2552
        %v2845 = vpack.c.b16 %v2557, %v2553
        %v2846 = vpack.c.b16 %v2558, %v2554
        %v2847 = vpack.c.b16 %v2559, %v2555
        %v2848 = vpack.c.b16 %v2564, %v2560
        %v2849 = vpack.c.b16 %v2565, %v2561
        %v2850 = vpack.c.b16 %v2566, %v2562
        %v2851 = vpack.c.b16 %v2567, %v2563
        %v2852 = vpack.c.b16 %v2572, %v2568
        %v2853 = vpack.c.b16 %v2573, %v2569
        %v2854 = vpack.c.b16 %v2574, %v2570
        %v2855 = vpack.c.b16 %v2575, %v2571
        %v2856 = vpack.c.b16 %v2580, %v2576
        %v2857 = vpack.c.b16 %v2581, %v2577
        %v2858 = vpack.c.b16 %v2582, %v2578
        %v2859 = vpack.c.b16 %v2583, %v2579
        %v2860 = vpack.c.b16 %v2588, %v2584
        %v2861 = vpack.c.b16 %v2589, %v2585
        %v2862 = vpack.c.b16 %v2590, %v2586
        %v2863 = vpack.c.b16 %v2591, %v2587
        %v2864 = vpack.c.b16 %v2596, %v2592
        %v2865 = vpack.c.b16 %v2597, %v2593
        %v2866 = vpack.c.b16 %v2598, %v2594
        %v2867 = vpack.c.b16 %v2599, %v2595
        %v2868 = vpack.c.b16 %v2604, %v2600
        %v2869 = vpack.c.b16 %v2605, %v2601
        %v2870 = vpack.c.b16 %v2606, %v2602
        %v2871 = vpack.c.b16 %v2607, %v2603
        %v2872 = vpack.c.b16 %v2612, %v2608
        %v2873 = vpack.c.b16 %v2613, %v2609
        %v2874 = vpack.c.b16 %v2614, %v2610
        %v2875 = vpack.c.b16 %v2615, %v2611
        %v2876 = vpack.c.b16 %v2620, %v2616
        %v2877 = vpack.c.b16 %v2621, %v2617
        %v2878 = vpack.c.b16 %v2622, %v2618
        %v2879 = vpack.c.b16 %v2623, %v2619
        %3136 = vmatpush.bf16.msra.mxu0 %v2652
        %3137 = vmatpush.bf16.msra.mxu0 %v2648
        %3138 = vmatpush.bf16.msra.mxu0 %v2644
        %3139 = vmatpush.bf16.msra.mxu0 %v2640
        %3140 = vmatpush.bf16.msra.mxu0 %v2636
        %3141 = vmatpush.bf16.msra.mxu0 %v2632
        %3142 = vmatpush.bf16.msra.mxu0 %v2628
        %3143 = vmatpush.bf16.msra.mxu0 %v2624
        %3144 = vmatmul.bf16.gmra.mxu0 %v1592
        %v3145 = vpop.f32.mrf.mxu0
        %v3146 = vadd.f32 0.0, %v3145
        %v3147 = vpop.f32.mrf.mxu0
        %v3148 = vadd.f32 0.0, %v3147
        %3149 = vdwg.mxu0
        %3150 = vmatpush.bf16.msra.mxu0 %v2684
        %3151 = vmatpush.bf16.msra.mxu0 %v2680
        %3152 = vmatpush.bf16.msra.mxu0 %v2676
        %3153 = vmatpush.bf16.msra.mxu0 %v2672
        %3154 = vmatpush.bf16.msra.mxu0 %v2668
        %3155 = vmatpush.bf16.msra.mxu0 %v2664
        %3156 = vmatpush.bf16.msra.mxu0 %v2660
        %3157 = vmatpush.bf16.msra.mxu0 %v2656
        %3158 = vmatmul.bf16.gmra.mxu0 %v1593
        %v3159 = vpop.f32.mrf.mxu0
        %v3160 = vadd.f32 %v3146, %v3159
        %v3161 = vpop.f32.mrf.mxu0
        %v3162 = vadd.f32 %v3148, %v3161
        %3163 = vdwg.mxu0
        %3164 = vmatpush.bf16.msra.mxu0 %v2716
        %3165 = vmatpush.bf16.msra.mxu0 %v2712
        %3166 = vmatpush.bf16.msra.mxu0 %v2708
        %3167 = vmatpush.bf16.msra.mxu0 %v2704
        %3168 = vmatpush.bf16.msra.mxu0 %v2700
        %3169 = vmatpush.bf16.msra.mxu0 %v2696
        %3170 = vmatpush.bf16.msra.mxu0 %v2692
        %3171 = vmatpush.bf16.msra.mxu0 %v2688
        %3172 = vmatmul.bf16.gmra.mxu0 %v1594
        %v3173 = vpop.f32.mrf.mxu0
        %v3174 = vadd.f32 %v3160, %v3173
        %v3175 = vpop.f32.mrf.mxu0
        %v3176 = vadd.f32 %v3162, %v3175
        %3177 = vdwg.mxu0
        %3178 = vmatpush.bf16.msra.mxu0 %v2748
        %3179 = vmatpush.bf16.msra.mxu0 %v2744
        %3180 = vmatpush.bf16.msra.mxu0 %v2740
        %3181 = vmatpush.bf16.msra.mxu0 %v2736
        %3182 = vmatpush.bf16.msra.mxu0 %v2732
        %3183 = vmatpush.bf16.msra.mxu0 %v2728
        %3184 = vmatpush.bf16.msra.mxu0 %v2724
        %3185 = vmatpush.bf16.msra.mxu0 %v2720
        %3186 = vmatmul.bf16.gmra.mxu0 %v1595
        %v3187 = vpop.f32.mrf.mxu0
        %v3188 = vadd.f32 %v3174, %v3187
        %v3189 = vpop.f32.mrf.mxu0
        %v3190 = vadd.f32 %v3176, %v3189
        %3191 = vdwg.mxu0
        %3192 = vmatpush.bf16.msra.mxu0 %v2780
        %3193 = vmatpush.bf16.msra.mxu0 %v2776
        %3194 = vmatpush.bf16.msra.mxu0 %v2772
        %3195 = vmatpush.bf16.msra.mxu0 %v2768
        %3196 = vmatpush.bf16.msra.mxu0 %v2764
        %3197 = vmatpush.bf16.msra.mxu0 %v2760
        %3198 = vmatpush.bf16.msra.mxu0 %v2756
        %3199 = vmatpush.bf16.msra.mxu0 %v2752
        %3200 = vmatmul.bf16.gmra.mxu0 %v1596
        %v3201 = vpop.f32.mrf.mxu0
        %v3202 = vadd.f32 %v3188, %v3201
        %v3203 = vpop.f32.mrf.mxu0
        %v3204 = vadd.f32 %v3190, %v3203
        %3205 = vdwg.mxu0
        %3206 = vmatpush.bf16.msra.mxu0 %v2812
        %3207 = vmatpush.bf16.msra.mxu0 %v2808
        %3208 = vmatpush.bf16.msra.mxu0 %v2804
        %3209 = vmatpush.bf16.msra.mxu0 %v2800
        %3210 = vmatpush.bf16.msra.mxu0 %v2796
        %3211 = vmatpush.bf16.msra.mxu0 %v2792
        %3212 = vmatpush.bf16.msra.mxu0 %v2788
        %3213 = vmatpush.bf16.msra.mxu0 %v2784
        %3214 = vmatmul.bf16.gmra.mxu0 %v1597
        %v3215 = vpop.f32.mrf.mxu0
        %v3216 = vadd.f32 %v3202, %v3215
        %v3217 = vpop.f32.mrf.mxu0
        %v3218 = vadd.f32 %v3204, %v3217
        %3219 = vdwg.mxu0
        %3220 = vmatpush.bf16.msra.mxu0 %v2844
        %3221 = vmatpush.bf16.msra.mxu0 %v2840
        %3222 = vmatpush.bf16.msra.mxu0 %v2836
        %3223 = vmatpush.bf16.msra.mxu0 %v2832
        %3224 = vmatpush.bf16.msra.mxu0 %v2828
        %3225 = vmatpush.bf16.msra.mxu0 %v2824
        %3226 = vmatpush.bf16.msra.mxu0 %v2820
        %3227 = vmatpush.bf16.msra.mxu0 %v2816
        %3228 = vmatmul.bf16.gmra.mxu0 %v1598
        %v3229 = vpop.f32.mrf.mxu0
        %v3230 = vadd.f32 %v3216, %v3229
        %v3231 = vpop.f32.mrf.mxu0
        %v3232 = vadd.f32 %v3218, %v3231
        %3233 = vdwg.mxu0
        %3234 = vmatpush.bf16.msra.mxu0 %v2876
        %3235 = vmatpush.bf16.msra.mxu0 %v2872
        %3236 = vmatpush.bf16.msra.mxu0 %v2868
        %3237 = vmatpush.bf16.msra.mxu0 %v2864
        %3238 = vmatpush.bf16.msra.mxu0 %v2860
        %3239 = vmatpush.bf16.msra.mxu0 %v2856
        %3240 = vmatpush.bf16.msra.mxu0 %v2852
        %3241 = vmatpush.bf16.msra.mxu0 %v2848
        %3242 = vmatmul.bf16.gmra.mxu0 %v1599
        %v3243 = vpop.f32.mrf.mxu0
        %v3244 = vadd.f32 %v3230, %v3243
        %v3245 = vpop.f32.mrf.mxu0
        %v3246 = vadd.f32 %v3232, %v3245
        %3247 = vdwg.mxu0
        %3248 = vmatpush.bf16.msra.mxu0 %v2653
        %3249 = vmatpush.bf16.msra.mxu0 %v2649
        %3250 = vmatpush.bf16.msra.mxu0 %v2645
        %3251 = vmatpush.bf16.msra.mxu0 %v2641
        %3252 = vmatpush.bf16.msra.mxu0 %v2637
        %3253 = vmatpush.bf16.msra.mxu0 %v2633
        %3254 = vmatpush.bf16.msra.mxu0 %v2629
        %3255 = vmatpush.bf16.msra.mxu0 %v2625
        %3256 = vmatmul.bf16.gmra.mxu0 %v1592
        %v3257 = vpop.f32.mrf.mxu0
        %v3258 = vadd.f32 0.0, %v3257
        %v3259 = vpop.f32.mrf.mxu0
        %v3260 = vadd.f32 0.0, %v3259
        %3261 = vdwg.mxu0
        %3262 = vmatpush.bf16.msra.mxu0 %v2685
        %3263 = vmatpush.bf16.msra.mxu0 %v2681
        %3264 = vmatpush.bf16.msra.mxu0 %v2677
        %3265 = vmatpush.bf16.msra.mxu0 %v2673
        %3266 = vmatpush.bf16.msra.mxu0 %v2669
        %3267 = vmatpush.bf16.msra.mxu0 %v2665
        %3268 = vmatpush.bf16.msra.mxu0 %v2661
        %3269 = vmatpush.bf16.msra.mxu0 %v2657
        %3270 = vmatmul.bf16.gmra.mxu0 %v1593
        %v3271 = vpop.f32.mrf.mxu0
        %v3272 = vadd.f32 %v3258, %v3271
        %v3273 = vpop.f32.mrf.mxu0
        %v3274 = vadd.f32 %v3260, %v3273
        %3275 = vdwg.mxu0
        %3276 = vmatpush.bf16.msra.mxu0 %v2717
        %3277 = vmatpush.bf16.msra.mxu0 %v2713
        %3278 = vmatpush.bf16.msra.mxu0 %v2709
        %3279 = vmatpush.bf16.msra.mxu0 %v2705
        %3280 = vmatpush.bf16.msra.mxu0 %v2701
        %3281 = vmatpush.bf16.msra.mxu0 %v2697
        %3282 = vmatpush.bf16.msra.mxu0 %v2693
        %3283 = vmatpush.bf16.msra.mxu0 %v2689
        %3284 = vmatmul.bf16.gmra.mxu0 %v1594
        %v3285 = vpop.f32.mrf.mxu0
        %v3286 = vadd.f32 %v3272, %v3285
        %v3287 = vpop.f32.mrf.mxu0
        %v3288 = vadd.f32 %v3274, %v3287
        %3289 = vdwg.mxu0
        %3290 = vmatpush.bf16.msra.mxu0 %v2749
        %3291 = vmatpush.bf16.msra.mxu0 %v2745
        %3292 = vmatpush.bf16.msra.mxu0 %v2741
        %3293 = vmatpush.bf16.msra.mxu0 %v2737
        %3294 = vmatpush.bf16.msra.mxu0 %v2733
        %3295 = vmatpush.bf16.msra.mxu0 %v2729
        %3296 = vmatpush.bf16.msra.mxu0 %v2725
        %3297 = vmatpush.bf16.msra.mxu0 %v2721
        %3298 = vmatmul.bf16.gmra.mxu0 %v1595
        %v3299 = vpop.f32.mrf.mxu0
        %v3300 = vadd.f32 %v3286, %v3299
        %v3301 = vpop.f32.mrf.mxu0
        %v3302 = vadd.f32 %v3288, %v3301
        %3303 = vdwg.mxu0
        %3304 = vmatpush.bf16.msra.mxu0 %v2781
        %3305 = vmatpush.bf16.msra.mxu0 %v2777
        %3306 = vmatpush.bf16.msra.mxu0 %v2773
        %3307 = vmatpush.bf16.msra.mxu0 %v2769
        %3308 = vmatpush.bf16.msra.mxu0 %v2765
        %3309 = vmatpush.bf16.msra.mxu0 %v2761
        %3310 = vmatpush.bf16.msra.mxu0 %v2757
        %3311 = vmatpush.bf16.msra.mxu0 %v2753
        %3312 = vmatmul.bf16.gmra.mxu0 %v1596
        %v3313 = vpop.f32.mrf.mxu0
        %v3314 = vadd.f32 %v3300, %v3313
        %v3315 = vpop.f32.mrf.mxu0
        %v3316 = vadd.f32 %v3302, %v3315
        %3317 = vdwg.mxu0
        %3318 = vmatpush.bf16.msra.mxu0 %v2813
        %3319 = vmatpush.bf16.msra.mxu0 %v2809
        %3320 = vmatpush.bf16.msra.mxu0 %v2805
        %3321 = vmatpush.bf16.msra.mxu0 %v2801
        %3322 = vmatpush.bf16.msra.mxu0 %v2797
        %3323 = vmatpush.bf16.msra.mxu0 %v2793
        %3324 = vmatpush.bf16.msra.mxu0 %v2789
        %3325 = vmatpush.bf16.msra.mxu0 %v2785
        %3326 = vmatmul.bf16.gmra.mxu0 %v1597
        %v3327 = vpop.f32.mrf.mxu0
        %v3328 = vadd.f32 %v3314, %v3327
        %v3329 = vpop.f32.mrf.mxu0
        %v3330 = vadd.f32 %v3316, %v3329
        %3331 = vdwg.mxu0
        %3332 = vmatpush.bf16.msra.mxu0 %v2845
        %3333 = vmatpush.bf16.msra.mxu0 %v2841
        %3334 = vmatpush.bf16.msra.mxu0 %v2837
        %3335 = vmatpush.bf16.msra.mxu0 %v2833
        %3336 = vmatpush.bf16.msra.mxu0 %v2829
        %3337 = vmatpush.bf16.msra.mxu0 %v2825
        %3338 = vmatpush.bf16.msra.mxu0 %v2821
        %3339 = vmatpush.bf16.msra.mxu0 %v2817
        %3340 = vmatmul.bf16.gmra.mxu0 %v1598
        %v3341 = vpop.f32.mrf.mxu0
        %v3342 = vadd.f32 %v3328, %v3341
        %v3343 = vpop.f32.mrf.mxu0
        %v3344 = vadd.f32 %v3330, %v3343
        %3345 = vdwg.mxu0
        %3346 = vmatpush.bf16.msra.mxu0 %v2877
        %3347 = vmatpush.bf16.msra.mxu0 %v2873
        %3348 = vmatpush.bf16.msra.mxu0 %v2869
        %3349 = vmatpush.bf16.msra.mxu0 %v2865
        %3350 = vmatpush.bf16.msra.mxu0 %v2861
        %3351 = vmatpush.bf16.msra.mxu0 %v2857
        %3352 = vmatpush.bf16.msra.mxu0 %v2853
        %3353 = vmatpush.bf16.msra.mxu0 %v2849
        %3354 = vmatmul.bf16.gmra.mxu0 %v1599
        %v3355 = vpop.f32.mrf.mxu0
        %v3356 = vadd.f32 %v3342, %v3355
        %v3357 = vpop.f32.mrf.mxu0
        %v3358 = vadd.f32 %v3344, %v3357
        %3359 = vdwg.mxu0
        %3360 = vmatpush.bf16.msra.mxu0 %v2654
        %3361 = vmatpush.bf16.msra.mxu0 %v2650
        %3362 = vmatpush.bf16.msra.mxu0 %v2646
        %3363 = vmatpush.bf16.msra.mxu0 %v2642
        %3364 = vmatpush.bf16.msra.mxu0 %v2638
        %3365 = vmatpush.bf16.msra.mxu0 %v2634
        %3366 = vmatpush.bf16.msra.mxu0 %v2630
        %3367 = vmatpush.bf16.msra.mxu0 %v2626
        %3368 = vmatmul.bf16.gmra.mxu0 %v1592
        %v3369 = vpop.f32.mrf.mxu0
        %v3370 = vadd.f32 0.0, %v3369
        %v3371 = vpop.f32.mrf.mxu0
        %v3372 = vadd.f32 0.0, %v3371
        %3373 = vdwg.mxu0
        %3374 = vmatpush.bf16.msra.mxu0 %v2686
        %3375 = vmatpush.bf16.msra.mxu0 %v2682
        %3376 = vmatpush.bf16.msra.mxu0 %v2678
        %3377 = vmatpush.bf16.msra.mxu0 %v2674
        %3378 = vmatpush.bf16.msra.mxu0 %v2670
        %3379 = vmatpush.bf16.msra.mxu0 %v2666
        %3380 = vmatpush.bf16.msra.mxu0 %v2662
        %3381 = vmatpush.bf16.msra.mxu0 %v2658
        %3382 = vmatmul.bf16.gmra.mxu0 %v1593
        %v3383 = vpop.f32.mrf.mxu0
        %v3384 = vadd.f32 %v3370, %v3383
        %v3385 = vpop.f32.mrf.mxu0
        %v3386 = vadd.f32 %v3372, %v3385
        %3387 = vdwg.mxu0
        %3388 = vmatpush.bf16.msra.mxu0 %v2718
        %3389 = vmatpush.bf16.msra.mxu0 %v2714
        %3390 = vmatpush.bf16.msra.mxu0 %v2710
        %3391 = vmatpush.bf16.msra.mxu0 %v2706
        %3392 = vmatpush.bf16.msra.mxu0 %v2702
        %3393 = vmatpush.bf16.msra.mxu0 %v2698
        %3394 = vmatpush.bf16.msra.mxu0 %v2694
        %3395 = vmatpush.bf16.msra.mxu0 %v2690
        %3396 = vmatmul.bf16.gmra.mxu0 %v1594
        %v3397 = vpop.f32.mrf.mxu0
        %v3398 = vadd.f32 %v3384, %v3397
        %v3399 = vpop.f32.mrf.mxu0
        %v3400 = vadd.f32 %v3386, %v3399
        %3401 = vdwg.mxu0
        %3402 = vmatpush.bf16.msra.mxu0 %v2750
        %3403 = vmatpush.bf16.msra.mxu0 %v2746
        %3404 = vmatpush.bf16.msra.mxu0 %v2742
        %3405 = vmatpush.bf16.msra.mxu0 %v2738
        %3406 = vmatpush.bf16.msra.mxu0 %v2734
        %3407 = vmatpush.bf16.msra.mxu0 %v2730
        %3408 = vmatpush.bf16.msra.mxu0 %v2726
        %3409 = vmatpush.bf16.msra.mxu0 %v2722
        %3410 = vmatmul.bf16.gmra.mxu0 %v1595
        %v3411 = vpop.f32.mrf.mxu0
        %v3412 = vadd.f32 %v3398, %v3411
        %v3413 = vpop.f32.mrf.mxu0
        %v3414 = vadd.f32 %v3400, %v3413
        %3415 = vdwg.mxu0
        %3416 = vmatpush.bf16.msra.mxu0 %v2782
        %3417 = vmatpush.bf16.msra.mxu0 %v2778
        %3418 = vmatpush.bf16.msra.mxu0 %v2774
        %3419 = vmatpush.bf16.msra.mxu0 %v2770
        %3420 = vmatpush.bf16.msra.mxu0 %v2766
        %3421 = vmatpush.bf16.msra.mxu0 %v2762
        %3422 = vmatpush.bf16.msra.mxu0 %v2758
        %3423 = vmatpush.bf16.msra.mxu0 %v2754
        %3424 = vmatmul.bf16.gmra.mxu0 %v1596
        %v3425 = vpop.f32.mrf.mxu0
        %v3426 = vadd.f32 %v3412, %v3425
        %v3427 = vpop.f32.mrf.mxu0
        %v3428 = vadd.f32 %v3414, %v3427
        %3429 = vdwg.mxu0
        %3430 = vmatpush.bf16.msra.mxu0 %v2814
        %3431 = vmatpush.bf16.msra.mxu0 %v2810
        %3432 = vmatpush.bf16.msra.mxu0 %v2806
        %3433 = vmatpush.bf16.msra.mxu0 %v2802
        %3434 = vmatpush.bf16.msra.mxu0 %v2798
        %3435 = vmatpush.bf16.msra.mxu0 %v2794
        %3436 = vmatpush.bf16.msra.mxu0 %v2790
        %3437 = vmatpush.bf16.msra.mxu0 %v2786
        %3438 = vmatmul.bf16.gmra.mxu0 %v1597
        %v3439 = vpop.f32.mrf.mxu0
        %v3440 = vadd.f32 %v3426, %v3439
        %v3441 = vpop.f32.mrf.mxu0
        %v3442 = vadd.f32 %v3428, %v3441
        %3443 = vdwg.mxu0
        %3444 = vmatpush.bf16.msra.mxu0 %v2846
        %3445 = vmatpush.bf16.msra.mxu0 %v2842
        %3446 = vmatpush.bf16.msra.mxu0 %v2838
        %3447 = vmatpush.bf16.msra.mxu0 %v2834
        %3448 = vmatpush.bf16.msra.mxu0 %v2830
        %3449 = vmatpush.bf16.msra.mxu0 %v2826
        %3450 = vmatpush.bf16.msra.mxu0 %v2822
        %3451 = vmatpush.bf16.msra.mxu0 %v2818
        %3452 = vmatmul.bf16.gmra.mxu0 %v1598
        %v3453 = vpop.f32.mrf.mxu0
        %v3454 = vadd.f32 %v3440, %v3453
        %v3455 = vpop.f32.mrf.mxu0
        %v3456 = vadd.f32 %v3442, %v3455
        %3457 = vdwg.mxu0
        %3458 = vmatpush.bf16.msra.mxu0 %v2878
        %3459 = vmatpush.bf16.msra.mxu0 %v2874
        %3460 = vmatpush.bf16.msra.mxu0 %v2870
        %3461 = vmatpush.bf16.msra.mxu0 %v2866
        %3462 = vmatpush.bf16.msra.mxu0 %v2862
        %3463 = vmatpush.bf16.msra.mxu0 %v2858
        %3464 = vmatpush.bf16.msra.mxu0 %v2854
        %3465 = vmatpush.bf16.msra.mxu0 %v2850
        %3466 = vmatmul.bf16.gmra.mxu0 %v1599
        %v3467 = vpop.f32.mrf.mxu0
        %v3468 = vadd.f32 %v3454, %v3467
        %v3469 = vpop.f32.mrf.mxu0
        %v3470 = vadd.f32 %v3456, %v3469
        %3471 = vdwg.mxu0
        %3472 = vmatpush.bf16.msra.mxu0 %v2655
        %3473 = vmatpush.bf16.msra.mxu0 %v2651
        %3474 = vmatpush.bf16.msra.mxu0 %v2647
        %3475 = vmatpush.bf16.msra.mxu0 %v2643
        %3476 = vmatpush.bf16.msra.mxu0 %v2639
        %3477 = vmatpush.bf16.msra.mxu0 %v2635
        %3478 = vmatpush.bf16.msra.mxu0 %v2631
        %3479 = vmatpush.bf16.msra.mxu0 %v2627
        %3480 = vmatmul.bf16.gmra.mxu0 %v1592
        %v3481 = vpop.f32.mrf.mxu0
        %v3482 = vadd.f32 0.0, %v3481
        %v3483 = vpop.f32.mrf.mxu0
        %v3484 = vadd.f32 0.0, %v3483
        %3485 = vdwg.mxu0
        %3486 = vmatpush.bf16.msra.mxu0 %v2687
        %3487 = vmatpush.bf16.msra.mxu0 %v2683
        %3488 = vmatpush.bf16.msra.mxu0 %v2679
        %3489 = vmatpush.bf16.msra.mxu0 %v2675
        %3490 = vmatpush.bf16.msra.mxu0 %v2671
        %3491 = vmatpush.bf16.msra.mxu0 %v2667
        %3492 = vmatpush.bf16.msra.mxu0 %v2663
        %3493 = vmatpush.bf16.msra.mxu0 %v2659
        %3494 = vmatmul.bf16.gmra.mxu0 %v1593
        %v3495 = vpop.f32.mrf.mxu0
        %v3496 = vadd.f32 %v3482, %v3495
        %v3497 = vpop.f32.mrf.mxu0
        %v3498 = vadd.f32 %v3484, %v3497
        %3499 = vdwg.mxu0
        %3500 = vmatpush.bf16.msra.mxu0 %v2719
        %3501 = vmatpush.bf16.msra.mxu0 %v2715
        %3502 = vmatpush.bf16.msra.mxu0 %v2711
        %3503 = vmatpush.bf16.msra.mxu0 %v2707
        %3504 = vmatpush.bf16.msra.mxu0 %v2703
        %3505 = vmatpush.bf16.msra.mxu0 %v2699
        %3506 = vmatpush.bf16.msra.mxu0 %v2695
        %3507 = vmatpush.bf16.msra.mxu0 %v2691
        %3508 = vmatmul.bf16.gmra.mxu0 %v1594
        %v3509 = vpop.f32.mrf.mxu0
        %v3510 = vadd.f32 %v3496, %v3509
        %v3511 = vpop.f32.mrf.mxu0
        %v3512 = vadd.f32 %v3498, %v3511
        %3513 = vdwg.mxu0
        %3514 = vmatpush.bf16.msra.mxu0 %v2751
        %3515 = vmatpush.bf16.msra.mxu0 %v2747
        %3516 = vmatpush.bf16.msra.mxu0 %v2743
        %3517 = vmatpush.bf16.msra.mxu0 %v2739
        %3518 = vmatpush.bf16.msra.mxu0 %v2735
        %3519 = vmatpush.bf16.msra.mxu0 %v2731
        %3520 = vmatpush.bf16.msra.mxu0 %v2727
        %3521 = vmatpush.bf16.msra.mxu0 %v2723
        %3522 = vmatmul.bf16.gmra.mxu0 %v1595
        %v3523 = vpop.f32.mrf.mxu0
        %v3524 = vadd.f32 %v3510, %v3523
        %v3525 = vpop.f32.mrf.mxu0
        %v3526 = vadd.f32 %v3512, %v3525
        %3527 = vdwg.mxu0
        %3528 = vmatpush.bf16.msra.mxu0 %v2783
        %3529 = vmatpush.bf16.msra.mxu0 %v2779
        %3530 = vmatpush.bf16.msra.mxu0 %v2775
        %3531 = vmatpush.bf16.msra.mxu0 %v2771
        %3532 = vmatpush.bf16.msra.mxu0 %v2767
        %3533 = vmatpush.bf16.msra.mxu0 %v2763
        %3534 = vmatpush.bf16.msra.mxu0 %v2759
        %3535 = vmatpush.bf16.msra.mxu0 %v2755
        %3536 = vmatmul.bf16.gmra.mxu0 %v1596
        %v3537 = vpop.f32.mrf.mxu0
        %v3538 = vadd.f32 %v3524, %v3537
        %v3539 = vpop.f32.mrf.mxu0
        %v3540 = vadd.f32 %v3526, %v3539
        %3541 = vdwg.mxu0
        %3542 = vmatpush.bf16.msra.mxu0 %v2815
        %3543 = vmatpush.bf16.msra.mxu0 %v2811
        %3544 = vmatpush.bf16.msra.mxu0 %v2807
        %3545 = vmatpush.bf16.msra.mxu0 %v2803
        %3546 = vmatpush.bf16.msra.mxu0 %v2799
        %3547 = vmatpush.bf16.msra.mxu0 %v2795
        %3548 = vmatpush.bf16.msra.mxu0 %v2791
        %3549 = vmatpush.bf16.msra.mxu0 %v2787
        %3550 = vmatmul.bf16.gmra.mxu0 %v1597
        %v3551 = vpop.f32.mrf.mxu0
        %v3552 = vadd.f32 %v3538, %v3551
        %v3553 = vpop.f32.mrf.mxu0
        %v3554 = vadd.f32 %v3540, %v3553
        %3555 = vdwg.mxu0
        %3556 = vmatpush.bf16.msra.mxu0 %v2847
        %3557 = vmatpush.bf16.msra.mxu0 %v2843
        %3558 = vmatpush.bf16.msra.mxu0 %v2839
        %3559 = vmatpush.bf16.msra.mxu0 %v2835
        %3560 = vmatpush.bf16.msra.mxu0 %v2831
        %3561 = vmatpush.bf16.msra.mxu0 %v2827
        %3562 = vmatpush.bf16.msra.mxu0 %v2823
        %3563 = vmatpush.bf16.msra.mxu0 %v2819
        %3564 = vmatmul.bf16.gmra.mxu0 %v1598
        %v3565 = vpop.f32.mrf.mxu0
        %v3566 = vadd.f32 %v3552, %v3565
        %v3567 = vpop.f32.mrf.mxu0
        %v3568 = vadd.f32 %v3554, %v3567
        %3569 = vdwg.mxu0
        %3570 = vmatpush.bf16.msra.mxu0 %v2879
        %3571 = vmatpush.bf16.msra.mxu0 %v2875
        %3572 = vmatpush.bf16.msra.mxu0 %v2871
        %3573 = vmatpush.bf16.msra.mxu0 %v2867
        %3574 = vmatpush.bf16.msra.mxu0 %v2863
        %3575 = vmatpush.bf16.msra.mxu0 %v2859
        %3576 = vmatpush.bf16.msra.mxu0 %v2855
        %3577 = vmatpush.bf16.msra.mxu0 %v2851
        %3578 = vmatmul.bf16.gmra.mxu0 %v1599
        %v3579 = vpop.f32.mrf.mxu0
        %v3580 = vadd.f32 %v3566, %v3579
        %v3581 = vpop.f32.mrf.mxu0
        %v3582 = vadd.f32 %v3568, %v3581
        %3583 = vdwg.mxu0
        %v3584 = vpack.c.bf16 %v3356, %v3244
        %v3585 = vpack.c.bf16 %v3580, %v3468
        %v3586 = vpack.c.bf16 %v3358, %v3246
        %v3587 = vpack.c.bf16 %v3582, %v3470
        %3588 = vst [vmem:[%s670] sm:$0xff] %v3584
        %3589 = vst [vmem:[%s670 + $0x8] sm:$0xff] %v3585
        %3590 = vst [vmem:[%s670 + $0x10] sm:$0xff] %v3586
        %3591 = vst [vmem:[%s670 + $0x18] sm:$0xff] %v3587
        %p3592 = scmp.eq.s32.totalorder %s44, 0
        // Predicated region
        $region109: #{tpu_custom_call.1} parent=83 // pred_check
          %p3593 = pneg %p3592
        $region110: #{tpu_custom_call.1} parent=83 // pred_check_branch
          %3595 = sbr.rel (%p3593) target = $region112
        $region111: #{tpu_custom_call.1} parent=83 // pred_region
          %3596 = vst [vmem:[%s677] sm:$0xff] 0.0
        $region112: #{tpu_custom_call.1} parent=83 // pred_fallthru
          _
        %v3597 = vmax.f32 %v1576, %v1584
        %v3598 = vrot.slane %v3597, 4
        %v3599 = vmax.f32 %v3597, %v3598
        %v3600 = vrot.slane %v3599, 2
        %v3601 = vmax.f32 %v3599, %v3600
        %v3602 = vrot.slane %v3601, 1
        %v3603 = vmax.f32 %v3601, %v3602
        %v3604 = vmax.f32 %v1577, %v1585
        %v3605 = vrot.slane %v3604, 4
        %v3606 = vmax.f32 %v3604, %v3605
        %v3607 = vrot.slane %v3606, 2
        %v3608 = vmax.f32 %v3606, %v3607
        %v3609 = vrot.slane %v3608, 1
        %v3610 = vmax.f32 %v3608, %v3609
        %v3611 = vmax.f32 %v1578, %v1586
        %v3612 = vrot.slane %v3611, 4
        %v3613 = vmax.f32 %v3611, %v3612
        %v3614 = vrot.slane %v3613, 2
        %v3615 = vmax.f32 %v3613, %v3614
        %v3616 = vrot.slane %v3615, 1
        %v3617 = vmax.f32 %v3615, %v3616
        %v3618 = vmax.f32 %v1579, %v1587
        %v3619 = vrot.slane %v3618, 4
        %v3620 = vmax.f32 %v3618, %v3619
        %v3621 = vrot.slane %v3620, 2
        %v3622 = vmax.f32 %v3620, %v3621
        %v3623 = vrot.slane %v3622, 1
        %v3624 = vmax.f32 %v3622, %v3623
        %v3625 = vmax.f32 %v1580, %v1588
        %v3626 = vrot.slane %v3625, 4
        %v3627 = vmax.f32 %v3625, %v3626
        %v3628 = vrot.slane %v3627, 2
        %v3629 = vmax.f32 %v3627, %v3628
        %v3630 = vrot.slane %v3629, 1
        %v3631 = vmax.f32 %v3629, %v3630
        %v3632 = vmax.f32 %v1581, %v1589
        %v3633 = vrot.slane %v3632, 4
        %v3634 = vmax.f32 %v3632, %v3633
        %v3635 = vrot.slane %v3634, 2
        %v3636 = vmax.f32 %v3634, %v3635
        %v3637 = vrot.slane %v3636, 1
        %v3638 = vmax.f32 %v3636, %v3637
        %v3639 = vmax.f32 %v1582, %v1590
        %v3640 = vrot.slane %v3639, 4
        %v3641 = vmax.f32 %v3639, %v3640
        %v3642 = vrot.slane %v3641, 2
        %v3643 = vmax.f32 %v3641, %v3642
        %v3644 = vrot.slane %v3643, 1
        %v3645 = vmax.f32 %v3643, %v3644
        %v3646 = vmax.f32 %v1583, %v1591
        %v3647 = vrot.slane %v3646, 4
        %v3648 = vmax.f32 %v3646, %v3647
        %v3649 = vrot.slane %v3648, 2
        %v3650 = vmax.f32 %v3648, %v3649
        %v3651 = vrot.slane %v3650, 1
        %v3652 = vmax.f32 %v3650, %v3651
        %v3653 = vld [vmem:[%s677] sm:$0xff]
        %v3662 = vrot.slane %v3610, 7
        %v3663 = vrot.slane %v3617, 6
        %v3664 = vrot.slane %v3624, 5
        %v3665 = vrot.slane %v3631, 4
        %v3666 = vrot.slane %v3638, 3
        %v3667 = vrot.slane %v3645, 2
        %v3668 = vrot.slane %v3652, 1
        %vm3669 = vcmask 1040384
        %v3670 = vsel %vm3669, %v3603, %v3662
        %vm3671 = vcmask 1042434
        %v3672 = vsel %vm3671, %v3663, %v3664
        %vm3673 = vcmask 1041408
        %v3674 = vsel %vm3673, %v3670, %v3672
        %vm3675 = vcmask 1044484
        %v3676 = vsel %vm3675, %v3665, %v3666
        %vm3677 = vcmask 1046534
        %v3678 = vsel %vm3677, %v3667, %v3668
        %vm3679 = vcmask 1045508
        %v3680 = vsel %vm3679, %v3676, %v3678
        %v3681 = vsel %vm702, %v3674, %v3680
        %v3683 = vmax.f32 %v3653, %v3681
        %3684 = vst [vmem:[%s677] sm:$0xff] %v3683
        %s3685 = sand.u32 %s404, 1
        %s3686 = scalar_lea.sflag [#allocation4], %s3685
        %s3687 = sand.u32 %s404, 1
        %s3688 = smul.addr %s3687, 32
        %s3689 = scalar_lea.vmem [#allocation13], %s3688
        %s3690 = sand.u32 %s430, 1
        %s3691 = scalar_lea.sflag [#allocation15], %s3690
        %s3692 = sand.u32 %s430, 1
        %s3693 = smul.addr %s3692, 8
        %s3694 = scalar_lea.vmem [#allocation14], %s3693
        // Predicated region
        $region113: #{tpu_custom_call.1} parent=83 // pred_check
          %p3695 = pneg %p414
        $region114: #{tpu_custom_call.1} parent=83 // pred_check_branch
          %3697 = sbr.rel (%p3695) target = $region116
        $region115: #{tpu_custom_call.1} parent=83 // pred_region
          %s3698 = smul.u32 2, %s44
          %3700 = vsyncadd %s3686, 0
          %s3701 = smul.addr %s3698, 4
          %s3702 = smul.addr %s43, 8
          %s3703 = sadd.s32 %s3701, %s3702
          %s3704 = smul.addr %s3703, 4
          %s3705 = scalar_lea.hbm %s16, %s3704
          %s3706 = sshll.u32 %s3689, 4
          %s3707 = int_to_ptr.vmem [resolvable:$true] %s3706
          %s3708 = sshll.u32 %s3705, 4
          %s3709 = int_to_ptr.hbm [resolvable:$true] %s3708
          %3714 = dma.vmem_to_hbm [thread:$0]  %s3707, 512, %s3709, %s3686, 256, 256, 16
        $region116: #{tpu_custom_call.1} parent=83 // pred_fallthru
          _
        // Predicated region
        $region117: #{tpu_custom_call.1} parent=83 // pred_check
          %p3715 = pneg %p440
        $region118: #{tpu_custom_call.1} parent=83 // pred_check_branch
          %3717 = sbr.rel (%p3715) target = $region120
        $region119: #{tpu_custom_call.1} parent=83 // pred_region
          %3719 = vsyncadd %s3691, 0
          %s3720 = smul.addr %s43, 8
          %s3721 = scalar_lea.hbm %s17, %s3720
          %s3723 = sshll.u32 %s3694, 4
          %s3724 = int_to_ptr.vmem [resolvable:$true] %s3723
          %s3725 = sshll.u32 %s3721, 4
          %s3726 = int_to_ptr.hbm [resolvable:$true] %s3725
          %3728 = dma.vmem_to_hbm [thread:$0]  %s3724, 128, %s3726, %s3691
        $region120: #{tpu_custom_call.1} parent=83 // pred_fallthru
          _
      $region84: #{tpu_custom_call.1} parent=5 // pred_fallthru
        _
      %p3729 = scmp.le.s32.totalorder 2, %s34
      // Predicated region
      $region121: #{tpu_custom_call.1} parent=5 // pred_check
        %p3730 = pneg %p3729
      $region122: #{tpu_custom_call.1} parent=5 // pred_check_branch
        %3732 = sbr.rel (%p3730) target = $region124
      $region123: #{tpu_custom_call.1} parent=5 // pred_region
        %s3733 = ssub.s32 %s34, 2
        // Predicated region
        $region125: #{tpu_custom_call.1} parent=123 // pred_check
          %p3734 = pneg %p420
        $region126: #{tpu_custom_call.1} parent=123 // pred_check_branch
          %3736 = sbr.rel (%p3734) target = $region128
        $region127: #{tpu_custom_call.1} parent=123 // pred_region
          %s3737 = sand.u32 %s405, 1
          %s3738 = scalar_lea.sflag [#allocation4], %s3737
          %s3739 = sand.u32 %s405, 1
          %s3740 = smul.addr %s3739, 32
          %s3741 = scalar_lea.vmem [#allocation13], %s3740
          %3743 = dma.done %s3738, 512
        $region128: #{tpu_custom_call.1} parent=123 // pred_fallthru
          _
        // Predicated region
        $region129: #{tpu_custom_call.1} parent=123 // pred_check
          %p3744 = pneg %p446
        $region130: #{tpu_custom_call.1} parent=123 // pred_check_branch
          %3746 = sbr.rel (%p3744) target = $region132
        $region131: #{tpu_custom_call.1} parent=123 // pred_region
          %s3747 = sand.u32 %s431, 1
          %s3748 = scalar_lea.sflag [#allocation15], %s3747
          %s3749 = sand.u32 %s431, 1
          %s3750 = smul.addr %s3749, 8
          %s3751 = scalar_lea.vmem [#allocation14], %s3750
          %3753 = dma.done %s3748, 128
        $region132: #{tpu_custom_call.1} parent=123 // pred_fallthru
          _
      $region124: #{tpu_custom_call.1} parent=5 // pred_fallthru
        _
    $region6: #{tpu_custom_call.1} parent=1 // loop_footer
      %s38 = sadd.s32 1, %s34
    $region7: #{tpu_custom_call.1} parent=1 // loop_footer_branch
      %33 = sbr.rel target = $region3
    $region8: #{tpu_custom_call.1} parent=1 // loop_exit
      _
    %3754 = vsyncpa [#allocation3], 1
    %s3755 = scalar_lea.sflag [#allocation3], 1
    %3756 = vsyncpa %s3755, 1
    %3757 = vsyncpa [#allocation6], 1
    %3758 = vsyncpa [#allocation9], 1
    %3759 = vsyncpa [#allocation12], 1
    %3760 = vsyncpa [#allocation4], 1
    %s3761 = scalar_lea.sflag [#allocation4], 1
    %3762 = vsyncpa %s3761, 1
    %3763 = vsyncpa [#allocation15], 1
    %s3764 = scalar_lea.sflag [#allocation15], 1
    %3765 = vsyncpa %s3764, 1

</llo_original>
